<compile_context>
chip_gen: v7x
topology: tpu7x:2x2x1
jax: 0.10.0
libtpu: 0.0.40
codegen_flags: <defaults>
</compile_context>

<pallas_src>
import jax
import jax.numpy as jnp
from jax.experimental import pallas as pl
from jax.experimental.pallas import tpu as pltpu


# ------------------------------ fused kernel --------------------------------

def _make_kernel(T, B, Hd):
    """Builds the fused forward kernel with static T / B / Hd."""

    def kernel(both_ref, fc1w_ref, fc1b_ref,
               wih0_ref, whh0_ref, b0_ref,
               wih1_ref, whh1_ref, b1_ref,
               fc2w_ref, fc2b_ref,
               out_ref, hn_ref, cn_ref,
               hseq_sc):
        # ---- fc1 + ReLU: one MXU matmul over the whole flattened sequence ----
        embeds = jnp.maximum(
            jnp.dot(both_ref[...], fc1w_ref[...],
                    preferred_element_type=jnp.float32) + fc1b_ref[...], 0.0)

        # ---- hoisted layer-0 input projection for all time steps ----
        gates0_pre = jnp.dot(embeds, wih0_ref[...],
                             preferred_element_type=jnp.float32) + b0_ref[...]

        whh0 = whh0_ref[...]
        wih1 = wih1_ref[...]
        whh1 = whh1_ref[...]
        b1 = b1_ref[...]

        def lstm_cell(gates, c_prev):
            # g-gate columns were pre-scaled by 2 in the wrapper, so one tanh
            # over the full 128-lane gate vector yields tanh(pre_g) for g and
            # 0.5*y + 0.5 == sigmoid(pre) for i/f/o.
            y = jnp.tanh(0.5 * gates)
            sig = 0.5 * y + 0.5
            i_g = sig[:, 0 * Hd:1 * Hd]      # PyTorch gate order: i, f, g, o
            f_g = sig[:, 1 * Hd:2 * Hd]
            g_g = y[:, 2 * Hd:3 * Hd]
            o_g = sig[:, 3 * Hd:4 * Hd]
            c = f_g * c_prev + i_g * g_g
            h = o_g * jnp.tanh(c)
            return h, c

        zeros = jnp.zeros((B, Hd), jnp.float32)   # == module's init_hidden()
        h0 = c0 = zeros
        h1 = c1 = zeros

        # Wavefront over the two layers: layer-1 step t depends only on h0_t and
        # h1_{t-1}, so the dependence chain is ~T+1 recurrent matmuls, not 2T.
        # T is tiny and static -> full unroll.
        # TODO(synk): switch to lax.fori_loop (with carried h/c) if T grows large.
        for t in range(T):
            # ----- layer 0, step t -----
            g0 = gates0_pre[t * B:(t + 1) * B, :]
            if t > 0:                               # h0 is exactly zero at t == 0
                g0 = g0 + jnp.dot(h0, whh0, preferred_element_type=jnp.float32)
            h0, c0 = lstm_cell(g0, c0)

            # ----- layer 1, step t (consumes h0_t immediately) -----
            g1 = jnp.dot(h0, wih1, preferred_element_type=jnp.float32) + b1
            if t > 0:                               # h1 is exactly zero at t == 0
                g1 = g1 + jnp.dot(h1, whh1, preferred_element_type=jnp.float32)
            h1, c1 = lstm_cell(g1, c1)

            # Stage layer-1 output for fc2; this store is off the serial chain.
            hseq_sc[pl.ds(t * B, B), :] = h1

        # Final states written once per layer (flat (2*B, Hd) layout).
        hn_ref[pl.ds(0, B), :] = h0
        hn_ref[pl.ds(B, B), :] = h1
        cn_ref[pl.ds(0, B), :] = c0
        cn_ref[pl.ds(B, B), :] = c1

        # ---- fc2 (zero-padded to 128 lanes) + sigmoid, one lane-dense store ----
        logits = jnp.dot(hseq_sc[...], fc2w_ref[...],
                         preferred_element_type=jnp.float32) + fc2b_ref[...]
        out_ref[...] = jax.nn.sigmoid(logits).astype(out_ref.dtype)

    return kernel


# ------------------------------ model forward --------------------------------

def hantman_forward(params, inputs):
    """Mirrors HantmanHungarianConcat.forward (hidden is zero-initialised inside)."""
    T, B = inputs[0].shape[0], inputs[0].shape[1]
    both_flat = jnp.concatenate(inputs, axis=2).reshape(T * B, -1)
    Hd = params["fc1_w"].shape[1]
    O = params["fc2_w"].shape[1]
    n_layers = len(params["lstm"])
    OPAD = 128                       # lane-dense fc2 output width

    # Pre-scale the g-gate (cell candidate) columns by 2 so the kernel only
    # needs a single tanh per gate vector (sigmoid = 0.5*tanh(x/2) + 0.5).
    def scale_g(w):
        return w.at[..., 2 * Hd:3 * Hd].multiply(2.0)

    lstm_args = []
    for layer in params["lstm"]:
        lstm_args += [scale_g(layer["w_ih"]), scale_g(layer["w_hh"]),
                      scale_g(layer["b"])]

    # Zero-pad fc2 to 128 output lanes (padded lanes sliced off after the call).
    fc2_w = jnp.zeros((Hd, OPAD), jnp.float32).at[:, :O].set(params["fc2_w"])
    fc2_b = jnp.zeros((1, OPAD), jnp.float32).at[:, :O].set(params["fc2_b"])

    vmem = pl.BlockSpec(memory_space=pltpu.MemorySpace.VMEM)
    out_flat, hn_flat, cn_flat = pl.pallas_call(
        _make_kernel(T, B, Hd),
        out_shape=(jax.ShapeDtypeStruct((T * B, OPAD), jnp.float32),
                   jax.ShapeDtypeStruct((n_layers * B, Hd), jnp.float32),
                   jax.ShapeDtypeStruct((n_layers * B, Hd), jnp.float32)),
        in_specs=[vmem] * 11,
        out_specs=(vmem, vmem, vmem),
        scratch_shapes=[pltpu.VMEM((T * B, Hd), jnp.float32)],   # layer-1 hidden seq
    )(both_flat,
      params["fc1_w"], params["fc1_b"],
      *lstm_args,
      fc2_w, fc2_b)

    out = out_flat[:, :O].reshape(T, B, O)
    h_n = hn_flat.reshape(n_layers, B, Hd)
    c_n = cn_flat.reshape(n_layers, B, Hd)
    return out, (h_n, c_n)


# ---------------------------- pure-JAX reference -----------------------------

def _ref_forward(params, inputs):
    T, B = inputs[0].shape[0], inputs[0].shape[1]
    both = jnp.concatenate(inputs, axis=2)
    Hd = params["fc1_w"].shape[1]
    x = jax.nn.relu(both.reshape(-1, both.shape[-1]) @ params["fc1_w"]
                    + params["fc1_b"])
    x = x.reshape(T, B, Hd)

    h_n, c_n = [], []
    layer_in = x
    for layer in range(2):
        p = params["lstm"][layer]

        def step(carry, xt, p=p):
            h, c = carry
            gates = xt @ p["w_ih"] + h @ p["w_hh"] + p["b"][0]
            i = jax.nn.sigmoid(gates[:, :Hd])
            f = jax.nn.sigmoid(gates[:, Hd:2 * Hd])
            g = jnp.tanh(gates[:, 2 * Hd:3 * Hd])
            o = jax.nn.sigmoid(gates[:, 3 * Hd:])
            c = f * c + i * g
            h = o * jnp.tanh(c)
            return (h, c), h

        h0 = jnp.zeros((B, Hd), jnp.float32)
        c0 = jnp.zeros((B, Hd), jnp.float32)
        (hN, cN), hseq = jax.lax.scan(step, (h0, c0), layer_in)
        layer_in = hseq
        h_n.append(hN)
        c_n.append(cN)

    out = jax.nn.sigmoid(layer_in.reshape(-1, Hd) @ params["fc2_w"]
                         + params["fc2_b"])
    return out.reshape(T, B, -1), (jnp.stack(h_n), jnp.stack(c_n))


# ----------------------------------- main ------------------------------------

if __name__ == "__main__":
    T, B = 8, 2
    input_dims = [10, 6]
    hidden_dim = 32          # 4*H = 128 -> lane-dense gate vectors
    output_dim = 6
    n_layers = 2

    key = jax.random.PRNGKey(0)
    kit = iter(jax.random.split(key, 32))

    def init(shape, scale=0.1):
        return jax.random.normal(next(kit), shape, jnp.float32) * scale

    params = {
        "fc1_w": init((sum(input_dims), hidden_dim)),
        "fc1_b": init((1, hidden_dim)),
        "fc2_w": init((hidden_dim, output_dim)),
        "fc2_b": init((1, output_dim)),
        "lstm": [],
    }
    for _ in range(n_layers):
        params["lstm"].append({
            "w_ih": init((hidden_dim, 4 * hidden_dim)),
            "w_hh": init((hidden_dim, 4 * hidden_dim)),
            "b": init((1, 4 * hidden_dim)),
        })

    inputs = [init((T, B, input_dims[0]), 1.0),
              init((T, B, input_dims[1]), 1.0)]

    out, (h_n, c_n) = hantman_forward(params, inputs)
    jax.block_until_ready((out, h_n, c_n))

    ref_out, (ref_h, ref_c) = _ref_forward(params, inputs)
    assert out.shape == (T, B, output_dim)
    assert h_n.shape == (n_layers, B, hidden_dim)
    assert c_n.shape == (n_layers, B, hidden_dim)
    assert jnp.allclose(out, ref_out, atol=1e-3, rtol=1e-3)
    assert jnp.allclose(h_n, ref_h, atol=1e-3, rtol=1e-3)
    assert jnp.allclose(c_n, ref_c, atol=1e-3, rtol=1e-3)

    print("KERNEL_OK")
</pallas_src>

<mosaic_0001>
module attributes {stable_mosaic.version = 11 : i64} {
  func.func @kernel(%arg0: memref<16x16xf32, #tpu.memory_space<vmem>>, %arg1: memref<16x32xf32, #tpu.memory_space<vmem>>, %arg2: memref<1x32xf32, #tpu.memory_space<vmem>>, %arg3: memref<32x128xf32, #tpu.memory_space<vmem>>, %arg4: memref<32x128xf32, #tpu.memory_space<vmem>>, %arg5: memref<1x128xf32, #tpu.memory_space<vmem>>, %arg6: memref<32x128xf32, #tpu.memory_space<vmem>>, %arg7: memref<32x128xf32, #tpu.memory_space<vmem>>, %arg8: memref<1x128xf32, #tpu.memory_space<vmem>>, %arg9: memref<32x128xf32, #tpu.memory_space<vmem>>, %arg10: memref<1x128xf32, #tpu.memory_space<vmem>>, %arg11: memref<16x128xf32, #tpu.memory_space<vmem>>, %arg12: memref<4x32xf32, #tpu.memory_space<vmem>>, %arg13: memref<4x32xf32, #tpu.memory_space<vmem>>, %arg14: memref<16x32xf32, #tpu.memory_space<vmem>>) attributes {dimension_semantics = [], scalar_prefetch = 0 : i64, scratch_operands = 1 : i64, tpu.core_type = #tpu.core_type<tc>} {
    %c0 = arith.constant 0 : index
    %c0_0 = arith.constant 0 : index
    %0 = vector.load %arg0[%c0, %c0_0] : memref<16x16xf32, #tpu.memory_space<vmem>>, vector<16x16xf32>
    %c0_1 = arith.constant 0 : index
    %c0_2 = arith.constant 0 : index
    %1 = vector.load %arg1[%c0_1, %c0_2] : memref<16x32xf32, #tpu.memory_space<vmem>>, vector<16x32xf32>
    %cst = arith.constant dense<0.000000e+00> : vector<16x32xf32>
    %2 = tpu.matmul %0, %1, %cst {dimension_numbers = #tpu.dot_dimension_numbers<[1], [0], [0], [1], [0, 0, 1, 1], [], []>} : vector<16x16xf32>, vector<16x32xf32>, vector<16x32xf32> -> vector<16x32xf32>
    %c0_3 = arith.constant 0 : index
    %c0_4 = arith.constant 0 : index
    %3 = vector.load %arg2[%c0_3, %c0_4] : memref<1x32xf32, #tpu.memory_space<vmem>>, vector<1x32xf32>
    %4 = vector.broadcast %3 : vector<1x32xf32> to vector<16x32xf32>
    %5 = arith.addf %2, %4 : vector<16x32xf32>
    %cst_5 = arith.constant 0.000000e+00 : f32
    %6 = vector.broadcast %cst_5 : f32 to vector<16x32xf32>
    %7 = arith.maximumf %5, %6 : vector<16x32xf32>
    %c0_6 = arith.constant 0 : index
    %c0_7 = arith.constant 0 : index
    %8 = vector.load %arg3[%c0_6, %c0_7] : memref<32x128xf32, #tpu.memory_space<vmem>>, vector<32x128xf32>
    %cst_8 = arith.constant dense<0.000000e+00> : vector<16x128xf32>
    %9 = tpu.matmul %7, %8, %cst_8 {dimension_numbers = #tpu.dot_dimension_numbers<[1], [0], [0], [1], [0, 0, 1, 1], [], []>} : vector<16x32xf32>, vector<32x128xf32>, vector<16x128xf32> -> vector<16x128xf32>
    %c0_9 = arith.constant 0 : index
    %c0_10 = arith.constant 0 : index
    %10 = vector.load %arg5[%c0_9, %c0_10] : memref<1x128xf32, #tpu.memory_space<vmem>>, vector<1x128xf32>
    %11 = vector.broadcast %10 : vector<1x128xf32> to vector<16x128xf32>
    %12 = arith.addf %9, %11 : vector<16x128xf32>
    %c0_11 = arith.constant 0 : index
    %c0_12 = arith.constant 0 : index
    %13 = vector.load %arg4[%c0_11, %c0_12] : memref<32x128xf32, #tpu.memory_space<vmem>>, vector<32x128xf32>
    %c0_13 = arith.constant 0 : index
    %c0_14 = arith.constant 0 : index
    %14 = vector.load %arg6[%c0_13, %c0_14] : memref<32x128xf32, #tpu.memory_space<vmem>>, vector<32x128xf32>
    %c0_15 = arith.constant 0 : index
    %c0_16 = arith.constant 0 : index
    %15 = vector.load %arg7[%c0_15, %c0_16] : memref<32x128xf32, #tpu.memory_space<vmem>>, vector<32x128xf32>
    %c0_17 = arith.constant 0 : index
    %c0_18 = arith.constant 0 : index
    %16 = vector.load %arg8[%c0_17, %c0_18] : memref<1x128xf32, #tpu.memory_space<vmem>>, vector<1x128xf32>
    %cst_19 = arith.constant 0.000000e+00 : f32
    %17 = vector.broadcast %cst_19 : f32 to vector<2x32xf32>
    %18 = vector.extract_strided_slice %12 {offsets = [0, 0], sizes = [2, 128], strides = [1, 1]} : vector<16x128xf32> to vector<2x128xf32>
    %cst_20 = arith.constant 5.000000e-01 : f32
    %19 = vector.broadcast %cst_20 : f32 to vector<2x128xf32>
    %20 = arith.mulf %19, %18 : vector<2x128xf32>
    %21 = math.tanh %20 : vector<2x128xf32>
    %cst_21 = arith.constant 5.000000e-01 : f32
    %22 = vector.broadcast %cst_21 : f32 to vector<2x128xf32>
    %23 = arith.mulf %22, %21 : vector<2x128xf32>
    %cst_22 = arith.constant 5.000000e-01 : f32
    %24 = vector.broadcast %cst_22 : f32 to vector<2x128xf32>
    %25 = arith.addf %23, %24 : vector<2x128xf32>
    %26 = vector.extract_strided_slice %25 {offsets = [0, 0], sizes = [2, 32], strides = [1, 1]} : vector<2x128xf32> to vector<2x32xf32>
    %27 = vector.extract_strided_slice %25 {offsets = [0, 32], sizes = [2, 32], strides = [1, 1]} : vector<2x128xf32> to vector<2x32xf32>
    %28 = vector.extract_strided_slice %21 {offsets = [0, 64], sizes = [2, 32], strides = [1, 1]} : vector<2x128xf32> to vector<2x32xf32>
    %29 = vector.extract_strided_slice %25 {offsets = [0, 96], sizes = [2, 32], strides = [1, 1]} : vector<2x128xf32> to vector<2x32xf32>
    %30 = arith.mulf %27, %17 : vector<2x32xf32>
    %31 = arith.mulf %26, %28 : vector<2x32xf32>
    %32 = arith.addf %30, %31 : vector<2x32xf32>
    %33 = math.tanh %32 : vector<2x32xf32>
    %34 = arith.mulf %29, %33 : vector<2x32xf32>
    %cst_23 = arith.constant dense<0.000000e+00> : vector<2x128xf32>
    %35 = tpu.matmul %34, %14, %cst_23 {dimension_numbers = #tpu.dot_dimension_numbers<[1], [0], [0], [1], [0, 0, 1, 1], [], []>} : vector<2x32xf32>, vector<32x128xf32>, vector<2x128xf32> -> vector<2x128xf32>
    %36 = vector.broadcast %16 : vector<1x128xf32> to vector<2x128xf32>
    %37 = arith.addf %35, %36 : vector<2x128xf32>
    %cst_24 = arith.constant 5.000000e-01 : f32
    %38 = vector.broadcast %cst_24 : f32 to vector<2x128xf32>
    %39 = arith.mulf %38, %37 : vector<2x128xf32>
    %40 = math.tanh %39 : vector<2x128xf32>
    %cst_25 = arith.constant 5.000000e-01 : f32
    %41 = vector.broadcast %cst_25 : f32 to vector<2x128xf32>
    %42 = arith.mulf %41, %40 : vector<2x128xf32>
    %cst_26 = arith.constant 5.000000e-01 : f32
    %43 = vector.broadcast %cst_26 : f32 to vector<2x128xf32>
    %44 = arith.addf %42, %43 : vector<2x128xf32>
    %45 = vector.extract_strided_slice %44 {offsets = [0, 0], sizes = [2, 32], strides = [1, 1]} : vector<2x128xf32> to vector<2x32xf32>
    %46 = vector.extract_strided_slice %44 {offsets = [0, 32], sizes = [2, 32], strides = [1, 1]} : vector<2x128xf32> to vector<2x32xf32>
    %47 = vector.extract_strided_slice %40 {offsets = [0, 64], sizes = [2, 32], strides = [1, 1]} : vector<2x128xf32> to vector<2x32xf32>
    %48 = vector.extract_strided_slice %44 {offsets = [0, 96], sizes = [2, 32], strides = [1, 1]} : vector<2x128xf32> to vector<2x32xf32>
    %49 = arith.mulf %46, %17 : vector<2x32xf32>
    %50 = arith.mulf %45, %47 : vector<2x32xf32>
    %51 = arith.addf %49, %50 : vector<2x32xf32>
    %52 = math.tanh %51 : vector<2x32xf32>
    %53 = arith.mulf %48, %52 : vector<2x32xf32>
    %c0_27 = arith.constant 0 : index
    %c0_28 = arith.constant 0 : index
    %54 = vector.load %arg14[%c0_27, %c0_28] : memref<16x32xf32, #tpu.memory_space<vmem>>, vector<2x32xf32>
    tpu.vector_store %arg14[%c0_27, %c0_28], %53 {strides = array<i32>} : memref<16x32xf32, #tpu.memory_space<vmem>>, vector<2x32xf32>,
    %55 = vector.extract_strided_slice %12 {offsets = [2, 0], sizes = [2, 128], strides = [1, 1]} : vector<16x128xf32> to vector<2x128xf32>
    %cst_29 = arith.constant dense<0.000000e+00> : vector<2x128xf32>
    %56 = tpu.matmul %34, %13, %cst_29 {dimension_numbers = #tpu.dot_dimension_numbers<[1], [0], [0], [1], [0, 0, 1, 1], [], []>} : vector<2x32xf32>, vector<32x128xf32>, vector<2x128xf32> -> vector<2x128xf32>
    %57 = arith.addf %55, %56 : vector<2x128xf32>
    %cst_30 = arith.constant 5.000000e-01 : f32
    %58 = vector.broadcast %cst_30 : f32 to vector<2x128xf32>
    %59 = arith.mulf %58, %57 : vector<2x128xf32>
    %60 = math.tanh %59 : vector<2x128xf32>
    %cst_31 = arith.constant 5.000000e-01 : f32
    %61 = vector.broadcast %cst_31 : f32 to vector<2x128xf32>
    %62 = arith.mulf %61, %60 : vector<2x128xf32>
    %cst_32 = arith.constant 5.000000e-01 : f32
    %63 = vector.broadcast %cst_32 : f32 to vector<2x128xf32>
    %64 = arith.addf %62, %63 : vector<2x128xf32>
    %65 = vector.extract_strided_slice %64 {offsets = [0, 0], sizes = [2, 32], strides = [1, 1]} : vector<2x128xf32> to vector<2x32xf32>
    %66 = vector.extract_strided_slice %64 {offsets = [0, 32], sizes = [2, 32], strides = [1, 1]} : vector<2x128xf32> to vector<2x32xf32>
    %67 = vector.extract_strided_slice %60 {offsets = [0, 64], sizes = [2, 32], strides = [1, 1]} : vector<2x128xf32> to vector<2x32xf32>
    %68 = vector.extract_strided_slice %64 {offsets = [0, 96], sizes = [2, 32], strides = [1, 1]} : vector<2x128xf32> to vector<2x32xf32>
    %69 = arith.mulf %66, %32 : vector<2x32xf32>
    %70 = arith.mulf %65, %67 : vector<2x32xf32>
    %71 = arith.addf %69, %70 : vector<2x32xf32>
    %72 = math.tanh %71 : vector<2x32xf32>
    %73 = arith.mulf %68, %72 : vector<2x32xf32>
    %cst_33 = arith.constant dense<0.000000e+00> : vector<2x128xf32>
    %74 = tpu.matmul %73, %14, %cst_33 {dimension_numbers = #tpu.dot_dimension_numbers<[1], [0], [0], [1], [0, 0, 1, 1], [], []>} : vector<2x32xf32>, vector<32x128xf32>, vector<2x128xf32> -> vector<2x128xf32>
    %75 = vector.broadcast %16 : vector<1x128xf32> to vector<2x128xf32>
    %76 = arith.addf %74, %75 : vector<2x128xf32>
    %cst_34 = arith.constant dense<0.000000e+00> : vector<2x128xf32>
    %77 = tpu.matmul %53, %15, %cst_34 {dimension_numbers = #tpu.dot_dimension_numbers<[1], [0], [0], [1], [0, 0, 1, 1], [], []>} : vector<2x32xf32>, vector<32x128xf32>, vector<2x128xf32> -> vector<2x128xf32>
    %78 = arith.addf %76, %77 : vector<2x128xf32>
    %cst_35 = arith.constant 5.000000e-01 : f32
    %79 = vector.broadcast %cst_35 : f32 to vector<2x128xf32>
    %80 = arith.mulf %79, %78 : vector<2x128xf32>
    %81 = math.tanh %80 : vector<2x128xf32>
    %cst_36 = arith.constant 5.000000e-01 : f32
    %82 = vector.broadcast %cst_36 : f32 to vector<2x128xf32>
    %83 = arith.mulf %82, %81 : vector<2x128xf32>
    %cst_37 = arith.constant 5.000000e-01 : f32
    %84 = vector.broadcast %cst_37 : f32 to vector<2x128xf32>
    %85 = arith.addf %83, %84 : vector<2x128xf32>
    %86 = vector.extract_strided_slice %85 {offsets = [0, 0], sizes = [2, 32], strides = [1, 1]} : vector<2x128xf32> to vector<2x32xf32>
    %87 = vector.extract_strided_slice %85 {offsets = [0, 32], sizes = [2, 32], strides = [1, 1]} : vector<2x128xf32> to vector<2x32xf32>
    %88 = vector.extract_strided_slice %81 {offsets = [0, 64], sizes = [2, 32], strides = [1, 1]} : vector<2x128xf32> to vector<2x32xf32>
    %89 = vector.extract_strided_slice %85 {offsets = [0, 96], sizes = [2, 32], strides = [1, 1]} : vector<2x128xf32> to vector<2x32xf32>
    %90 = arith.mulf %87, %51 : vector<2x32xf32>
    %91 = arith.mulf %86, %88 : vector<2x32xf32>
    %92 = arith.addf %90, %91 : vector<2x32xf32>
    %93 = math.tanh %92 : vector<2x32xf32>
    %94 = arith.mulf %89, %93 : vector<2x32xf32>
    %c2 = arith.constant 2 : index
    %c0_38 = arith.constant 0 : index
    %95 = vector.load %arg14[%c2, %c0_38] : memref<16x32xf32, #tpu.memory_space<vmem>>, vector<2x32xf32>
    tpu.vector_store %arg14[%c2, %c0_38], %94 {strides = array<i32>} : memref<16x32xf32, #tpu.memory_space<vmem>>, vector<2x32xf32>,
    %96 = vector.extract_strided_slice %12 {offsets = [4, 0], sizes = [2, 128], strides = [1, 1]} : vector<16x128xf32> to vector<2x128xf32>
    %cst_39 = arith.constant dense<0.000000e+00> : vector<2x128xf32>
    %97 = tpu.matmul %73, %13, %cst_39 {dimension_numbers = #tpu.dot_dimension_numbers<[1], [0], [0], [1], [0, 0, 1, 1], [], []>} : vector<2x32xf32>, vector<32x128xf32>, vector<2x128xf32> -> vector<2x128xf32>
    %98 = arith.addf %96, %97 : vector<2x128xf32>
    %cst_40 = arith.constant 5.000000e-01 : f32
    %99 = vector.broadcast %cst_40 : f32 to vector<2x128xf32>
    %100 = arith.mulf %99, %98 : vector<2x128xf32>
    %101 = math.tanh %100 : vector<2x128xf32>
    %cst_41 = arith.constant 5.000000e-01 : f32
    %102 = vector.broadcast %cst_41 : f32 to vector<2x128xf32>
    %103 = arith.mulf %102, %101 : vector<2x128xf32>
    %cst_42 = arith.constant 5.000000e-01 : f32
    %104 = vector.broadcast %cst_42 : f32 to vector<2x128xf32>
    %105 = arith.addf %103, %104 : vector<2x128xf32>
    %106 = vector.extract_strided_slice %105 {offsets = [0, 0], sizes = [2, 32], strides = [1, 1]} : vector<2x128xf32> to vector<2x32xf32>
    %107 = vector.extract_strided_slice %105 {offsets = [0, 32], sizes = [2, 32], strides = [1, 1]} : vector<2x128xf32> to vector<2x32xf32>
    %108 = vector.extract_strided_slice %101 {offsets = [0, 64], sizes = [2, 32], strides = [1, 1]} : vector<2x128xf32> to vector<2x32xf32>
    %109 = vector.extract_strided_slice %105 {offsets = [0, 96], sizes = [2, 32], strides = [1, 1]} : vector<2x128xf32> to vector<2x32xf32>
    %110 = arith.mulf %107, %71 : vector<2x32xf32>
    %111 = arith.mulf %106, %108 : vector<2x32xf32>
    %112 = arith.addf %110, %111 : vector<2x32xf32>
    %113 = math.tanh %112 : vector<2x32xf32>
    %114 = arith.mulf %109, %113 : vector<2x32xf32>
    %cst_43 = arith.constant dense<0.000000e+00> : vector<2x128xf32>
    %115 = tpu.matmul %114, %14, %cst_43 {dimension_numbers = #tpu.dot_dimension_numbers<[1], [0], [0], [1], [0, 0, 1, 1], [], []>} : vector<2x32xf32>, vector<32x128xf32>, vector<2x128xf32> -> vector<2x128xf32>
    %116 = vector.broadcast %16 : vector<1x128xf32> to vector<2x128xf32>
    %117 = arith.addf %115, %116 : vector<2x128xf32>
    %cst_44 = arith.constant dense<0.000000e+00> : vector<2x128xf32>
    %118 = tpu.matmul %94, %15, %cst_44 {dimension_numbers = #tpu.dot_dimension_numbers<[1], [0], [0], [1], [0, 0, 1, 1], [], []>} : vector<2x32xf32>, vector<32x128xf32>, vector<2x128xf32> -> vector<2x128xf32>
    %119 = arith.addf %117, %118 : vector<2x128xf32>
    %cst_45 = arith.constant 5.000000e-01 : f32
    %120 = vector.broadcast %cst_45 : f32 to vector<2x128xf32>
    %121 = arith.mulf %120, %119 : vector<2x128xf32>
    %122 = math.tanh %121 : vector<2x128xf32>
    %cst_46 = arith.constant 5.000000e-01 : f32
    %123 = vector.broadcast %cst_46 : f32 to vector<2x128xf32>
    %124 = arith.mulf %123, %122 : vector<2x128xf32>
    %cst_47 = arith.constant 5.000000e-01 : f32
    %125 = vector.broadcast %cst_47 : f32 to vector<2x128xf32>
    %126 = arith.addf %124, %125 : vector<2x128xf32>
    %127 = vector.extract_strided_slice %126 {offsets = [0, 0], sizes = [2, 32], strides = [1, 1]} : vector<2x128xf32> to vector<2x32xf32>
    %128 = vector.extract_strided_slice %126 {offsets = [0, 32], sizes = [2, 32], strides = [1, 1]} : vector<2x128xf32> to vector<2x32xf32>
    %129 = vector.extract_strided_slice %122 {offsets = [0, 64], sizes = [2, 32], strides = [1, 1]} : vector<2x128xf32> to vector<2x32xf32>
    %130 = vector.extract_strided_slice %126 {offsets = [0, 96], sizes = [2, 32], strides = [1, 1]} : vector<2x128xf32> to vector<2x32xf32>
    %131 = arith.mulf %128, %92 : vector<2x32xf32>
    %132 = arith.mulf %127, %129 : vector<2x32xf32>
    %133 = arith.addf %131, %132 : vector<2x32xf32>
    %134 = math.tanh %133 : vector<2x32xf32>
    %135 = arith.mulf %130, %134 : vector<2x32xf32>
    %c4 = arith.constant 4 : index
    %c0_48 = arith.constant 0 : index
    %136 = vector.load %arg14[%c4, %c0_48] : memref<16x32xf32, #tpu.memory_space<vmem>>, vector<2x32xf32>
    tpu.vector_store %arg14[%c4, %c0_48], %135 {strides = array<i32>} : memref<16x32xf32, #tpu.memory_space<vmem>>, vector<2x32xf32>,
    %137 = vector.extract_strided_slice %12 {offsets = [6, 0], sizes = [2, 128], strides = [1, 1]} : vector<16x128xf32> to vector<2x128xf32>
    %cst_49 = arith.constant dense<0.000000e+00> : vector<2x128xf32>
    %138 = tpu.matmul %114, %13, %cst_49 {dimension_numbers = #tpu.dot_dimension_numbers<[1], [0], [0], [1], [0, 0, 1, 1], [], []>} : vector<2x32xf32>, vector<32x128xf32>, vector<2x128xf32> -> vector<2x128xf32>
    %139 = arith.addf %137, %138 : vector<2x128xf32>
    %cst_50 = arith.constant 5.000000e-01 : f32
    %140 = vector.broadcast %cst_50 : f32 to vector<2x128xf32>
    %141 = arith.mulf %140, %139 : vector<2x128xf32>
    %142 = math.tanh %141 : vector<2x128xf32>
    %cst_51 = arith.constant 5.000000e-01 : f32
    %143 = vector.broadcast %cst_51 : f32 to vector<2x128xf32>
    %144 = arith.mulf %143, %142 : vector<2x128xf32>
    %cst_52 = arith.constant 5.000000e-01 : f32
    %145 = vector.broadcast %cst_52 : f32 to vector<2x128xf32>
    %146 = arith.addf %144, %145 : vector<2x128xf32>
    %147 = vector.extract_strided_slice %146 {offsets = [0, 0], sizes = [2, 32], strides = [1, 1]} : vector<2x128xf32> to vector<2x32xf32>
    %148 = vector.extract_strided_slice %146 {offsets = [0, 32], sizes = [2, 32], strides = [1, 1]} : vector<2x128xf32> to vector<2x32xf32>
    %149 = vector.extract_strided_slice %142 {offsets = [0, 64], sizes = [2, 32], strides = [1, 1]} : vector<2x128xf32> to vector<2x32xf32>
    %150 = vector.extract_strided_slice %146 {offsets = [0, 96], sizes = [2, 32], strides = [1, 1]} : vector<2x128xf32> to vector<2x32xf32>
    %151 = arith.mulf %148, %112 : vector<2x32xf32>
    %152 = arith.mulf %147, %149 : vector<2x32xf32>
    %153 = arith.addf %151, %152 : vector<2x32xf32>
    %154 = math.tanh %153 : vector<2x32xf32>
    %155 = arith.mulf %150, %154 : vector<2x32xf32>
    %cst_53 = arith.constant dense<0.000000e+00> : vector<2x128xf32>
    %156 = tpu.matmul %155, %14, %cst_53 {dimension_numbers = #tpu.dot_dimension_numbers<[1], [0], [0], [1], [0, 0, 1, 1], [], []>} : vector<2x32xf32>, vector<32x128xf32>, vector<2x128xf32> -> vector<2x128xf32>
    %157 = vector.broadcast %16 : vector<1x128xf32> to vector<2x128xf32>
    %158 = arith.addf %156, %157 : vector<2x128xf32>
    %cst_54 = arith.constant dense<0.000000e+00> : vector<2x128xf32>
    %159 = tpu.matmul %135, %15, %cst_54 {dimension_numbers = #tpu.dot_dimension_numbers<[1], [0], [0], [1], [0, 0, 1, 1], [], []>} : vector<2x32xf32>, vector<32x128xf32>, vector<2x128xf32> -> vector<2x128xf32>
    %160 = arith.addf %158, %159 : vector<2x128xf32>
    %cst_55 = arith.constant 5.000000e-01 : f32
    %161 = vector.broadcast %cst_55 : f32 to vector<2x128xf32>
    %162 = arith.mulf %161, %160 : vector<2x128xf32>
    %163 = math.tanh %162 : vector<2x128xf32>
    %cst_56 = arith.constant 5.000000e-01 : f32
    %164 = vector.broadcast %cst_56 : f32 to vector<2x128xf32>
    %165 = arith.mulf %164, %163 : vector<2x128xf32>
    %cst_57 = arith.constant 5.000000e-01 : f32
    %166 = vector.broadcast %cst_57 : f32 to vector<2x128xf32>
    %167 = arith.addf %165, %166 : vector<2x128xf32>
    %168 = vector.extract_strided_slice %167 {offsets = [0, 0], sizes = [2, 32], strides = [1, 1]} : vector<2x128xf32> to vector<2x32xf32>
    %169 = vector.extract_strided_slice %167 {offsets = [0, 32], sizes = [2, 32], strides = [1, 1]} : vector<2x128xf32> to vector<2x32xf32>
    %170 = vector.extract_strided_slice %163 {offsets = [0, 64], sizes = [2, 32], strides = [1, 1]} : vector<2x128xf32> to vector<2x32xf32>
    %171 = vector.extract_strided_slice %167 {offsets = [0, 96], sizes = [2, 32], strides = [1, 1]} : vector<2x128xf32> to vector<2x32xf32>
    %172 = arith.mulf %169, %133 : vector<2x32xf32>
    %173 = arith.mulf %168, %170 : vector<2x32xf32>
    %174 = arith.addf %172, %173 : vector<2x32xf32>
    %175 = math.tanh %174 : vector<2x32xf32>
    %176 = arith.mulf %171, %175 : vector<2x32xf32>
    %c6 = arith.constant 6 : index
    %c0_58 = arith.constant 0 : index
    %177 = vector.load %arg14[%c6, %c0_58] : memref<16x32xf32, #tpu.memory_space<vmem>>, vector<2x32xf32>
    tpu.vector_store %arg14[%c6, %c0_58], %176 {strides = array<i32>} : memref<16x32xf32, #tpu.memory_space<vmem>>, vector<2x32xf32>,
    %178 = vector.extract_strided_slice %12 {offsets = [8, 0], sizes = [2, 128], strides = [1, 1]} : vector<16x128xf32> to vector<2x128xf32>
    %cst_59 = arith.constant dense<0.000000e+00> : vector<2x128xf32>
    %179 = tpu.matmul %155, %13, %cst_59 {dimension_numbers = #tpu.dot_dimension_numbers<[1], [0], [0], [1], [0, 0, 1, 1], [], []>} : vector<2x32xf32>, vector<32x128xf32>, vector<2x128xf32> -> vector<2x128xf32>
    %180 = arith.addf %178, %179 : vector<2x128xf32>
    %cst_60 = arith.constant 5.000000e-01 : f32
    %181 = vector.broadcast %cst_60 : f32 to vector<2x128xf32>
    %182 = arith.mulf %181, %180 : vector<2x128xf32>
    %183 = math.tanh %182 : vector<2x128xf32>
    %cst_61 = arith.constant 5.000000e-01 : f32
    %184 = vector.broadcast %cst_61 : f32 to vector<2x128xf32>
    %185 = arith.mulf %184, %183 : vector<2x128xf32>
    %cst_62 = arith.constant 5.000000e-01 : f32
    %186 = vector.broadcast %cst_62 : f32 to vector<2x128xf32>
    %187 = arith.addf %185, %186 : vector<2x128xf32>
    %188 = vector.extract_strided_slice %187 {offsets = [0, 0], sizes = [2, 32], strides = [1, 1]} : vector<2x128xf32> to vector<2x32xf32>
    %189 = vector.extract_strided_slice %187 {offsets = [0, 32], sizes = [2, 32], strides = [1, 1]} : vector<2x128xf32> to vector<2x32xf32>
    %190 = vector.extract_strided_slice %183 {offsets = [0, 64], sizes = [2, 32], strides = [1, 1]} : vector<2x128xf32> to vector<2x32xf32>
    %191 = vector.extract_strided_slice %187 {offsets = [0, 96], sizes = [2, 32], strides = [1, 1]} : vector<2x128xf32> to vector<2x32xf32>
    %192 = arith.mulf %189, %153 : vector<2x32xf32>
    %193 = arith.mulf %188, %190 : vector<2x32xf32>
    %194 = arith.addf %192, %193 : vector<2x32xf32>
    %195 = math.tanh %194 : vector<2x32xf32>
    %196 = arith.mulf %191, %195 : vector<2x32xf32>
    %cst_63 = arith.constant dense<0.000000e+00> : vector<2x128xf32>
    %197 = tpu.matmul %196, %14, %cst_63 {dimension_numbers = #tpu.dot_dimension_numbers<[1], [0], [0], [1], [0, 0, 1, 1], [], []>} : vector<2x32xf32>, vector<32x128xf32>, vector<2x128xf32> -> vector<2x128xf32>
    %198 = vector.broadcast %16 : vector<1x128xf32> to vector<2x128xf32>
    %199 = arith.addf %197, %198 : vector<2x128xf32>
    %cst_64 = arith.constant dense<0.000000e+00> : vector<2x128xf32>
    %200 = tpu.matmul %176, %15, %cst_64 {dimension_numbers = #tpu.dot_dimension_numbers<[1], [0], [0], [1], [0, 0, 1, 1], [], []>} : vector<2x32xf32>, vector<32x128xf32>, vector<2x128xf32> -> vector<2x128xf32>
    %201 = arith.addf %199, %200 : vector<2x128xf32>
    %cst_65 = arith.constant 5.000000e-01 : f32
    %202 = vector.broadcast %cst_65 : f32 to vector<2x128xf32>
    %203 = arith.mulf %202, %201 : vector<2x128xf32>
    %204 = math.tanh %203 : vector<2x128xf32>
    %cst_66 = arith.constant 5.000000e-01 : f32
    %205 = vector.broadcast %cst_66 : f32 to vector<2x128xf32>
    %206 = arith.mulf %205, %204 : vector<2x128xf32>
    %cst_67 = arith.constant 5.000000e-01 : f32
    %207 = vector.broadcast %cst_67 : f32 to vector<2x128xf32>
    %208 = arith.addf %206, %207 : vector<2x128xf32>
    %209 = vector.extract_strided_slice %208 {offsets = [0, 0], sizes = [2, 32], strides = [1, 1]} : vector<2x128xf32> to vector<2x32xf32>
    %210 = vector.extract_strided_slice %208 {offsets = [0, 32], sizes = [2, 32], strides = [1, 1]} : vector<2x128xf32> to vector<2x32xf32>
    %211 = vector.extract_strided_slice %204 {offsets = [0, 64], sizes = [2, 32], strides = [1, 1]} : vector<2x128xf32> to vector<2x32xf32>
    %212 = vector.extract_strided_slice %208 {offsets = [0, 96], sizes = [2, 32], strides = [1, 1]} : vector<2x128xf32> to vector<2x32xf32>
    %213 = arith.mulf %210, %174 : vector<2x32xf32>
    %214 = arith.mulf %209, %211 : vector<2x32xf32>
    %215 = arith.addf %213, %214 : vector<2x32xf32>
    %216 = math.tanh %215 : vector<2x32xf32>
    %217 = arith.mulf %212, %216 : vector<2x32xf32>
    %c8 = arith.constant 8 : index
    %c0_68 = arith.constant 0 : index
    %218 = vector.load %arg14[%c8, %c0_68] : memref<16x32xf32, #tpu.memory_space<vmem>>, vector<2x32xf32>
    tpu.vector_store %arg14[%c8, %c0_68], %217 {strides = array<i32>} : memref<16x32xf32, #tpu.memory_space<vmem>>, vector<2x32xf32>,
    %219 = vector.extract_strided_slice %12 {offsets = [10, 0], sizes = [2, 128], strides = [1, 1]} : vector<16x128xf32> to vector<2x128xf32>
    %cst_69 = arith.constant dense<0.000000e+00> : vector<2x128xf32>
    %220 = tpu.matmul %196, %13, %cst_69 {dimension_numbers = #tpu.dot_dimension_numbers<[1], [0], [0], [1], [0, 0, 1, 1], [], []>} : vector<2x32xf32>, vector<32x128xf32>, vector<2x128xf32> -> vector<2x128xf32>
    %221 = arith.addf %219, %220 : vector<2x128xf32>
    %cst_70 = arith.constant 5.000000e-01 : f32
    %222 = vector.broadcast %cst_70 : f32 to vector<2x128xf32>
    %223 = arith.mulf %222, %221 : vector<2x128xf32>
    %224 = math.tanh %223 : vector<2x128xf32>
    %cst_71 = arith.constant 5.000000e-01 : f32
    %225 = vector.broadcast %cst_71 : f32 to vector<2x128xf32>
    %226 = arith.mulf %225, %224 : vector<2x128xf32>
    %cst_72 = arith.constant 5.000000e-01 : f32
    %227 = vector.broadcast %cst_72 : f32 to vector<2x128xf32>
    %228 = arith.addf %226, %227 : vector<2x128xf32>
    %229 = vector.extract_strided_slice %228 {offsets = [0, 0], sizes = [2, 32], strides = [1, 1]} : vector<2x128xf32> to vector<2x32xf32>
    %230 = vector.extract_strided_slice %228 {offsets = [0, 32], sizes = [2, 32], strides = [1, 1]} : vector<2x128xf32> to vector<2x32xf32>
    %231 = vector.extract_strided_slice %224 {offsets = [0, 64], sizes = [2, 32], strides = [1, 1]} : vector<2x128xf32> to vector<2x32xf32>
    %232 = vector.extract_strided_slice %228 {offsets = [0, 96], sizes = [2, 32], strides = [1, 1]} : vector<2x128xf32> to vector<2x32xf32>
    %233 = arith.mulf %230, %194 : vector<2x32xf32>
    %234 = arith.mulf %229, %231 : vector<2x32xf32>
    %235 = arith.addf %233, %234 : vector<2x32xf32>
    %236 = math.tanh %235 : vector<2x32xf32>
    %237 = arith.mulf %232, %236 : vector<2x32xf32>
    %cst_73 = arith.constant dense<0.000000e+00> : vector<2x128xf32>
    %238 = tpu.matmul %237, %14, %cst_73 {dimension_numbers = #tpu.dot_dimension_numbers<[1], [0], [0], [1], [0, 0, 1, 1], [], []>} : vector<2x32xf32>, vector<32x128xf32>, vector<2x128xf32> -> vector<2x128xf32>
    %239 = vector.broadcast %16 : vector<1x128xf32> to vector<2x128xf32>
    %240 = arith.addf %238, %239 : vector<2x128xf32>
    %cst_74 = arith.constant dense<0.000000e+00> : vector<2x128xf32>
    %241 = tpu.matmul %217, %15, %cst_74 {dimension_numbers = #tpu.dot_dimension_numbers<[1], [0], [0], [1], [0, 0, 1, 1], [], []>} : vector<2x32xf32>, vector<32x128xf32>, vector<2x128xf32> -> vector<2x128xf32>
    %242 = arith.addf %240, %241 : vector<2x128xf32>
    %cst_75 = arith.constant 5.000000e-01 : f32
    %243 = vector.broadcast %cst_75 : f32 to vector<2x128xf32>
    %244 = arith.mulf %243, %242 : vector<2x128xf32>
    %245 = math.tanh %244 : vector<2x128xf32>
    %cst_76 = arith.constant 5.000000e-01 : f32
    %246 = vector.broadcast %cst_76 : f32 to vector<2x128xf32>
    %247 = arith.mulf %246, %245 : vector<2x128xf32>
    %cst_77 = arith.constant 5.000000e-01 : f32
    %248 = vector.broadcast %cst_77 : f32 to vector<2x128xf32>
    %249 = arith.addf %247, %248 : vector<2x128xf32>
    %250 = vector.extract_strided_slice %249 {offsets = [0, 0], sizes = [2, 32], strides = [1, 1]} : vector<2x128xf32> to vector<2x32xf32>
    %251 = vector.extract_strided_slice %249 {offsets = [0, 32], sizes = [2, 32], strides = [1, 1]} : vector<2x128xf32> to vector<2x32xf32>
    %252 = vector.extract_strided_slice %245 {offsets = [0, 64], sizes = [2, 32], strides = [1, 1]} : vector<2x128xf32> to vector<2x32xf32>
    %253 = vector.extract_strided_slice %249 {offsets = [0, 96], sizes = [2, 32], strides = [1, 1]} : vector<2x128xf32> to vector<2x32xf32>
    %254 = arith.mulf %251, %215 : vector<2x32xf32>
    %255 = arith.mulf %250, %252 : vector<2x32xf32>
    %256 = arith.addf %254, %255 : vector<2x32xf32>
    %257 = math.tanh %256 : vector<2x32xf32>
    %258 = arith.mulf %253, %257 : vector<2x32xf32>
    %c10 = arith.constant 10 : index
    %c0_78 = arith.constant 0 : index
    %259 = vector.load %arg14[%c10, %c0_78] : memref<16x32xf32, #tpu.memory_space<vmem>>, vector<2x32xf32>
    tpu.vector_store %arg14[%c10, %c0_78], %258 {strides = array<i32>} : memref<16x32xf32, #tpu.memory_space<vmem>>, vector<2x32xf32>,
    %260 = vector.extract_strided_slice %12 {offsets = [12, 0], sizes = [2, 128], strides = [1, 1]} : vector<16x128xf32> to vector<2x128xf32>
    %cst_79 = arith.constant dense<0.000000e+00> : vector<2x128xf32>
    %261 = tpu.matmul %237, %13, %cst_79 {dimension_numbers = #tpu.dot_dimension_numbers<[1], [0], [0], [1], [0, 0, 1, 1], [], []>} : vector<2x32xf32>, vector<32x128xf32>, vector<2x128xf32> -> vector<2x128xf32>
    %262 = arith.addf %260, %261 : vector<2x128xf32>
    %cst_80 = arith.constant 5.000000e-01 : f32
    %263 = vector.broadcast %cst_80 : f32 to vector<2x128xf32>
    %264 = arith.mulf %263, %262 : vector<2x128xf32>
    %265 = math.tanh %264 : vector<2x128xf32>
    %cst_81 = arith.constant 5.000000e-01 : f32
    %266 = vector.broadcast %cst_81 : f32 to vector<2x128xf32>
    %267 = arith.mulf %266, %265 : vector<2x128xf32>
    %cst_82 = arith.constant 5.000000e-01 : f32
    %268 = vector.broadcast %cst_82 : f32 to vector<2x128xf32>
    %269 = arith.addf %267, %268 : vector<2x128xf32>
    %270 = vector.extract_strided_slice %269 {offsets = [0, 0], sizes = [2, 32], strides = [1, 1]} : vector<2x128xf32> to vector<2x32xf32>
    %271 = vector.extract_strided_slice %269 {offsets = [0, 32], sizes = [2, 32], strides = [1, 1]} : vector<2x128xf32> to vector<2x32xf32>
    %272 = vector.extract_strided_slice %265 {offsets = [0, 64], sizes = [2, 32], strides = [1, 1]} : vector<2x128xf32> to vector<2x32xf32>
    %273 = vector.extract_strided_slice %269 {offsets = [0, 96], sizes = [2, 32], strides = [1, 1]} : vector<2x128xf32> to vector<2x32xf32>
    %274 = arith.mulf %271, %235 : vector<2x32xf32>
    %275 = arith.mulf %270, %272 : vector<2x32xf32>
    %276 = arith.addf %274, %275 : vector<2x32xf32>
    %277 = math.tanh %276 : vector<2x32xf32>
    %278 = arith.mulf %273, %277 : vector<2x32xf32>
    %cst_83 = arith.constant dense<0.000000e+00> : vector<2x128xf32>
    %279 = tpu.matmul %278, %14, %cst_83 {dimension_numbers = #tpu.dot_dimension_numbers<[1], [0], [0], [1], [0, 0, 1, 1], [], []>} : vector<2x32xf32>, vector<32x128xf32>, vector<2x128xf32> -> vector<2x128xf32>
    %280 = vector.broadcast %16 : vector<1x128xf32> to vector<2x128xf32>
    %281 = arith.addf %279, %280 : vector<2x128xf32>
    %cst_84 = arith.constant dense<0.000000e+00> : vector<2x128xf32>
    %282 = tpu.matmul %258, %15, %cst_84 {dimension_numbers = #tpu.dot_dimension_numbers<[1], [0], [0], [1], [0, 0, 1, 1], [], []>} : vector<2x32xf32>, vector<32x128xf32>, vector<2x128xf32> -> vector<2x128xf32>
    %283 = arith.addf %281, %282 : vector<2x128xf32>
    %cst_85 = arith.constant 5.000000e-01 : f32
    %284 = vector.broadcast %cst_85 : f32 to vector<2x128xf32>
    %285 = arith.mulf %284, %283 : vector<2x128xf32>
    %286 = math.tanh %285 : vector<2x128xf32>
    %cst_86 = arith.constant 5.000000e-01 : f32
    %287 = vector.broadcast %cst_86 : f32 to vector<2x128xf32>
    %288 = arith.mulf %287, %286 : vector<2x128xf32>
    %cst_87 = arith.constant 5.000000e-01 : f32
    %289 = vector.broadcast %cst_87 : f32 to vector<2x128xf32>
    %290 = arith.addf %288, %289 : vector<2x128xf32>
    %291 = vector.extract_strided_slice %290 {offsets = [0, 0], sizes = [2, 32], strides = [1, 1]} : vector<2x128xf32> to vector<2x32xf32>
    %292 = vector.extract_strided_slice %290 {offsets = [0, 32], sizes = [2, 32], strides = [1, 1]} : vector<2x128xf32> to vector<2x32xf32>
    %293 = vector.extract_strided_slice %286 {offsets = [0, 64], sizes = [2, 32], strides = [1, 1]} : vector<2x128xf32> to vector<2x32xf32>
    %294 = vector.extract_strided_slice %290 {offsets = [0, 96], sizes = [2, 32], strides = [1, 1]} : vector<2x128xf32> to vector<2x32xf32>
    %295 = arith.mulf %292, %256 : vector<2x32xf32>
    %296 = arith.mulf %291, %293 : vector<2x32xf32>
    %297 = arith.addf %295, %296 : vector<2x32xf32>
    %298 = math.tanh %297 : vector<2x32xf32>
    %299 = arith.mulf %294, %298 : vector<2x32xf32>
    %c12 = arith.constant 12 : index
    %c0_88 = arith.constant 0 : index
    %300 = vector.load %arg14[%c12, %c0_88] : memref<16x32xf32, #tpu.memory_space<vmem>>, vector<2x32xf32>
    tpu.vector_store %arg14[%c12, %c0_88], %299 {strides = array<i32>} : memref<16x32xf32, #tpu.memory_space<vmem>>, vector<2x32xf32>,
    %301 = vector.extract_strided_slice %12 {offsets = [14, 0], sizes = [2, 128], strides = [1, 1]} : vector<16x128xf32> to vector<2x128xf32>
    %cst_89 = arith.constant dense<0.000000e+00> : vector<2x128xf32>
    %302 = tpu.matmul %278, %13, %cst_89 {dimension_numbers = #tpu.dot_dimension_numbers<[1], [0], [0], [1], [0, 0, 1, 1], [], []>} : vector<2x32xf32>, vector<32x128xf32>, vector<2x128xf32> -> vector<2x128xf32>
    %303 = arith.addf %301, %302 : vector<2x128xf32>
    %cst_90 = arith.constant 5.000000e-01 : f32
    %304 = vector.broadcast %cst_90 : f32 to vector<2x128xf32>
    %305 = arith.mulf %304, %303 : vector<2x128xf32>
    %306 = math.tanh %305 : vector<2x128xf32>
    %cst_91 = arith.constant 5.000000e-01 : f32
    %307 = vector.broadcast %cst_91 : f32 to vector<2x128xf32>
    %308 = arith.mulf %307, %306 : vector<2x128xf32>
    %cst_92 = arith.constant 5.000000e-01 : f32
    %309 = vector.broadcast %cst_92 : f32 to vector<2x128xf32>
    %310 = arith.addf %308, %309 : vector<2x128xf32>
    %311 = vector.extract_strided_slice %310 {offsets = [0, 0], sizes = [2, 32], strides = [1, 1]} : vector<2x128xf32> to vector<2x32xf32>
    %312 = vector.extract_strided_slice %310 {offsets = [0, 32], sizes = [2, 32], strides = [1, 1]} : vector<2x128xf32> to vector<2x32xf32>
    %313 = vector.extract_strided_slice %306 {offsets = [0, 64], sizes = [2, 32], strides = [1, 1]} : vector<2x128xf32> to vector<2x32xf32>
    %314 = vector.extract_strided_slice %310 {offsets = [0, 96], sizes = [2, 32], strides = [1, 1]} : vector<2x128xf32> to vector<2x32xf32>
    %315 = arith.mulf %312, %276 : vector<2x32xf32>
    %316 = arith.mulf %311, %313 : vector<2x32xf32>
    %317 = arith.addf %315, %316 : vector<2x32xf32>
    %318 = math.tanh %317 : vector<2x32xf32>
    %319 = arith.mulf %314, %318 : vector<2x32xf32>
    %cst_93 = arith.constant dense<0.000000e+00> : vector<2x128xf32>
    %320 = tpu.matmul %319, %14, %cst_93 {dimension_numbers = #tpu.dot_dimension_numbers<[1], [0], [0], [1], [0, 0, 1, 1], [], []>} : vector<2x32xf32>, vector<32x128xf32>, vector<2x128xf32> -> vector<2x128xf32>
    %321 = vector.broadcast %16 : vector<1x128xf32> to vector<2x128xf32>
    %322 = arith.addf %320, %321 : vector<2x128xf32>
    %cst_94 = arith.constant dense<0.000000e+00> : vector<2x128xf32>
    %323 = tpu.matmul %299, %15, %cst_94 {dimension_numbers = #tpu.dot_dimension_numbers<[1], [0], [0], [1], [0, 0, 1, 1], [], []>} : vector<2x32xf32>, vector<32x128xf32>, vector<2x128xf32> -> vector<2x128xf32>
    %324 = arith.addf %322, %323 : vector<2x128xf32>
    %cst_95 = arith.constant 5.000000e-01 : f32
    %325 = vector.broadcast %cst_95 : f32 to vector<2x128xf32>
    %326 = arith.mulf %325, %324 : vector<2x128xf32>
    %327 = math.tanh %326 : vector<2x128xf32>
    %cst_96 = arith.constant 5.000000e-01 : f32
    %328 = vector.broadcast %cst_96 : f32 to vector<2x128xf32>
    %329 = arith.mulf %328, %327 : vector<2x128xf32>
    %cst_97 = arith.constant 5.000000e-01 : f32
    %330 = vector.broadcast %cst_97 : f32 to vector<2x128xf32>
    %331 = arith.addf %329, %330 : vector<2x128xf32>
    %332 = vector.extract_strided_slice %331 {offsets = [0, 0], sizes = [2, 32], strides = [1, 1]} : vector<2x128xf32> to vector<2x32xf32>
    %333 = vector.extract_strided_slice %331 {offsets = [0, 32], sizes = [2, 32], strides = [1, 1]} : vector<2x128xf32> to vector<2x32xf32>
    %334 = vector.extract_strided_slice %327 {offsets = [0, 64], sizes = [2, 32], strides = [1, 1]} : vector<2x128xf32> to vector<2x32xf32>
    %335 = vector.extract_strided_slice %331 {offsets = [0, 96], sizes = [2, 32], strides = [1, 1]} : vector<2x128xf32> to vector<2x32xf32>
    %336 = arith.mulf %333, %297 : vector<2x32xf32>
    %337 = arith.mulf %332, %334 : vector<2x32xf32>
    %338 = arith.addf %336, %337 : vector<2x32xf32>
    %339 = math.tanh %338 : vector<2x32xf32>
    %340 = arith.mulf %335, %339 : vector<2x32xf32>
    %c14 = arith.constant 14 : index
    %c0_98 = arith.constant 0 : index
    %341 = vector.load %arg14[%c14, %c0_98] : memref<16x32xf32, #tpu.memory_space<vmem>>, vector<2x32xf32>
    tpu.vector_store %arg14[%c14, %c0_98], %340 {strides = array<i32>} : memref<16x32xf32, #tpu.memory_space<vmem>>, vector<2x32xf32>,
    %c0_99 = arith.constant 0 : index
    %c0_100 = arith.constant 0 : index
    %342 = vector.load %arg12[%c0_99, %c0_100] : memref<4x32xf32, #tpu.memory_space<vmem>>, vector<2x32xf32>
    tpu.vector_store %arg12[%c0_99, %c0_100], %319 {strides = array<i32>} : memref<4x32xf32, #tpu.memory_space<vmem>>, vector<2x32xf32>,
    %c2_101 = arith.constant 2 : index
    %c0_102 = arith.constant 0 : index
    %343 = vector.load %arg12[%c2_101, %c0_102] : memref<4x32xf32, #tpu.memory_space<vmem>>, vector<2x32xf32>
    tpu.vector_store %arg12[%c2_101, %c0_102], %340 {strides = array<i32>} : memref<4x32xf32, #tpu.memory_space<vmem>>, vector<2x32xf32>,
    %c0_103 = arith.constant 0 : index
    %c0_104 = arith.constant 0 : index
    %344 = vector.load %arg13[%c0_103, %c0_104] : memref<4x32xf32, #tpu.memory_space<vmem>>, vector<2x32xf32>
    tpu.vector_store %arg13[%c0_103, %c0_104], %317 {strides = array<i32>} : memref<4x32xf32, #tpu.memory_space<vmem>>, vector<2x32xf32>,
    %c2_105 = arith.constant 2 : index
    %c0_106 = arith.constant 0 : index
    %345 = vector.load %arg13[%c2_105, %c0_106] : memref<4x32xf32, #tpu.memory_space<vmem>>, vector<2x32xf32>
    tpu.vector_store %arg13[%c2_105, %c0_106], %338 {strides = array<i32>} : memref<4x32xf32, #tpu.memory_space<vmem>>, vector<2x32xf32>,
    %c0_107 = arith.constant 0 : index
    %c0_108 = arith.constant 0 : index
    %346 = vector.load %arg14[%c0_107, %c0_108] : memref<16x32xf32, #tpu.memory_space<vmem>>, vector<16x32xf32>
    %c0_109 = arith.constant 0 : index
    %c0_110 = arith.constant 0 : index
    %347 = vector.load %arg9[%c0_109, %c0_110] : memref<32x128xf32, #tpu.memory_space<vmem>>, vector<32x128xf32>
    %cst_111 = arith.constant dense<0.000000e+00> : vector<16x128xf32>
    %348 = tpu.matmul %346, %347, %cst_111 {dimension_numbers = #tpu.dot_dimension_numbers<[1], [0], [0], [1], [0, 0, 1, 1], [], []>} : vector<16x32xf32>, vector<32x128xf32>, vector<16x128xf32> -> vector<16x128xf32>
    %c0_112 = arith.constant 0 : index
    %c0_113 = arith.constant 0 : index
    %349 = vector.load %arg10[%c0_112, %c0_113] : memref<1x128xf32, #tpu.memory_space<vmem>>, vector<1x128xf32>
    %350 = vector.broadcast %349 : vector<1x128xf32> to vector<16x128xf32>
    %351 = arith.addf %348, %350 : vector<16x128xf32>
    %352 = arith.negf %351 : vector<16x128xf32>
    %353 = math.exp %352 : vector<16x128xf32>
    %cst_114 = arith.constant 1.000000e+00 : f32
    %354 = vector.broadcast %cst_114 : f32 to vector<16x128xf32>
    %355 = arith.addf %354, %353 : vector<16x128xf32>
    %356 = arith.divf %354, %355 : vector<16x128xf32>
    %c0_115 = arith.constant 0 : index
    %c0_116 = arith.constant 0 : index
    %357 = vector.load %arg11[%c0_115, %c0_116] : memref<16x128xf32, #tpu.memory_space<vmem>>, vector<16x128xf32>
    tpu.vector_store %arg11[%c0_115, %c0_116], %356 {strides = array<i32>} : memref<16x128xf32, #tpu.memory_space<vmem>>, vector<16x128xf32>,
    return
  }
}

</mosaic_0001>

<llo_original>
// kernel: tpu_custom_call.1
$region0: #{tpu_custom_call.1}
  #allocation0 [shape = 'u32[]', space=smem, size = 0x4, offset = 0x4, fixed_abs, tag = 'smem constant byte address 0x4 - core index']
  #allocation1 [shape = 'u32[144,128]{1,0:T(1,128)}', space=vmem, size = 0x12000, scoped, tag = 'internal scratch']
  #allocation2 [shape = 'f32[16,32]{1,0:T(8,128)}', space=vmem, size = 0x2000, scoped, tag = 'scratch operand']
  %s0 = inlined_call_operand.hbm [shape: f32[16,16], index: 0, kind: input, shape index: {}]
  %s1 = inlined_call_operand.hbm [shape: f32[16,32], index: 1, kind: input, shape index: {}]
  %s2 = inlined_call_operand.vmem [shape: f32[1,32], index: 2, kind: input, shape index: {}]
  %s3 = inlined_call_operand.hbm [shape: f32[32,128], index: 3, kind: input, shape index: {}]
  %s4 = inlined_call_operand.hbm [shape: f32[32,128], index: 4, kind: input, shape index: {}]
  %s5 = inlined_call_operand.vmem [shape: f32[1,128], index: 5, kind: input, shape index: {}]
  %s6 = inlined_call_operand.hbm [shape: f32[32,128], index: 6, kind: input, shape index: {}]
  %s7 = inlined_call_operand.hbm [shape: f32[32,128], index: 7, kind: input, shape index: {}]
  %s8 = inlined_call_operand.hbm [shape: f32[1,128], index: 8, kind: input, shape index: {}]
  %s9 = inlined_call_operand.vmem [shape: f32[32,128], index: 9, kind: input, shape index: {}]
  %s10 = inlined_call_operand.vmem [shape: f32[1,128], index: 10, kind: input, shape index: {}]
  %s11 = inlined_call_operand.hbm [shape: f32[16,128], index: 11, kind: output, shape index: {0}]
  %s12 = inlined_call_operand.hbm [shape: f32[4,32], index: 12, kind: output, shape index: {1}]
  %s13 = inlined_call_operand.hbm [shape: f32[4,32], index: 13, kind: output, shape index: {2}]
  %14 = xla_tuple %s11, %s12, %s13
  %s15 = sld [smem:[#allocation0]]
  $region98: #{tpu_custom_call.1} parent=0
    _
  %s17 = ssub.s32 1, %s15
  %s18 = scalar_select 0, %s17, %s15
  $region1: #{tpu_custom_call.1} parent=0
    #allocation3 [shape = 'u8[8192]{0}', space=vmem, size = 0x2000, scoped, tag = 'input window, operand 0, single buffered']
    #allocation4 [shape = 's32[1]{0}', space=sflag, size = 0x4, scoped, tag = 'scoped memory for tpu_custom_call.1']
    #allocation5 [shape = 's32[1]{0}', space=sflag, size = 0x4, scoped, tag = 'scoped memory for tpu_custom_call.1']
    #allocation6 [shape = 'u8[8192]{0}', space=vmem, size = 0x2000, scoped, tag = 'input window, operand 1, single buffered']
    #allocation7 [shape = 's32[1]{0}', space=sflag, size = 0x4, scoped, tag = 'scoped memory for tpu_custom_call.1']
    #allocation8 [shape = 'u8[16384]{0}', space=vmem, size = 0x4000, scoped, tag = 'input window, operand 3, single buffered']
    #allocation9 [shape = 'u8[16384]{0}', space=vmem, size = 0x4000, scoped, tag = 'input window, operand 4, single buffered']
    #allocation10 [shape = 's32[1]{0}', space=sflag, size = 0x4, scoped, tag = 'scoped memory for tpu_custom_call.1']
    #allocation11 [shape = 'u8[16384]{0}', space=vmem, size = 0x4000, scoped, tag = 'input window, operand 6, single buffered']
    #allocation12 [shape = 'u8[16384]{0}', space=vmem, size = 0x4000, scoped, tag = 'input window, operand 7, single buffered']
    #allocation13 [shape = 's32[1]{0}', space=sflag, size = 0x4, scoped, tag = 'scoped memory for tpu_custom_call.1']
    #allocation14 [shape = 'u8[512]{0}', space=vmem, size = 0x400, scoped, tag = 'input window, operand 8, single buffered']
    #allocation15 [shape = 'u8[8192]{0}', space=vmem, size = 0x2000, scoped, tag = 'output window, operand 0, single buffered']
    #allocation16 [shape = 'u8[2048]{0}', space=vmem, size = 0x800, scoped, tag = 'output window, operand 1, single buffered']
    #allocation17 [shape = 's32[1]{0}', space=sflag, size = 0x4, scoped, tag = 'scoped memory for tpu_custom_call.1']
    #allocation18 [shape = 'u8[2048]{0}', space=vmem, size = 0x800, scoped, tag = 'output window, operand 2, single buffered']
    %19 = vsyncpa [#allocation4], 0
    %20 = vsyncpa [#allocation7], 0
    %21 = vsyncpa [#allocation10], 0
    %22 = vsyncpa [#allocation13], 0
    %23 = vsyncpa [#allocation5], 0
    %24 = vsyncpa [#allocation17], 0
    // Predicated region
    $region2: #{tpu_custom_call.1} parent=1 // pred_check
      _
    $region3: #{tpu_custom_call.1} parent=1 // pred_check_branch
      %26 = sbr.rel (0) target = $region5
    $region4: #{tpu_custom_call.1} parent=1 // pred_region
      %s28 = ssub.s32 256, 256
      %29 = vsyncadd [#allocation4], %s28
      %s30 = sshll.u32 [#allocation3], 4
      %s31 = int_to_ptr.vmem [resolvable:$true] %s30
      %36 = dma.hbm_to_vmem [thread:$0]  %s0, 256, %s31, [#allocation4], 128, 128, 8
    $region5: #{tpu_custom_call.1} parent=1 // pred_fallthru
      _
    // Predicated region
    $region6: #{tpu_custom_call.1} parent=1 // pred_check
      _
    $region7: #{tpu_custom_call.1} parent=1 // pred_check_branch
      %38 = sbr.rel (0) target = $region9
    $region8: #{tpu_custom_call.1} parent=1 // pred_region
      %s40 = ssub.s32 256, 256
      %41 = vsyncadd [#allocation7], %s40
      %s42 = sshll.u32 [#allocation6], 4
      %s43 = int_to_ptr.vmem [resolvable:$true] %s42
      %48 = dma.hbm_to_vmem [thread:$0]  %s1, 256, %s43, [#allocation7], 128, 128, 8
    $region9: #{tpu_custom_call.1} parent=1 // pred_fallthru
      _
    // Predicated region
    $region10: #{tpu_custom_call.1} parent=1 // pred_check
      _
    $region11: #{tpu_custom_call.1} parent=1 // pred_check_branch
      %50 = sbr.rel (0) target = $region13
    $region12: #{tpu_custom_call.1} parent=1 // pred_region
      _
    $region13: #{tpu_custom_call.1} parent=1 // pred_fallthru
      _
    // Predicated region
    $region14: #{tpu_custom_call.1} parent=1 // pred_check
      _
    $region15: #{tpu_custom_call.1} parent=1 // pred_check_branch
      %52 = sbr.rel (0) target = $region17
    $region16: #{tpu_custom_call.1} parent=1 // pred_region
      %s54 = ssub.s32 512, 512
      %55 = vsyncadd [#allocation7], %s54
      %s56 = sshll.u32 [#allocation8], 4
      %s57 = int_to_ptr.vmem [resolvable:$true] %s56
      %62 = dma.hbm_to_vmem [thread:$0]  %s3, 512, %s57, [#allocation7], 128, 128, 8
    $region17: #{tpu_custom_call.1} parent=1 // pred_fallthru
      _
    // Predicated region
    $region18: #{tpu_custom_call.1} parent=1 // pred_check
      _
    $region19: #{tpu_custom_call.1} parent=1 // pred_check_branch
      %64 = sbr.rel (0) target = $region21
    $region20: #{tpu_custom_call.1} parent=1 // pred_region
      %s66 = ssub.s32 512, 512
      %67 = vsyncadd [#allocation10], %s66
      %s68 = sshll.u32 [#allocation9], 4
      %s69 = int_to_ptr.vmem [resolvable:$true] %s68
      %74 = dma.hbm_to_vmem [thread:$0]  %s4, 512, %s69, [#allocation10], 128, 128, 8
    $region21: #{tpu_custom_call.1} parent=1 // pred_fallthru
      _
    // Predicated region
    $region22: #{tpu_custom_call.1} parent=1 // pred_check
      _
    $region23: #{tpu_custom_call.1} parent=1 // pred_check_branch
      %76 = sbr.rel (0) target = $region25
    $region24: #{tpu_custom_call.1} parent=1 // pred_region
      _
    $region25: #{tpu_custom_call.1} parent=1 // pred_fallthru
      _
    // Predicated region
    $region26: #{tpu_custom_call.1} parent=1 // pred_check
      _
    $region27: #{tpu_custom_call.1} parent=1 // pred_check_branch
      %78 = sbr.rel (0) target = $region29
    $region28: #{tpu_custom_call.1} parent=1 // pred_region
      %s80 = ssub.s32 512, 512
      %81 = vsyncadd [#allocation10], %s80
      %s82 = sshll.u32 [#allocation11], 4
      %s83 = int_to_ptr.vmem [resolvable:$true] %s82
      %88 = dma.hbm_to_vmem [thread:$0]  %s6, 512, %s83, [#allocation10], 128, 128, 8
    $region29: #{tpu_custom_call.1} parent=1 // pred_fallthru
      _
    // Predicated region
    $region30: #{tpu_custom_call.1} parent=1 // pred_check
      _
    $region31: #{tpu_custom_call.1} parent=1 // pred_check_branch
      %90 = sbr.rel (0) target = $region33
    $region32: #{tpu_custom_call.1} parent=1 // pred_region
      %s92 = ssub.s32 512, 512
      %93 = vsyncadd [#allocation13], %s92
      %s94 = sshll.u32 [#allocation12], 4
      %s95 = int_to_ptr.vmem [resolvable:$true] %s94
      %100 = dma.hbm_to_vmem [thread:$0]  %s7, 512, %s95, [#allocation13], 128, 128, 8
    $region33: #{tpu_custom_call.1} parent=1 // pred_fallthru
      _
    // Predicated region
    $region34: #{tpu_custom_call.1} parent=1 // pred_check
      _
    $region35: #{tpu_custom_call.1} parent=1 // pred_check_branch
      %102 = sbr.rel (0) target = $region37
    $region36: #{tpu_custom_call.1} parent=1 // pred_region
      %s104 = ssub.s32 16, 16
      %105 = vsyncadd [#allocation13], %s104
      %s107 = sshll.u32 [#allocation14], 4
      %s108 = int_to_ptr.vmem [resolvable:$true] %s107
      %110 = dma.hbm_to_vmem [thread:$0]  %s8, 16, %s108, [#allocation13]
    $region37: #{tpu_custom_call.1} parent=1 // pred_fallthru
      _
    // Predicated region
    $region38: #{tpu_custom_call.1} parent=1 // pred_check
      _
    $region39: #{tpu_custom_call.1} parent=1 // pred_check_branch
      %112 = sbr.rel (0) target = $region41
    $region40: #{tpu_custom_call.1} parent=1 // pred_region
      _
    $region41: #{tpu_custom_call.1} parent=1 // pred_fallthru
      _
    // Predicated region
    $region42: #{tpu_custom_call.1} parent=1 // pred_check
      _
    $region43: #{tpu_custom_call.1} parent=1 // pred_check_branch
      %114 = sbr.rel (0) target = $region45
    $region44: #{tpu_custom_call.1} parent=1 // pred_region
      _
    $region45: #{tpu_custom_call.1} parent=1 // pred_fallthru
      _
    // Predicated region
    $region46: #{tpu_custom_call.1} parent=1 // pred_check
      _
    $region47: #{tpu_custom_call.1} parent=1 // pred_check_branch
      %116 = sbr.rel (0) target = $region49
    $region48: #{tpu_custom_call.1} parent=1 // pred_region
      %117 = dma.done [#allocation4], 256
    $region49: #{tpu_custom_call.1} parent=1 // pred_fallthru
      _
    // Predicated region
    $region50: #{tpu_custom_call.1} parent=1 // pred_check
      _
    $region51: #{tpu_custom_call.1} parent=1 // pred_check_branch
      %119 = sbr.rel (0) target = $region53
    $region52: #{tpu_custom_call.1} parent=1 // pred_region
      %120 = dma.done [#allocation7], 256
    $region53: #{tpu_custom_call.1} parent=1 // pred_fallthru
      _
    // Predicated region
    $region54: #{tpu_custom_call.1} parent=1 // pred_check
      _
    $region55: #{tpu_custom_call.1} parent=1 // pred_check_branch
      %122 = sbr.rel (0) target = $region57
    $region56: #{tpu_custom_call.1} parent=1 // pred_region
      %123 = dma.done [#allocation7], 512
    $region57: #{tpu_custom_call.1} parent=1 // pred_fallthru
      _
    // Predicated region
    $region58: #{tpu_custom_call.1} parent=1 // pred_check
      _
    $region59: #{tpu_custom_call.1} parent=1 // pred_check_branch
      %125 = sbr.rel (0) target = $region61
    $region60: #{tpu_custom_call.1} parent=1 // pred_region
      %126 = dma.done [#allocation10], 512
    $region61: #{tpu_custom_call.1} parent=1 // pred_fallthru
      _
    // Predicated region
    $region62: #{tpu_custom_call.1} parent=1 // pred_check
      _
    $region63: #{tpu_custom_call.1} parent=1 // pred_check_branch
      %128 = sbr.rel (0) target = $region65
    $region64: #{tpu_custom_call.1} parent=1 // pred_region
      %129 = dma.done [#allocation10], 512
    $region65: #{tpu_custom_call.1} parent=1 // pred_fallthru
      _
    // Predicated region
    $region66: #{tpu_custom_call.1} parent=1 // pred_check
      _
    $region67: #{tpu_custom_call.1} parent=1 // pred_check_branch
      %131 = sbr.rel (0) target = $region69
    $region68: #{tpu_custom_call.1} parent=1 // pred_region
      %132 = dma.done [#allocation13], 512
    $region69: #{tpu_custom_call.1} parent=1 // pred_fallthru
      _
    // Predicated region
    $region70: #{tpu_custom_call.1} parent=1 // pred_check
      _
    $region71: #{tpu_custom_call.1} parent=1 // pred_check_branch
      %134 = sbr.rel (0) target = $region73
    $region72: #{tpu_custom_call.1} parent=1 // pred_region
      %135 = dma.done [#allocation13], 16
    $region73: #{tpu_custom_call.1} parent=1 // pred_fallthru
      _
    %v136 = vld [vmem:[#allocation3] sm:$0xff]
    %v137 = vld [vmem:[#allocation3 + $0x8] sm:$0xff]
    %v138 = vld [vmem:[#allocation6] sm:$0xff]
    %v139 = vld [vmem:[#allocation6 + $0x8] sm:$0xff]
    %v140 = vld [vmem:[%s2] sm:$0x1]
    %v142 = vlaneseq
    %v143 = vshrl.u32 %v142, 7
    %v144 = vsub.s32 0, %v143
    %v145 = vrot.slane %v140, %v144
    %vm147 = vcmask 130048
    %v149 = vsel %vm147, %v136, 0
    %v152 = vsel %vm147, %v137, 0
    %154 = vmatprep.subr.mxu0 0.0
    %155 = vmatpush1.msra.mxu0 %v138
    %156 = vmatprep.subr.mxu0 0.0
    %157 = vmatpush1.msra.mxu0 %v139
    %158 = vmatprep.subr.mxu0 0.0
    %159 = vmatpush1.msra.mxu0 0.0
    %160 = vmatprep.subr.mxu0 0.0
    %161 = vmatpush1.msra.mxu0 0.0
    %162 = vmatprep.subr.mxu0 0.0
    %163 = vmatpush1.msra.mxu0 0.0
    %164 = vmatprep.subr.mxu0 0.0
    %165 = vmatpush1.msra.mxu0 0.0
    %166 = vmatprep.subr.mxu0 0.0
    %167 = vmatpush1.msra.mxu0 0.0
    %168 = vmatprep.subr.mxu0 0.0
    %169 = vmatpush1.msra.mxu0 0.0
    %170 = vmatprep.subr.mxu0 0.0
    %171 = vmatpush1.msra.mxu0 0.0
    %172 = vmatprep.subr.mxu0 0.0
    %173 = vmatpush1.msra.mxu0 0.0
    %174 = vmatprep.subr.mxu0 0.0
    %175 = vmatpush1.msra.mxu0 0.0
    %176 = vmatprep.subr.mxu0 0.0
    %177 = vmatpush1.msra.mxu0 0.0
    %178 = vmatprep.subr.mxu0 0.0
    %179 = vmatpush1.msra.mxu0 0.0
    %180 = vmatprep.subr.mxu0 0.0
    %181 = vmatpush1.msra.mxu0 0.0
    %182 = vmatprep.subr.mxu0 0.0
    %183 = vmatpush1.msra.mxu0 0.0
    %184 = vmatprep.subr.mxu0 0.0
    %185 = vmatpush1.msra.mxu0 0.0
    %186 = vmatprep.subr.mxu0 0.0
    %187 = vmatpush1.msra.mxu0 0.0
    %188 = vmatprep.subr.mxu0 0.0
    %189 = vmatpush1.msra.mxu0 0.0
    %190 = vmatprep.subr.mxu0 0.0
    %191 = vmatpush1.msra.mxu0 0.0
    %192 = vmatprep.subr.mxu0 0.0
    %193 = vmatpush1.msra.mxu0 0.0
    %194 = vmatprep.subr.mxu0 0.0
    %195 = vmatpush1.msra.mxu0 0.0
    %196 = vmatprep.subr.mxu0 0.0
    %197 = vmatpush1.msra.mxu0 0.0
    %198 = vmatprep.subr.mxu0 0.0
    %199 = vmatpush1.msra.mxu0 0.0
    %200 = vmatprep.subr.mxu0 0.0
    %201 = vmatpush1.msra.mxu0 0.0
    %202 = vmatprep.subr.mxu0 0.0
    %203 = vmatpush1.msra.mxu0 0.0
    %204 = vmatprep.subr.mxu0 0.0
    %205 = vmatpush1.msra.mxu0 0.0
    %206 = vmatprep.subr.mxu0 0.0
    %207 = vmatpush1.msra.mxu0 0.0
    %208 = vmatprep.subr.mxu0 0.0
    %209 = vmatpush1.msra.mxu0 0.0
    %210 = vmatprep.subr.mxu0 0.0
    %211 = vmatpush1.msra.mxu0 0.0
    %212 = vmatprep.subr.mxu0 0.0
    %213 = vmatpush1.msra.mxu0 0.0
    %214 = vmatprep.subr.mxu0 0.0
    %215 = vmatpush1.msra.mxu0 0.0
    %216 = vmatprep.subr.mxu0 0.0
    %217 = vmatpush1.msra.mxu0 0.0
    %218 = vmatprep.mubr.f32.mxu0 0.0
    %219 = vmatmul.mubr.f32.gmra.mrb[0].mxu0 %v149
    %v220 = vpop.f32.mrb[0].mxu0
    %v221 = vadd.f32 %v145, %v220
    %v222 = vpop.f32.mrb[0].mxu0
    %223 = vmatprep.mubr.f32.mxu0 0.0
    %224 = vmatmul.mubr.f32.gmra.mrb[0].mxu0 %v152
    %v225 = vpop.f32.mrb[0].mxu0
    %v226 = vadd.f32 %v145, %v225
    %v227 = vpop.f32.mrb[0].mxu0
    %228 = vdwg.mxu0
    %v229 = vmax.f32 %v221, 0.0
    %v230 = vmax.f32 %v226, 0.0
    %v231 = vld [vmem:[#allocation8] sm:$0xff]
    %v232 = vld [vmem:[#allocation8 + $0x8] sm:$0xff]
    %v233 = vld [vmem:[#allocation8 + $0x10] sm:$0xff]
    %v234 = vld [vmem:[#allocation8 + $0x18] sm:$0xff]
    %v235 = vld [vmem:[%s5] sm:$0x1]
    %v237 = vlaneseq
    %v238 = vshrl.u32 %v237, 7
    %v239 = vsub.s32 0, %v238
    %v240 = vrot.slane %v235, %v239
    %vm242 = vcmask 261120
    %v244 = vsel %vm242, %v229, 0
    %v247 = vsel %vm242, %v230, 0
    %249 = vmatprep.subr.mxu0 0.0
    %250 = vmatpush1.msra.mxu0 %v231
    %251 = vmatprep.subr.mxu0 0.0
    %252 = vmatpush1.msra.mxu0 %v232
    %253 = vmatprep.subr.mxu0 0.0
    %254 = vmatpush1.msra.mxu0 %v233
    %255 = vmatprep.subr.mxu0 0.0
    %256 = vmatpush1.msra.mxu0 %v234
    %257 = vmatprep.subr.mxu0 0.0
    %258 = vmatpush1.msra.mxu0 0.0
    %259 = vmatprep.subr.mxu0 0.0
    %260 = vmatpush1.msra.mxu0 0.0
    %261 = vmatprep.subr.mxu0 0.0
    %262 = vmatpush1.msra.mxu0 0.0
    %263 = vmatprep.subr.mxu0 0.0
    %264 = vmatpush1.msra.mxu0 0.0
    %265 = vmatprep.subr.mxu0 0.0
    %266 = vmatpush1.msra.mxu0 0.0
    %267 = vmatprep.subr.mxu0 0.0
    %268 = vmatpush1.msra.mxu0 0.0
    %269 = vmatprep.subr.mxu0 0.0
    %270 = vmatpush1.msra.mxu0 0.0
    %271 = vmatprep.subr.mxu0 0.0
    %272 = vmatpush1.msra.mxu0 0.0
    %273 = vmatprep.subr.mxu0 0.0
    %274 = vmatpush1.msra.mxu0 0.0
    %275 = vmatprep.subr.mxu0 0.0
    %276 = vmatpush1.msra.mxu0 0.0
    %277 = vmatprep.subr.mxu0 0.0
    %278 = vmatpush1.msra.mxu0 0.0
    %279 = vmatprep.subr.mxu0 0.0
    %280 = vmatpush1.msra.mxu0 0.0
    %281 = vmatprep.subr.mxu0 0.0
    %282 = vmatpush1.msra.mxu0 0.0
    %283 = vmatprep.subr.mxu0 0.0
    %284 = vmatpush1.msra.mxu0 0.0
    %285 = vmatprep.subr.mxu0 0.0
    %286 = vmatpush1.msra.mxu0 0.0
    %287 = vmatprep.subr.mxu0 0.0
    %288 = vmatpush1.msra.mxu0 0.0
    %289 = vmatprep.subr.mxu0 0.0
    %290 = vmatpush1.msra.mxu0 0.0
    %291 = vmatprep.subr.mxu0 0.0
    %292 = vmatpush1.msra.mxu0 0.0
    %293 = vmatprep.subr.mxu0 0.0
    %294 = vmatpush1.msra.mxu0 0.0
    %295 = vmatprep.subr.mxu0 0.0
    %296 = vmatpush1.msra.mxu0 0.0
    %297 = vmatprep.subr.mxu0 0.0
    %298 = vmatpush1.msra.mxu0 0.0
    %299 = vmatprep.subr.mxu0 0.0
    %300 = vmatpush1.msra.mxu0 0.0
    %301 = vmatprep.subr.mxu0 0.0
    %302 = vmatpush1.msra.mxu0 0.0
    %303 = vmatprep.subr.mxu0 0.0
    %304 = vmatpush1.msra.mxu0 0.0
    %305 = vmatprep.subr.mxu0 0.0
    %306 = vmatpush1.msra.mxu0 0.0
    %307 = vmatprep.subr.mxu0 0.0
    %308 = vmatpush1.msra.mxu0 0.0
    %309 = vmatprep.subr.mxu0 0.0
    %310 = vmatpush1.msra.mxu0 0.0
    %311 = vmatprep.subr.mxu0 0.0
    %312 = vmatpush1.msra.mxu0 0.0
    %313 = vmatprep.mubr.f32.mxu0 0.0
    %314 = vmatmul.mubr.f32.gmra.mrb[0].mxu0 %v244
    %v315 = vpop.f32.mrb[0].mxu0
    %v316 = vadd.f32 %v240, %v315
    %v317 = vpop.f32.mrb[0].mxu0
    %318 = vmatprep.mubr.f32.mxu0 0.0
    %319 = vmatmul.mubr.f32.gmra.mrb[0].mxu0 %v247
    %v320 = vpop.f32.mrb[0].mxu0
    %v321 = vadd.f32 %v240, %v320
    %v322 = vpop.f32.mrb[0].mxu0
    %323 = vdwg.mxu0
    %v324 = vld [vmem:[#allocation9] sm:$0xff]
    %v325 = vld [vmem:[#allocation9 + $0x8] sm:$0xff]
    %v326 = vld [vmem:[#allocation9 + $0x10] sm:$0xff]
    %v327 = vld [vmem:[#allocation9 + $0x18] sm:$0xff]
    %v328 = vld [vmem:[#allocation11] sm:$0xff]
    %v329 = vld [vmem:[#allocation11 + $0x8] sm:$0xff]
    %v330 = vld [vmem:[#allocation11 + $0x10] sm:$0xff]
    %v331 = vld [vmem:[#allocation11 + $0x18] sm:$0xff]
    %v332 = vld [vmem:[#allocation12] sm:$0xff]
    %v333 = vld [vmem:[#allocation12 + $0x8] sm:$0xff]
    %v334 = vld [vmem:[#allocation12 + $0x10] sm:$0xff]
    %v335 = vld [vmem:[#allocation12 + $0x18] sm:$0xff]
    %v336 = vld [vmem:[#allocation14] sm:$0x1]
    %v337 = vmul.f32 %v316, 0.5
    %v338 = vtanh.pop %v337
    %v339 = vmul.f32 %v338, 0.5
    %v340 = vadd.f32 %v339, 0.5
    %v341 = vmul.f32 %v340, 0.0
    %343 = vrot.lane.b32.xlu0 %v338, 64
    %v344 = vpop.permute.xlu0 %343
    %v346 = vmul.f32 %v340, %v344
    %348 = vrot.lane.b32.xlu0 %v346, 32
    %v349 = vpop.permute.xlu0 %348
    %v351 = vadd.f32 %v341, %v349
    %v352 = vtanh.pop %v351
    %354 = vrot.lane.b32.xlu0 %v352, 64
    %v355 = vpop.permute.xlu0 %354
    %v357 = vmul.f32 %v340, %v355
    %v359 = vlaneseq
    %v360 = vshrl.u32 %v359, 7
    %v361 = vsub.s32 0, %v360
    %v362 = vrot.slane %v336, %v361
    %365 = vrot.lane.b32.xlu0 %v357, 32
    %v366 = vpop.permute.xlu0 %365
    %v367 = vsel %vm242, %v366, 0
    %369 = vmatprep.subr.mxu0 0.0
    %370 = vmatpush1.msra.mxu0 %v328
    %371 = vmatprep.subr.mxu0 0.0
    %372 = vmatpush1.msra.mxu0 %v329
    %373 = vmatprep.subr.mxu0 0.0
    %374 = vmatpush1.msra.mxu0 %v330
    %375 = vmatprep.subr.mxu0 0.0
    %376 = vmatpush1.msra.mxu0 %v331
    %377 = vmatprep.subr.mxu0 0.0
    %378 = vmatpush1.msra.mxu0 0.0
    %379 = vmatprep.subr.mxu0 0.0
    %380 = vmatpush1.msra.mxu0 0.0
    %381 = vmatprep.subr.mxu0 0.0
    %382 = vmatpush1.msra.mxu0 0.0
    %383 = vmatprep.subr.mxu0 0.0
    %384 = vmatpush1.msra.mxu0 0.0
    %385 = vmatprep.subr.mxu0 0.0
    %386 = vmatpush1.msra.mxu0 0.0
    %387 = vmatprep.subr.mxu0 0.0
    %388 = vmatpush1.msra.mxu0 0.0
    %389 = vmatprep.subr.mxu0 0.0
    %390 = vmatpush1.msra.mxu0 0.0
    %391 = vmatprep.subr.mxu0 0.0
    %392 = vmatpush1.msra.mxu0 0.0
    %393 = vmatprep.subr.mxu0 0.0
    %394 = vmatpush1.msra.mxu0 0.0
    %395 = vmatprep.subr.mxu0 0.0
    %396 = vmatpush1.msra.mxu0 0.0
    %397 = vmatprep.subr.mxu0 0.0
    %398 = vmatpush1.msra.mxu0 0.0
    %399 = vmatprep.subr.mxu0 0.0
    %400 = vmatpush1.msra.mxu0 0.0
    %401 = vmatprep.subr.mxu0 0.0
    %402 = vmatpush1.msra.mxu0 0.0
    %403 = vmatprep.subr.mxu0 0.0
    %404 = vmatpush1.msra.mxu0 0.0
    %405 = vmatprep.subr.mxu0 0.0
    %406 = vmatpush1.msra.mxu0 0.0
    %407 = vmatprep.subr.mxu0 0.0
    %408 = vmatpush1.msra.mxu0 0.0
    %409 = vmatprep.subr.mxu0 0.0
    %410 = vmatpush1.msra.mxu0 0.0
    %411 = vmatprep.subr.mxu0 0.0
    %412 = vmatpush1.msra.mxu0 0.0
    %413 = vmatprep.subr.mxu0 0.0
    %414 = vmatpush1.msra.mxu0 0.0
    %415 = vmatprep.subr.mxu0 0.0
    %416 = vmatpush1.msra.mxu0 0.0
    %417 = vmatprep.subr.mxu0 0.0
    %418 = vmatpush1.msra.mxu0 0.0
    %419 = vmatprep.subr.mxu0 0.0
    %420 = vmatpush1.msra.mxu0 0.0
    %421 = vmatprep.subr.mxu0 0.0
    %422 = vmatpush1.msra.mxu0 0.0
    %423 = vmatprep.subr.mxu0 0.0
    %424 = vmatpush1.msra.mxu0 0.0
    %425 = vmatprep.subr.mxu0 0.0
    %426 = vmatpush1.msra.mxu0 0.0
    %427 = vmatprep.subr.mxu0 0.0
    %428 = vmatpush1.msra.mxu0 0.0
    %429 = vmatprep.subr.mxu0 0.0
    %430 = vmatpush1.msra.mxu0 0.0
    %431 = vmatprep.subr.mxu0 0.0
    %432 = vmatpush1.msra.mxu0 0.0
    %433 = vmatprep.mubr.f32.mxu0 0.0
    %434 = vmatmul.mubr.f32.gmra.mrb[0].mxu0 %v367
    %v435 = vpop.f32.mrb[0].mxu0
    %v436 = vadd.f32 %v362, %v435
    %v437 = vpop.f32.mrb[0].mxu0
    %438 = vdwg.mxu0
    %v439 = vmul.f32 %v436, 0.5
    %v440 = vtanh.pop %v439
    %v441 = vmul.f32 %v440, 0.5
    %v442 = vadd.f32 %v441, 0.5
    %v443 = vmul.f32 %v442, 0.0
    %445 = vrot.lane.b32.xlu0 %v440, 64
    %v446 = vpop.permute.xlu0 %445
    %v448 = vmul.f32 %v442, %v446
    %450 = vrot.lane.b32.xlu0 %v448, 32
    %v451 = vpop.permute.xlu0 %450
    %v453 = vadd.f32 %v443, %v451
    %v454 = vtanh.pop %v453
    %456 = vrot.lane.b32.xlu0 %v454, 64
    %v457 = vpop.permute.xlu0 %456
    %v459 = vmul.f32 %v442, %v457
    %461 = vrot.lane.b32.xlu0 %v459, 32
    %v462 = vpop.permute.xlu0 %461
    %vm464 = vcmask 254976
    %465 = vst.msk [vmem:[#allocation2] sm:$0x3] %vm464, %v462
    %466 = vmatprep.subr.mxu0 0.0
    %467 = vmatpush1.msra.mxu0 %v324
    %468 = vmatprep.subr.mxu0 0.0
    %469 = vmatpush1.msra.mxu0 %v325
    %470 = vmatprep.subr.mxu0 0.0
    %471 = vmatpush1.msra.mxu0 %v326
    %472 = vmatprep.subr.mxu0 0.0
    %473 = vmatpush1.msra.mxu0 %v327
    %474 = vmatprep.subr.mxu0 0.0
    %475 = vmatpush1.msra.mxu0 0.0
    %476 = vmatprep.subr.mxu0 0.0
    %477 = vmatpush1.msra.mxu0 0.0
    %478 = vmatprep.subr.mxu0 0.0
    %479 = vmatpush1.msra.mxu0 0.0
    %480 = vmatprep.subr.mxu0 0.0
    %481 = vmatpush1.msra.mxu0 0.0
    %482 = vmatprep.subr.mxu0 0.0
    %483 = vmatpush1.msra.mxu0 0.0
    %484 = vmatprep.subr.mxu0 0.0
    %485 = vmatpush1.msra.mxu0 0.0
    %486 = vmatprep.subr.mxu0 0.0
    %487 = vmatpush1.msra.mxu0 0.0
    %488 = vmatprep.subr.mxu0 0.0
    %489 = vmatpush1.msra.mxu0 0.0
    %490 = vmatprep.subr.mxu0 0.0
    %491 = vmatpush1.msra.mxu0 0.0
    %492 = vmatprep.subr.mxu0 0.0
    %493 = vmatpush1.msra.mxu0 0.0
    %494 = vmatprep.subr.mxu0 0.0
    %495 = vmatpush1.msra.mxu0 0.0
    %496 = vmatprep.subr.mxu0 0.0
    %497 = vmatpush1.msra.mxu0 0.0
    %498 = vmatprep.subr.mxu0 0.0
    %499 = vmatpush1.msra.mxu0 0.0
    %500 = vmatprep.subr.mxu0 0.0
    %501 = vmatpush1.msra.mxu0 0.0
    %502 = vmatprep.subr.mxu0 0.0
    %503 = vmatpush1.msra.mxu0 0.0
    %504 = vmatprep.subr.mxu0 0.0
    %505 = vmatpush1.msra.mxu0 0.0
    %506 = vmatprep.subr.mxu0 0.0
    %507 = vmatpush1.msra.mxu0 0.0
    %508 = vmatprep.subr.mxu0 0.0
    %509 = vmatpush1.msra.mxu0 0.0
    %510 = vmatprep.subr.mxu0 0.0
    %511 = vmatpush1.msra.mxu0 0.0
    %512 = vmatprep.subr.mxu0 0.0
    %513 = vmatpush1.msra.mxu0 0.0
    %514 = vmatprep.subr.mxu0 0.0
    %515 = vmatpush1.msra.mxu0 0.0
    %516 = vmatprep.subr.mxu0 0.0
    %517 = vmatpush1.msra.mxu0 0.0
    %518 = vmatprep.subr.mxu0 0.0
    %519 = vmatpush1.msra.mxu0 0.0
    %520 = vmatprep.subr.mxu0 0.0
    %521 = vmatpush1.msra.mxu0 0.0
    %522 = vmatprep.subr.mxu0 0.0
    %523 = vmatpush1.msra.mxu0 0.0
    %524 = vmatprep.subr.mxu0 0.0
    %525 = vmatpush1.msra.mxu0 0.0
    %526 = vmatprep.subr.mxu0 0.0
    %527 = vmatpush1.msra.mxu0 0.0
    %528 = vmatprep.subr.mxu0 0.0
    %529 = vmatpush1.msra.mxu0 0.0
    %530 = vmatprep.mubr.f32.mxu0 0.0
    %531 = vmatmul.mubr.f32.gmra.mrb[0].mxu0 %v367
    %v532 = vpop.f32.mrb[0].mxu0
    %v533 = vadd.f32 0.0, %v532
    %v534 = vpop.f32.mrb[0].mxu0
    %535 = vdwg.mxu0
    %v537 = vrot.slane %v533, 6
    %v539 = vadd.f32 %v316, %v537
    %v540 = vmul.f32 %v539, 0.5
    %v541 = vtanh.pop %v540
    %v542 = vmul.f32 %v541, 0.5
    %v543 = vadd.f32 %v542, 0.5
    %v545 = vrot.slane %v351, 6
    %v547 = vmul.f32 %v543, %v545
    %549 = vrot.lane.b32.xlu0 %v541, 64
    %v550 = vpop.permute.xlu0 %549
    %v552 = vmul.f32 %v543, %v550
    %554 = vrot.lane.b32.xlu0 %v552, 32
    %v555 = vpop.permute.xlu0 %554
    %v557 = vadd.f32 %v547, %v555
    %v558 = vtanh.pop %v557
    %560 = vrot.lane.b32.xlu0 %v558, 64
    %v561 = vpop.permute.xlu0 %560
    %v563 = vmul.f32 %v543, %v561
    %v565 = vrot.slane %v563, 2
    %566 = vrot.lane.b32.xlu0 %v565, 32
    %v567 = vpop.permute.xlu0 %566
    %v568 = vsel %vm242, %v567, 0
    %570 = vmatprep.subr.mxu0 0.0
    %571 = vmatpush1.msra.mxu0 %v328
    %572 = vmatprep.subr.mxu0 0.0
    %573 = vmatpush1.msra.mxu0 %v329
    %574 = vmatprep.subr.mxu0 0.0
    %575 = vmatpush1.msra.mxu0 %v330
    %576 = vmatprep.subr.mxu0 0.0
    %577 = vmatpush1.msra.mxu0 %v331
    %578 = vmatprep.subr.mxu0 0.0
    %579 = vmatpush1.msra.mxu0 0.0
    %580 = vmatprep.subr.mxu0 0.0
    %581 = vmatpush1.msra.mxu0 0.0
    %582 = vmatprep.subr.mxu0 0.0
    %583 = vmatpush1.msra.mxu0 0.0
    %584 = vmatprep.subr.mxu0 0.0
    %585 = vmatpush1.msra.mxu0 0.0
    %586 = vmatprep.subr.mxu0 0.0
    %587 = vmatpush1.msra.mxu0 0.0
    %588 = vmatprep.subr.mxu0 0.0
    %589 = vmatpush1.msra.mxu0 0.0
    %590 = vmatprep.subr.mxu0 0.0
    %591 = vmatpush1.msra.mxu0 0.0
    %592 = vmatprep.subr.mxu0 0.0
    %593 = vmatpush1.msra.mxu0 0.0
    %594 = vmatprep.subr.mxu0 0.0
    %595 = vmatpush1.msra.mxu0 0.0
    %596 = vmatprep.subr.mxu0 0.0
    %597 = vmatpush1.msra.mxu0 0.0
    %598 = vmatprep.subr.mxu0 0.0
    %599 = vmatpush1.msra.mxu0 0.0
    %600 = vmatprep.subr.mxu0 0.0
    %601 = vmatpush1.msra.mxu0 0.0
    %602 = vmatprep.subr.mxu0 0.0
    %603 = vmatpush1.msra.mxu0 0.0
    %604 = vmatprep.subr.mxu0 0.0
    %605 = vmatpush1.msra.mxu0 0.0
    %606 = vmatprep.subr.mxu0 0.0
    %607 = vmatpush1.msra.mxu0 0.0
    %608 = vmatprep.subr.mxu0 0.0
    %609 = vmatpush1.msra.mxu0 0.0
    %610 = vmatprep.subr.mxu0 0.0
    %611 = vmatpush1.msra.mxu0 0.0
    %612 = vmatprep.subr.mxu0 0.0
    %613 = vmatpush1.msra.mxu0 0.0
    %614 = vmatprep.subr.mxu0 0.0
    %615 = vmatpush1.msra.mxu0 0.0
    %616 = vmatprep.subr.mxu0 0.0
    %617 = vmatpush1.msra.mxu0 0.0
    %618 = vmatprep.subr.mxu0 0.0
    %619 = vmatpush1.msra.mxu0 0.0
    %620 = vmatprep.subr.mxu0 0.0
    %621 = vmatpush1.msra.mxu0 0.0
    %622 = vmatprep.subr.mxu0 0.0
    %623 = vmatpush1.msra.mxu0 0.0
    %624 = vmatprep.subr.mxu0 0.0
    %625 = vmatpush1.msra.mxu0 0.0
    %626 = vmatprep.subr.mxu0 0.0
    %627 = vmatpush1.msra.mxu0 0.0
    %628 = vmatprep.subr.mxu0 0.0
    %629 = vmatpush1.msra.mxu0 0.0
    %630 = vmatprep.subr.mxu0 0.0
    %631 = vmatpush1.msra.mxu0 0.0
    %632 = vmatprep.subr.mxu0 0.0
    %633 = vmatpush1.msra.mxu0 0.0
    %634 = vmatprep.mubr.f32.mxu0 0.0
    %635 = vmatmul.mubr.f32.gmra.mrb[0].mxu0 %v568
    %v636 = vpop.f32.mrb[0].mxu0
    %v637 = vadd.f32 %v362, %v636
    %v638 = vpop.f32.mrb[0].mxu0
    %639 = vdwg.mxu0
    %v640 = vsel %vm242, %v462, 0
    %642 = vmatprep.subr.mxu0 0.0
    %643 = vmatpush1.msra.mxu0 %v332
    %644 = vmatprep.subr.mxu0 0.0
    %645 = vmatpush1.msra.mxu0 %v333
    %646 = vmatprep.subr.mxu0 0.0
    %647 = vmatpush1.msra.mxu0 %v334
    %648 = vmatprep.subr.mxu0 0.0
    %649 = vmatpush1.msra.mxu0 %v335
    %650 = vmatprep.subr.mxu0 0.0
    %651 = vmatpush1.msra.mxu0 0.0
    %652 = vmatprep.subr.mxu0 0.0
    %653 = vmatpush1.msra.mxu0 0.0
    %654 = vmatprep.subr.mxu0 0.0
    %655 = vmatpush1.msra.mxu0 0.0
    %656 = vmatprep.subr.mxu0 0.0
    %657 = vmatpush1.msra.mxu0 0.0
    %658 = vmatprep.subr.mxu0 0.0
    %659 = vmatpush1.msra.mxu0 0.0
    %660 = vmatprep.subr.mxu0 0.0
    %661 = vmatpush1.msra.mxu0 0.0
    %662 = vmatprep.subr.mxu0 0.0
    %663 = vmatpush1.msra.mxu0 0.0
    %664 = vmatprep.subr.mxu0 0.0
    %665 = vmatpush1.msra.mxu0 0.0
    %666 = vmatprep.subr.mxu0 0.0
    %667 = vmatpush1.msra.mxu0 0.0
    %668 = vmatprep.subr.mxu0 0.0
    %669 = vmatpush1.msra.mxu0 0.0
    %670 = vmatprep.subr.mxu0 0.0
    %671 = vmatpush1.msra.mxu0 0.0
    %672 = vmatprep.subr.mxu0 0.0
    %673 = vmatpush1.msra.mxu0 0.0
    %674 = vmatprep.subr.mxu0 0.0
    %675 = vmatpush1.msra.mxu0 0.0
    %676 = vmatprep.subr.mxu0 0.0
    %677 = vmatpush1.msra.mxu0 0.0
    %678 = vmatprep.subr.mxu0 0.0
    %679 = vmatpush1.msra.mxu0 0.0
    %680 = vmatprep.subr.mxu0 0.0
    %681 = vmatpush1.msra.mxu0 0.0
    %682 = vmatprep.subr.mxu0 0.0
    %683 = vmatpush1.msra.mxu0 0.0
    %684 = vmatprep.subr.mxu0 0.0
    %685 = vmatpush1.msra.mxu0 0.0
    %686 = vmatprep.subr.mxu0 0.0
    %687 = vmatpush1.msra.mxu0 0.0
    %688 = vmatprep.subr.mxu0 0.0
    %689 = vmatpush1.msra.mxu0 0.0
    %690 = vmatprep.subr.mxu0 0.0
    %691 = vmatpush1.msra.mxu0 0.0
    %692 = vmatprep.subr.mxu0 0.0
    %693 = vmatpush1.msra.mxu0 0.0
    %694 = vmatprep.subr.mxu0 0.0
    %695 = vmatpush1.msra.mxu0 0.0
    %696 = vmatprep.subr.mxu0 0.0
    %697 = vmatpush1.msra.mxu0 0.0
    %698 = vmatprep.subr.mxu0 0.0
    %699 = vmatpush1.msra.mxu0 0.0
    %700 = vmatprep.subr.mxu0 0.0
    %701 = vmatpush1.msra.mxu0 0.0
    %702 = vmatprep.subr.mxu0 0.0
    %703 = vmatpush1.msra.mxu0 0.0
    %704 = vmatprep.subr.mxu0 0.0
    %705 = vmatpush1.msra.mxu0 0.0
    %706 = vmatprep.mubr.f32.mxu0 0.0
    %707 = vmatmul.mubr.f32.gmra.mrb[0].mxu0 %v640
    %v708 = vpop.f32.mrb[0].mxu0
    %v709 = vadd.f32 0.0, %v708
    %v710 = vpop.f32.mrb[0].mxu0
    %711 = vdwg.mxu0
    %v712 = vadd.f32 %v637, %v709
    %v713 = vmul.f32 %v712, 0.5
    %v714 = vtanh.pop %v713
    %v715 = vmul.f32 %v714, 0.5
    %v716 = vadd.f32 %v715, 0.5
    %v717 = vmul.f32 %v716, %v453
    %719 = vrot.lane.b32.xlu0 %v714, 64
    %v720 = vpop.permute.xlu0 %719
    %v722 = vmul.f32 %v716, %v720
    %724 = vrot.lane.b32.xlu0 %v722, 32
    %v725 = vpop.permute.xlu0 %724
    %v727 = vadd.f32 %v717, %v725
    %v728 = vtanh.pop %v727
    %730 = vrot.lane.b32.xlu0 %v728, 64
    %v731 = vpop.permute.xlu0 %730
    %v733 = vmul.f32 %v716, %v731
    %735 = vrot.lane.b32.xlu0 %v733, 32
    %v736 = vpop.permute.xlu0 %735
    %738 = vst.msk [vmem:[#allocation2 + $0x2] sm:$0x3] %vm464, %v736
    %739 = vmatprep.subr.mxu0 0.0
    %740 = vmatpush1.msra.mxu0 %v324
    %741 = vmatprep.subr.mxu0 0.0
    %742 = vmatpush1.msra.mxu0 %v325
    %743 = vmatprep.subr.mxu0 0.0
    %744 = vmatpush1.msra.mxu0 %v326
    %745 = vmatprep.subr.mxu0 0.0
    %746 = vmatpush1.msra.mxu0 %v327
    %747 = vmatprep.subr.mxu0 0.0
    %748 = vmatpush1.msra.mxu0 0.0
    %749 = vmatprep.subr.mxu0 0.0
    %750 = vmatpush1.msra.mxu0 0.0
    %751 = vmatprep.subr.mxu0 0.0
    %752 = vmatpush1.msra.mxu0 0.0
    %753 = vmatprep.subr.mxu0 0.0
    %754 = vmatpush1.msra.mxu0 0.0
    %755 = vmatprep.subr.mxu0 0.0
    %756 = vmatpush1.msra.mxu0 0.0
    %757 = vmatprep.subr.mxu0 0.0
    %758 = vmatpush1.msra.mxu0 0.0
    %759 = vmatprep.subr.mxu0 0.0
    %760 = vmatpush1.msra.mxu0 0.0
    %761 = vmatprep.subr.mxu0 0.0
    %762 = vmatpush1.msra.mxu0 0.0
    %763 = vmatprep.subr.mxu0 0.0
    %764 = vmatpush1.msra.mxu0 0.0
    %765 = vmatprep.subr.mxu0 0.0
    %766 = vmatpush1.msra.mxu0 0.0
    %767 = vmatprep.subr.mxu0 0.0
    %768 = vmatpush1.msra.mxu0 0.0
    %769 = vmatprep.subr.mxu0 0.0
    %770 = vmatpush1.msra.mxu0 0.0
    %771 = vmatprep.subr.mxu0 0.0
    %772 = vmatpush1.msra.mxu0 0.0
    %773 = vmatprep.subr.mxu0 0.0
    %774 = vmatpush1.msra.mxu0 0.0
    %775 = vmatprep.subr.mxu0 0.0
    %776 = vmatpush1.msra.mxu0 0.0
    %777 = vmatprep.subr.mxu0 0.0
    %778 = vmatpush1.msra.mxu0 0.0
    %779 = vmatprep.subr.mxu0 0.0
    %780 = vmatpush1.msra.mxu0 0.0
    %781 = vmatprep.subr.mxu0 0.0
    %782 = vmatpush1.msra.mxu0 0.0
    %783 = vmatprep.subr.mxu0 0.0
    %784 = vmatpush1.msra.mxu0 0.0
    %785 = vmatprep.subr.mxu0 0.0
    %786 = vmatpush1.msra.mxu0 0.0
    %787 = vmatprep.subr.mxu0 0.0
    %788 = vmatpush1.msra.mxu0 0.0
    %789 = vmatprep.subr.mxu0 0.0
    %790 = vmatpush1.msra.mxu0 0.0
    %791 = vmatprep.subr.mxu0 0.0
    %792 = vmatpush1.msra.mxu0 0.0
    %793 = vmatprep.subr.mxu0 0.0
    %794 = vmatpush1.msra.mxu0 0.0
    %795 = vmatprep.subr.mxu0 0.0
    %796 = vmatpush1.msra.mxu0 0.0
    %797 = vmatprep.subr.mxu0 0.0
    %798 = vmatpush1.msra.mxu0 0.0
    %799 = vmatprep.subr.mxu0 0.0
    %800 = vmatpush1.msra.mxu0 0.0
    %801 = vmatprep.subr.mxu0 0.0
    %802 = vmatpush1.msra.mxu0 0.0
    %803 = vmatprep.mubr.f32.mxu0 0.0
    %804 = vmatmul.mubr.f32.gmra.mrb[0].mxu0 %v568
    %v805 = vpop.f32.mrb[0].mxu0
    %v806 = vadd.f32 0.0, %v805
    %v807 = vpop.f32.mrb[0].mxu0
    %808 = vdwg.mxu0
    %v810 = vrot.slane %v806, 4
    %v812 = vadd.f32 %v316, %v810
    %v813 = vmul.f32 %v812, 0.5
    %v814 = vtanh.pop %v813
    %v815 = vmul.f32 %v814, 0.5
    %v816 = vadd.f32 %v815, 0.5
    %v818 = vrot.slane %v557, 6
    %v820 = vmul.f32 %v816, %v818
    %822 = vrot.lane.b32.xlu0 %v814, 64
    %v823 = vpop.permute.xlu0 %822
    %v825 = vmul.f32 %v816, %v823
    %827 = vrot.lane.b32.xlu0 %v825, 32
    %v828 = vpop.permute.xlu0 %827
    %v830 = vadd.f32 %v820, %v828
    %v831 = vtanh.pop %v830
    %833 = vrot.lane.b32.xlu0 %v831, 64
    %v834 = vpop.permute.xlu0 %833
    %v836 = vmul.f32 %v816, %v834
    %v838 = vrot.slane %v836, 4
    %839 = vrot.lane.b32.xlu0 %v838, 32
    %v840 = vpop.permute.xlu0 %839
    %v841 = vsel %vm242, %v840, 0
    %843 = vmatprep.subr.mxu0 0.0
    %844 = vmatpush1.msra.mxu0 %v328
    %845 = vmatprep.subr.mxu0 0.0
    %846 = vmatpush1.msra.mxu0 %v329
    %847 = vmatprep.subr.mxu0 0.0
    %848 = vmatpush1.msra.mxu0 %v330
    %849 = vmatprep.subr.mxu0 0.0
    %850 = vmatpush1.msra.mxu0 %v331
    %851 = vmatprep.subr.mxu0 0.0
    %852 = vmatpush1.msra.mxu0 0.0
    %853 = vmatprep.subr.mxu0 0.0
    %854 = vmatpush1.msra.mxu0 0.0
    %855 = vmatprep.subr.mxu0 0.0
    %856 = vmatpush1.msra.mxu0 0.0
    %857 = vmatprep.subr.mxu0 0.0
    %858 = vmatpush1.msra.mxu0 0.0
    %859 = vmatprep.subr.mxu0 0.0
    %860 = vmatpush1.msra.mxu0 0.0
    %861 = vmatprep.subr.mxu0 0.0
    %862 = vmatpush1.msra.mxu0 0.0
    %863 = vmatprep.subr.mxu0 0.0
    %864 = vmatpush1.msra.mxu0 0.0
    %865 = vmatprep.subr.mxu0 0.0
    %866 = vmatpush1.msra.mxu0 0.0
    %867 = vmatprep.subr.mxu0 0.0
    %868 = vmatpush1.msra.mxu0 0.0
    %869 = vmatprep.subr.mxu0 0.0
    %870 = vmatpush1.msra.mxu0 0.0
    %871 = vmatprep.subr.mxu0 0.0
    %872 = vmatpush1.msra.mxu0 0.0
    %873 = vmatprep.subr.mxu0 0.0
    %874 = vmatpush1.msra.mxu0 0.0
    %875 = vmatprep.subr.mxu0 0.0
    %876 = vmatpush1.msra.mxu0 0.0
    %877 = vmatprep.subr.mxu0 0.0
    %878 = vmatpush1.msra.mxu0 0.0
    %879 = vmatprep.subr.mxu0 0.0
    %880 = vmatpush1.msra.mxu0 0.0
    %881 = vmatprep.subr.mxu0 0.0
    %882 = vmatpush1.msra.mxu0 0.0
    %883 = vmatprep.subr.mxu0 0.0
    %884 = vmatpush1.msra.mxu0 0.0
    %885 = vmatprep.subr.mxu0 0.0
    %886 = vmatpush1.msra.mxu0 0.0
    %887 = vmatprep.subr.mxu0 0.0
    %888 = vmatpush1.msra.mxu0 0.0
    %889 = vmatprep.subr.mxu0 0.0
    %890 = vmatpush1.msra.mxu0 0.0
    %891 = vmatprep.subr.mxu0 0.0
    %892 = vmatpush1.msra.mxu0 0.0
    %893 = vmatprep.subr.mxu0 0.0
    %894 = vmatpush1.msra.mxu0 0.0
    %895 = vmatprep.subr.mxu0 0.0
    %896 = vmatpush1.msra.mxu0 0.0
    %897 = vmatprep.subr.mxu0 0.0
    %898 = vmatpush1.msra.mxu0 0.0
    %899 = vmatprep.subr.mxu0 0.0
    %900 = vmatpush1.msra.mxu0 0.0
    %901 = vmatprep.subr.mxu0 0.0
    %902 = vmatpush1.msra.mxu0 0.0
    %903 = vmatprep.subr.mxu0 0.0
    %904 = vmatpush1.msra.mxu0 0.0
    %905 = vmatprep.subr.mxu0 0.0
    %906 = vmatpush1.msra.mxu0 0.0
    %907 = vmatprep.mubr.f32.mxu0 0.0
    %908 = vmatmul.mubr.f32.gmra.mrb[0].mxu0 %v841
    %v909 = vpop.f32.mrb[0].mxu0
    %v910 = vadd.f32 %v362, %v909
    %v911 = vpop.f32.mrb[0].mxu0
    %912 = vdwg.mxu0
    %v913 = vsel %vm242, %v736, 0
    %915 = vmatprep.subr.mxu0 0.0
    %916 = vmatpush1.msra.mxu0 %v332
    %917 = vmatprep.subr.mxu0 0.0
    %918 = vmatpush1.msra.mxu0 %v333
    %919 = vmatprep.subr.mxu0 0.0
    %920 = vmatpush1.msra.mxu0 %v334
    %921 = vmatprep.subr.mxu0 0.0
    %922 = vmatpush1.msra.mxu0 %v335
    %923 = vmatprep.subr.mxu0 0.0
    %924 = vmatpush1.msra.mxu0 0.0
    %925 = vmatprep.subr.mxu0 0.0
    %926 = vmatpush1.msra.mxu0 0.0
    %927 = vmatprep.subr.mxu0 0.0
    %928 = vmatpush1.msra.mxu0 0.0
    %929 = vmatprep.subr.mxu0 0.0
    %930 = vmatpush1.msra.mxu0 0.0
    %931 = vmatprep.subr.mxu0 0.0
    %932 = vmatpush1.msra.mxu0 0.0
    %933 = vmatprep.subr.mxu0 0.0
    %934 = vmatpush1.msra.mxu0 0.0
    %935 = vmatprep.subr.mxu0 0.0
    %936 = vmatpush1.msra.mxu0 0.0
    %937 = vmatprep.subr.mxu0 0.0
    %938 = vmatpush1.msra.mxu0 0.0
    %939 = vmatprep.subr.mxu0 0.0
    %940 = vmatpush1.msra.mxu0 0.0
    %941 = vmatprep.subr.mxu0 0.0
    %942 = vmatpush1.msra.mxu0 0.0
    %943 = vmatprep.subr.mxu0 0.0
    %944 = vmatpush1.msra.mxu0 0.0
    %945 = vmatprep.subr.mxu0 0.0
    %946 = vmatpush1.msra.mxu0 0.0
    %947 = vmatprep.subr.mxu0 0.0
    %948 = vmatpush1.msra.mxu0 0.0
    %949 = vmatprep.subr.mxu0 0.0
    %950 = vmatpush1.msra.mxu0 0.0
    %951 = vmatprep.subr.mxu0 0.0
    %952 = vmatpush1.msra.mxu0 0.0
    %953 = vmatprep.subr.mxu0 0.0
    %954 = vmatpush1.msra.mxu0 0.0
    %955 = vmatprep.subr.mxu0 0.0
    %956 = vmatpush1.msra.mxu0 0.0
    %957 = vmatprep.subr.mxu0 0.0
    %958 = vmatpush1.msra.mxu0 0.0
    %959 = vmatprep.subr.mxu0 0.0
    %960 = vmatpush1.msra.mxu0 0.0
    %961 = vmatprep.subr.mxu0 0.0
    %962 = vmatpush1.msra.mxu0 0.0
    %963 = vmatprep.subr.mxu0 0.0
    %964 = vmatpush1.msra.mxu0 0.0
    %965 = vmatprep.subr.mxu0 0.0
    %966 = vmatpush1.msra.mxu0 0.0
    %967 = vmatprep.subr.mxu0 0.0
    %968 = vmatpush1.msra.mxu0 0.0
    %969 = vmatprep.subr.mxu0 0.0
    %970 = vmatpush1.msra.mxu0 0.0
    %971 = vmatprep.subr.mxu0 0.0
    %972 = vmatpush1.msra.mxu0 0.0
    %973 = vmatprep.subr.mxu0 0.0
    %974 = vmatpush1.msra.mxu0 0.0
    %975 = vmatprep.subr.mxu0 0.0
    %976 = vmatpush1.msra.mxu0 0.0
    %977 = vmatprep.subr.mxu0 0.0
    %978 = vmatpush1.msra.mxu0 0.0
    %979 = vmatprep.mubr.f32.mxu0 0.0
    %980 = vmatmul.mubr.f32.gmra.mrb[0].mxu0 %v913
    %v981 = vpop.f32.mrb[0].mxu0
    %v982 = vadd.f32 0.0, %v981
    %v983 = vpop.f32.mrb[0].mxu0
    %984 = vdwg.mxu0
    %v985 = vadd.f32 %v910, %v982
    %v986 = vmul.f32 %v985, 0.5
    %v987 = vtanh.pop %v986
    %v988 = vmul.f32 %v987, 0.5
    %v989 = vadd.f32 %v988, 0.5
    %v990 = vmul.f32 %v989, %v727
    %992 = vrot.lane.b32.xlu0 %v987, 64
    %v993 = vpop.permute.xlu0 %992
    %v995 = vmul.f32 %v989, %v993
    %997 = vrot.lane.b32.xlu0 %v995, 32
    %v998 = vpop.permute.xlu0 %997
    %v1000 = vadd.f32 %v990, %v998
    %v1001 = vtanh.pop %v1000
    %1003 = vrot.lane.b32.xlu0 %v1001, 64
    %v1004 = vpop.permute.xlu0 %1003
    %v1006 = vmul.f32 %v989, %v1004
    %1008 = vrot.lane.b32.xlu0 %v1006, 32
    %v1009 = vpop.permute.xlu0 %1008
    %1011 = vst.msk [vmem:[#allocation2 + $0x4] sm:$0x3] %vm464, %v1009
    %1012 = vmatprep.subr.mxu0 0.0
    %1013 = vmatpush1.msra.mxu0 %v324
    %1014 = vmatprep.subr.mxu0 0.0
    %1015 = vmatpush1.msra.mxu0 %v325
    %1016 = vmatprep.subr.mxu0 0.0
    %1017 = vmatpush1.msra.mxu0 %v326
    %1018 = vmatprep.subr.mxu0 0.0
    %1019 = vmatpush1.msra.mxu0 %v327
    %1020 = vmatprep.subr.mxu0 0.0
    %1021 = vmatpush1.msra.mxu0 0.0
    %1022 = vmatprep.subr.mxu0 0.0
    %1023 = vmatpush1.msra.mxu0 0.0
    %1024 = vmatprep.subr.mxu0 0.0
    %1025 = vmatpush1.msra.mxu0 0.0
    %1026 = vmatprep.subr.mxu0 0.0
    %1027 = vmatpush1.msra.mxu0 0.0
    %1028 = vmatprep.subr.mxu0 0.0
    %1029 = vmatpush1.msra.mxu0 0.0
    %1030 = vmatprep.subr.mxu0 0.0
    %1031 = vmatpush1.msra.mxu0 0.0
    %1032 = vmatprep.subr.mxu0 0.0
    %1033 = vmatpush1.msra.mxu0 0.0
    %1034 = vmatprep.subr.mxu0 0.0
    %1035 = vmatpush1.msra.mxu0 0.0
    %1036 = vmatprep.subr.mxu0 0.0
    %1037 = vmatpush1.msra.mxu0 0.0
    %1038 = vmatprep.subr.mxu0 0.0
    %1039 = vmatpush1.msra.mxu0 0.0
    %1040 = vmatprep.subr.mxu0 0.0
    %1041 = vmatpush1.msra.mxu0 0.0
    %1042 = vmatprep.subr.mxu0 0.0
    %1043 = vmatpush1.msra.mxu0 0.0
    %1044 = vmatprep.subr.mxu0 0.0
    %1045 = vmatpush1.msra.mxu0 0.0
    %1046 = vmatprep.subr.mxu0 0.0
    %1047 = vmatpush1.msra.mxu0 0.0
    %1048 = vmatprep.subr.mxu0 0.0
    %1049 = vmatpush1.msra.mxu0 0.0
    %1050 = vmatprep.subr.mxu0 0.0
    %1051 = vmatpush1.msra.mxu0 0.0
    %1052 = vmatprep.subr.mxu0 0.0
    %1053 = vmatpush1.msra.mxu0 0.0
    %1054 = vmatprep.subr.mxu0 0.0
    %1055 = vmatpush1.msra.mxu0 0.0
    %1056 = vmatprep.subr.mxu0 0.0
    %1057 = vmatpush1.msra.mxu0 0.0
    %1058 = vmatprep.subr.mxu0 0.0
    %1059 = vmatpush1.msra.mxu0 0.0
    %1060 = vmatprep.subr.mxu0 0.0
    %1061 = vmatpush1.msra.mxu0 0.0
    %1062 = vmatprep.subr.mxu0 0.0
    %1063 = vmatpush1.msra.mxu0 0.0
    %1064 = vmatprep.subr.mxu0 0.0
    %1065 = vmatpush1.msra.mxu0 0.0
    %1066 = vmatprep.subr.mxu0 0.0
    %1067 = vmatpush1.msra.mxu0 0.0
    %1068 = vmatprep.subr.mxu0 0.0
    %1069 = vmatpush1.msra.mxu0 0.0
    %1070 = vmatprep.subr.mxu0 0.0
    %1071 = vmatpush1.msra.mxu0 0.0
    %1072 = vmatprep.subr.mxu0 0.0
    %1073 = vmatpush1.msra.mxu0 0.0
    %1074 = vmatprep.subr.mxu0 0.0
    %1075 = vmatpush1.msra.mxu0 0.0
    %1076 = vmatprep.mubr.f32.mxu0 0.0
    %1077 = vmatmul.mubr.f32.gmra.mrb[0].mxu0 %v841
    %v1078 = vpop.f32.mrb[0].mxu0
    %v1079 = vadd.f32 0.0, %v1078
    %v1080 = vpop.f32.mrb[0].mxu0
    %1081 = vdwg.mxu0
    %v1083 = vrot.slane %v1079, 2
    %v1085 = vadd.f32 %v316, %v1083
    %v1086 = vmul.f32 %v1085, 0.5
    %v1087 = vtanh.pop %v1086
    %v1088 = vmul.f32 %v1087, 0.5
    %v1089 = vadd.f32 %v1088, 0.5
    %v1091 = vrot.slane %v830, 6
    %v1093 = vmul.f32 %v1089, %v1091
    %1095 = vrot.lane.b32.xlu0 %v1087, 64
    %v1096 = vpop.permute.xlu0 %1095
    %v1098 = vmul.f32 %v1089, %v1096
    %1100 = vrot.lane.b32.xlu0 %v1098, 32
    %v1101 = vpop.permute.xlu0 %1100
    %v1103 = vadd.f32 %v1093, %v1101
    %v1104 = vtanh.pop %v1103
    %1106 = vrot.lane.b32.xlu0 %v1104, 64
    %v1107 = vpop.permute.xlu0 %1106
    %v1109 = vmul.f32 %v1089, %v1107
    %v1111 = vrot.slane %v1109, 6
    %1112 = vrot.lane.b32.xlu0 %v1111, 32
    %v1113 = vpop.permute.xlu0 %1112
    %v1114 = vsel %vm242, %v1113, 0
    %1116 = vmatprep.subr.mxu0 0.0
    %1117 = vmatpush1.msra.mxu0 %v328
    %1118 = vmatprep.subr.mxu0 0.0
    %1119 = vmatpush1.msra.mxu0 %v329
    %1120 = vmatprep.subr.mxu0 0.0
    %1121 = vmatpush1.msra.mxu0 %v330
    %1122 = vmatprep.subr.mxu0 0.0
    %1123 = vmatpush1.msra.mxu0 %v331
    %1124 = vmatprep.subr.mxu0 0.0
    %1125 = vmatpush1.msra.mxu0 0.0
    %1126 = vmatprep.subr.mxu0 0.0
    %1127 = vmatpush1.msra.mxu0 0.0
    %1128 = vmatprep.subr.mxu0 0.0
    %1129 = vmatpush1.msra.mxu0 0.0
    %1130 = vmatprep.subr.mxu0 0.0
    %1131 = vmatpush1.msra.mxu0 0.0
    %1132 = vmatprep.subr.mxu0 0.0
    %1133 = vmatpush1.msra.mxu0 0.0
    %1134 = vmatprep.subr.mxu0 0.0
    %1135 = vmatpush1.msra.mxu0 0.0
    %1136 = vmatprep.subr.mxu0 0.0
    %1137 = vmatpush1.msra.mxu0 0.0
    %1138 = vmatprep.subr.mxu0 0.0
    %1139 = vmatpush1.msra.mxu0 0.0
    %1140 = vmatprep.subr.mxu0 0.0
    %1141 = vmatpush1.msra.mxu0 0.0
    %1142 = vmatprep.subr.mxu0 0.0
    %1143 = vmatpush1.msra.mxu0 0.0
    %1144 = vmatprep.subr.mxu0 0.0
    %1145 = vmatpush1.msra.mxu0 0.0
    %1146 = vmatprep.subr.mxu0 0.0
    %1147 = vmatpush1.msra.mxu0 0.0
    %1148 = vmatprep.subr.mxu0 0.0
    %1149 = vmatpush1.msra.mxu0 0.0
    %1150 = vmatprep.subr.mxu0 0.0
    %1151 = vmatpush1.msra.mxu0 0.0
    %1152 = vmatprep.subr.mxu0 0.0
    %1153 = vmatpush1.msra.mxu0 0.0
    %1154 = vmatprep.subr.mxu0 0.0
    %1155 = vmatpush1.msra.mxu0 0.0
    %1156 = vmatprep.subr.mxu0 0.0
    %1157 = vmatpush1.msra.mxu0 0.0
    %1158 = vmatprep.subr.mxu0 0.0
    %1159 = vmatpush1.msra.mxu0 0.0
    %1160 = vmatprep.subr.mxu0 0.0
    %1161 = vmatpush1.msra.mxu0 0.0
    %1162 = vmatprep.subr.mxu0 0.0
    %1163 = vmatpush1.msra.mxu0 0.0
    %1164 = vmatprep.subr.mxu0 0.0
    %1165 = vmatpush1.msra.mxu0 0.0
    %1166 = vmatprep.subr.mxu0 0.0
    %1167 = vmatpush1.msra.mxu0 0.0
    %1168 = vmatprep.subr.mxu0 0.0
    %1169 = vmatpush1.msra.mxu0 0.0
    %1170 = vmatprep.subr.mxu0 0.0
    %1171 = vmatpush1.msra.mxu0 0.0
    %1172 = vmatprep.subr.mxu0 0.0
    %1173 = vmatpush1.msra.mxu0 0.0
    %1174 = vmatprep.subr.mxu0 0.0
    %1175 = vmatpush1.msra.mxu0 0.0
    %1176 = vmatprep.subr.mxu0 0.0
    %1177 = vmatpush1.msra.mxu0 0.0
    %1178 = vmatprep.subr.mxu0 0.0
    %1179 = vmatpush1.msra.mxu0 0.0
    %1180 = vmatprep.mubr.f32.mxu0 0.0
    %1181 = vmatmul.mubr.f32.gmra.mrb[0].mxu0 %v1114
    %v1182 = vpop.f32.mrb[0].mxu0
    %v1183 = vadd.f32 %v362, %v1182
    %v1184 = vpop.f32.mrb[0].mxu0
    %1185 = vdwg.mxu0
    %v1186 = vsel %vm242, %v1009, 0
    %1188 = vmatprep.subr.mxu0 0.0
    %1189 = vmatpush1.msra.mxu0 %v332
    %1190 = vmatprep.subr.mxu0 0.0
    %1191 = vmatpush1.msra.mxu0 %v333
    %1192 = vmatprep.subr.mxu0 0.0
    %1193 = vmatpush1.msra.mxu0 %v334
    %1194 = vmatprep.subr.mxu0 0.0
    %1195 = vmatpush1.msra.mxu0 %v335
    %1196 = vmatprep.subr.mxu0 0.0
    %1197 = vmatpush1.msra.mxu0 0.0
    %1198 = vmatprep.subr.mxu0 0.0
    %1199 = vmatpush1.msra.mxu0 0.0
    %1200 = vmatprep.subr.mxu0 0.0
    %1201 = vmatpush1.msra.mxu0 0.0
    %1202 = vmatprep.subr.mxu0 0.0
    %1203 = vmatpush1.msra.mxu0 0.0
    %1204 = vmatprep.subr.mxu0 0.0
    %1205 = vmatpush1.msra.mxu0 0.0
    %1206 = vmatprep.subr.mxu0 0.0
    %1207 = vmatpush1.msra.mxu0 0.0
    %1208 = vmatprep.subr.mxu0 0.0
    %1209 = vmatpush1.msra.mxu0 0.0
    %1210 = vmatprep.subr.mxu0 0.0
    %1211 = vmatpush1.msra.mxu0 0.0
    %1212 = vmatprep.subr.mxu0 0.0
    %1213 = vmatpush1.msra.mxu0 0.0
    %1214 = vmatprep.subr.mxu0 0.0
    %1215 = vmatpush1.msra.mxu0 0.0
    %1216 = vmatprep.subr.mxu0 0.0
    %1217 = vmatpush1.msra.mxu0 0.0
    %1218 = vmatprep.subr.mxu0 0.0
    %1219 = vmatpush1.msra.mxu0 0.0
    %1220 = vmatprep.subr.mxu0 0.0
    %1221 = vmatpush1.msra.mxu0 0.0
    %1222 = vmatprep.subr.mxu0 0.0
    %1223 = vmatpush1.msra.mxu0 0.0
    %1224 = vmatprep.subr.mxu0 0.0
    %1225 = vmatpush1.msra.mxu0 0.0
    %1226 = vmatprep.subr.mxu0 0.0
    %1227 = vmatpush1.msra.mxu0 0.0
    %1228 = vmatprep.subr.mxu0 0.0
    %1229 = vmatpush1.msra.mxu0 0.0
    %1230 = vmatprep.subr.mxu0 0.0
    %1231 = vmatpush1.msra.mxu0 0.0
    %1232 = vmatprep.subr.mxu0 0.0
    %1233 = vmatpush1.msra.mxu0 0.0
    %1234 = vmatprep.subr.mxu0 0.0
    %1235 = vmatpush1.msra.mxu0 0.0
    %1236 = vmatprep.subr.mxu0 0.0
    %1237 = vmatpush1.msra.mxu0 0.0
    %1238 = vmatprep.subr.mxu0 0.0
    %1239 = vmatpush1.msra.mxu0 0.0
    %1240 = vmatprep.subr.mxu0 0.0
    %1241 = vmatpush1.msra.mxu0 0.0
    %1242 = vmatprep.subr.mxu0 0.0
    %1243 = vmatpush1.msra.mxu0 0.0
    %1244 = vmatprep.subr.mxu0 0.0
    %1245 = vmatpush1.msra.mxu0 0.0
    %1246 = vmatprep.subr.mxu0 0.0
    %1247 = vmatpush1.msra.mxu0 0.0
    %1248 = vmatprep.subr.mxu0 0.0
    %1249 = vmatpush1.msra.mxu0 0.0
    %1250 = vmatprep.subr.mxu0 0.0
    %1251 = vmatpush1.msra.mxu0 0.0
    %1252 = vmatprep.mubr.f32.mxu0 0.0
    %1253 = vmatmul.mubr.f32.gmra.mrb[0].mxu0 %v1186
    %v1254 = vpop.f32.mrb[0].mxu0
    %v1255 = vadd.f32 0.0, %v1254
    %v1256 = vpop.f32.mrb[0].mxu0
    %1257 = vdwg.mxu0
    %v1258 = vadd.f32 %v1183, %v1255
    %v1259 = vmul.f32 %v1258, 0.5
    %v1260 = vtanh.pop %v1259
    %v1261 = vmul.f32 %v1260, 0.5
    %v1262 = vadd.f32 %v1261, 0.5
    %v1263 = vmul.f32 %v1262, %v1000
    %1265 = vrot.lane.b32.xlu0 %v1260, 64
    %v1266 = vpop.permute.xlu0 %1265
    %v1268 = vmul.f32 %v1262, %v1266
    %1270 = vrot.lane.b32.xlu0 %v1268, 32
    %v1271 = vpop.permute.xlu0 %1270
    %v1273 = vadd.f32 %v1263, %v1271
    %v1274 = vtanh.pop %v1273
    %1276 = vrot.lane.b32.xlu0 %v1274, 64
    %v1277 = vpop.permute.xlu0 %1276
    %v1279 = vmul.f32 %v1262, %v1277
    %1281 = vrot.lane.b32.xlu0 %v1279, 32
    %v1282 = vpop.permute.xlu0 %1281
    %1284 = vst.msk [vmem:[#allocation2 + $0x6] sm:$0x3] %vm464, %v1282
    %1285 = vmatprep.subr.mxu0 0.0
    %1286 = vmatpush1.msra.mxu0 %v324
    %1287 = vmatprep.subr.mxu0 0.0
    %1288 = vmatpush1.msra.mxu0 %v325
    %1289 = vmatprep.subr.mxu0 0.0
    %1290 = vmatpush1.msra.mxu0 %v326
    %1291 = vmatprep.subr.mxu0 0.0
    %1292 = vmatpush1.msra.mxu0 %v327
    %1293 = vmatprep.subr.mxu0 0.0
    %1294 = vmatpush1.msra.mxu0 0.0
    %1295 = vmatprep.subr.mxu0 0.0
    %1296 = vmatpush1.msra.mxu0 0.0
    %1297 = vmatprep.subr.mxu0 0.0
    %1298 = vmatpush1.msra.mxu0 0.0
    %1299 = vmatprep.subr.mxu0 0.0
    %1300 = vmatpush1.msra.mxu0 0.0
    %1301 = vmatprep.subr.mxu0 0.0
    %1302 = vmatpush1.msra.mxu0 0.0
    %1303 = vmatprep.subr.mxu0 0.0
    %1304 = vmatpush1.msra.mxu0 0.0
    %1305 = vmatprep.subr.mxu0 0.0
    %1306 = vmatpush1.msra.mxu0 0.0
    %1307 = vmatprep.subr.mxu0 0.0
    %1308 = vmatpush1.msra.mxu0 0.0
    %1309 = vmatprep.subr.mxu0 0.0
    %1310 = vmatpush1.msra.mxu0 0.0
    %1311 = vmatprep.subr.mxu0 0.0
    %1312 = vmatpush1.msra.mxu0 0.0
    %1313 = vmatprep.subr.mxu0 0.0
    %1314 = vmatpush1.msra.mxu0 0.0
    %1315 = vmatprep.subr.mxu0 0.0
    %1316 = vmatpush1.msra.mxu0 0.0
    %1317 = vmatprep.subr.mxu0 0.0
    %1318 = vmatpush1.msra.mxu0 0.0
    %1319 = vmatprep.subr.mxu0 0.0
    %1320 = vmatpush1.msra.mxu0 0.0
    %1321 = vmatprep.subr.mxu0 0.0
    %1322 = vmatpush1.msra.mxu0 0.0
    %1323 = vmatprep.subr.mxu0 0.0
    %1324 = vmatpush1.msra.mxu0 0.0
    %1325 = vmatprep.subr.mxu0 0.0
    %1326 = vmatpush1.msra.mxu0 0.0
    %1327 = vmatprep.subr.mxu0 0.0
    %1328 = vmatpush1.msra.mxu0 0.0
    %1329 = vmatprep.subr.mxu0 0.0
    %1330 = vmatpush1.msra.mxu0 0.0
    %1331 = vmatprep.subr.mxu0 0.0
    %1332 = vmatpush1.msra.mxu0 0.0
    %1333 = vmatprep.subr.mxu0 0.0
    %1334 = vmatpush1.msra.mxu0 0.0
    %1335 = vmatprep.subr.mxu0 0.0
    %1336 = vmatpush1.msra.mxu0 0.0
    %1337 = vmatprep.subr.mxu0 0.0
    %1338 = vmatpush1.msra.mxu0 0.0
    %1339 = vmatprep.subr.mxu0 0.0
    %1340 = vmatpush1.msra.mxu0 0.0
    %1341 = vmatprep.subr.mxu0 0.0
    %1342 = vmatpush1.msra.mxu0 0.0
    %1343 = vmatprep.subr.mxu0 0.0
    %1344 = vmatpush1.msra.mxu0 0.0
    %1345 = vmatprep.subr.mxu0 0.0
    %1346 = vmatpush1.msra.mxu0 0.0
    %1347 = vmatprep.subr.mxu0 0.0
    %1348 = vmatpush1.msra.mxu0 0.0
    %1349 = vmatprep.mubr.f32.mxu0 0.0
    %1350 = vmatmul.mubr.f32.gmra.mrb[0].mxu0 %v1114
    %v1351 = vpop.f32.mrb[0].mxu0
    %v1352 = vadd.f32 0.0, %v1351
    %v1353 = vpop.f32.mrb[0].mxu0
    %1354 = vdwg.mxu0
    %v1355 = vadd.f32 %v321, %v1352
    %v1356 = vmul.f32 %v1355, 0.5
    %v1357 = vtanh.pop %v1356
    %v1358 = vmul.f32 %v1357, 0.5
    %v1359 = vadd.f32 %v1358, 0.5
    %v1361 = vrot.slane %v1103, 6
    %v1363 = vmul.f32 %v1359, %v1361
    %1365 = vrot.lane.b32.xlu0 %v1357, 64
    %v1366 = vpop.permute.xlu0 %1365
    %v1368 = vmul.f32 %v1359, %v1366
    %1370 = vrot.lane.b32.xlu0 %v1368, 32
    %v1371 = vpop.permute.xlu0 %1370
    %v1373 = vadd.f32 %v1363, %v1371
    %v1374 = vtanh.pop %v1373
    %1376 = vrot.lane.b32.xlu0 %v1374, 64
    %v1377 = vpop.permute.xlu0 %1376
    %v1379 = vmul.f32 %v1359, %v1377
    %1381 = vrot.lane.b32.xlu0 %v1379, 32
    %v1382 = vpop.permute.xlu0 %1381
    %v1383 = vsel %vm242, %v1382, 0
    %1385 = vmatprep.subr.mxu0 0.0
    %1386 = vmatpush1.msra.mxu0 %v328
    %1387 = vmatprep.subr.mxu0 0.0
    %1388 = vmatpush1.msra.mxu0 %v329
    %1389 = vmatprep.subr.mxu0 0.0
    %1390 = vmatpush1.msra.mxu0 %v330
    %1391 = vmatprep.subr.mxu0 0.0
    %1392 = vmatpush1.msra.mxu0 %v331
    %1393 = vmatprep.subr.mxu0 0.0
    %1394 = vmatpush1.msra.mxu0 0.0
    %1395 = vmatprep.subr.mxu0 0.0
    %1396 = vmatpush1.msra.mxu0 0.0
    %1397 = vmatprep.subr.mxu0 0.0
    %1398 = vmatpush1.msra.mxu0 0.0
    %1399 = vmatprep.subr.mxu0 0.0
    %1400 = vmatpush1.msra.mxu0 0.0
    %1401 = vmatprep.subr.mxu0 0.0
    %1402 = vmatpush1.msra.mxu0 0.0
    %1403 = vmatprep.subr.mxu0 0.0
    %1404 = vmatpush1.msra.mxu0 0.0
    %1405 = vmatprep.subr.mxu0 0.0
    %1406 = vmatpush1.msra.mxu0 0.0
    %1407 = vmatprep.subr.mxu0 0.0
    %1408 = vmatpush1.msra.mxu0 0.0
    %1409 = vmatprep.subr.mxu0 0.0
    %1410 = vmatpush1.msra.mxu0 0.0
    %1411 = vmatprep.subr.mxu0 0.0
    %1412 = vmatpush1.msra.mxu0 0.0
    %1413 = vmatprep.subr.mxu0 0.0
    %1414 = vmatpush1.msra.mxu0 0.0
    %1415 = vmatprep.subr.mxu0 0.0
    %1416 = vmatpush1.msra.mxu0 0.0
    %1417 = vmatprep.subr.mxu0 0.0
    %1418 = vmatpush1.msra.mxu0 0.0
    %1419 = vmatprep.subr.mxu0 0.0
    %1420 = vmatpush1.msra.mxu0 0.0
    %1421 = vmatprep.subr.mxu0 0.0
    %1422 = vmatpush1.msra.mxu0 0.0
    %1423 = vmatprep.subr.mxu0 0.0
    %1424 = vmatpush1.msra.mxu0 0.0
    %1425 = vmatprep.subr.mxu0 0.0
    %1426 = vmatpush1.msra.mxu0 0.0
    %1427 = vmatprep.subr.mxu0 0.0
    %1428 = vmatpush1.msra.mxu0 0.0
    %1429 = vmatprep.subr.mxu0 0.0
    %1430 = vmatpush1.msra.mxu0 0.0
    %1431 = vmatprep.subr.mxu0 0.0
    %1432 = vmatpush1.msra.mxu0 0.0
    %1433 = vmatprep.subr.mxu0 0.0
    %1434 = vmatpush1.msra.mxu0 0.0
    %1435 = vmatprep.subr.mxu0 0.0
    %1436 = vmatpush1.msra.mxu0 0.0
    %1437 = vmatprep.subr.mxu0 0.0
    %1438 = vmatpush1.msra.mxu0 0.0
    %1439 = vmatprep.subr.mxu0 0.0
    %1440 = vmatpush1.msra.mxu0 0.0
    %1441 = vmatprep.subr.mxu0 0.0
    %1442 = vmatpush1.msra.mxu0 0.0
    %1443 = vmatprep.subr.mxu0 0.0
    %1444 = vmatpush1.msra.mxu0 0.0
    %1445 = vmatprep.subr.mxu0 0.0
    %1446 = vmatpush1.msra.mxu0 0.0
    %1447 = vmatprep.subr.mxu0 0.0
    %1448 = vmatpush1.msra.mxu0 0.0
    %1449 = vmatprep.mubr.f32.mxu0 0.0
    %1450 = vmatmul.mubr.f32.gmra.mrb[0].mxu0 %v1383
    %v1451 = vpop.f32.mrb[0].mxu0
    %v1452 = vadd.f32 %v362, %v1451
    %v1453 = vpop.f32.mrb[0].mxu0
    %1454 = vdwg.mxu0
    %v1455 = vsel %vm242, %v1282, 0
    %1457 = vmatprep.subr.mxu0 0.0
    %1458 = vmatpush1.msra.mxu0 %v332
    %1459 = vmatprep.subr.mxu0 0.0
    %1460 = vmatpush1.msra.mxu0 %v333
    %1461 = vmatprep.subr.mxu0 0.0
    %1462 = vmatpush1.msra.mxu0 %v334
    %1463 = vmatprep.subr.mxu0 0.0
    %1464 = vmatpush1.msra.mxu0 %v335
    %1465 = vmatprep.subr.mxu0 0.0
    %1466 = vmatpush1.msra.mxu0 0.0
    %1467 = vmatprep.subr.mxu0 0.0
    %1468 = vmatpush1.msra.mxu0 0.0
    %1469 = vmatprep.subr.mxu0 0.0
    %1470 = vmatpush1.msra.mxu0 0.0
    %1471 = vmatprep.subr.mxu0 0.0
    %1472 = vmatpush1.msra.mxu0 0.0
    %1473 = vmatprep.subr.mxu0 0.0
    %1474 = vmatpush1.msra.mxu0 0.0
    %1475 = vmatprep.subr.mxu0 0.0
    %1476 = vmatpush1.msra.mxu0 0.0
    %1477 = vmatprep.subr.mxu0 0.0
    %1478 = vmatpush1.msra.mxu0 0.0
    %1479 = vmatprep.subr.mxu0 0.0
    %1480 = vmatpush1.msra.mxu0 0.0
    %1481 = vmatprep.subr.mxu0 0.0
    %1482 = vmatpush1.msra.mxu0 0.0
    %1483 = vmatprep.subr.mxu0 0.0
    %1484 = vmatpush1.msra.mxu0 0.0
    %1485 = vmatprep.subr.mxu0 0.0
    %1486 = vmatpush1.msra.mxu0 0.0
    %1487 = vmatprep.subr.mxu0 0.0
    %1488 = vmatpush1.msra.mxu0 0.0
    %1489 = vmatprep.subr.mxu0 0.0
    %1490 = vmatpush1.msra.mxu0 0.0
    %1491 = vmatprep.subr.mxu0 0.0
    %1492 = vmatpush1.msra.mxu0 0.0
    %1493 = vmatprep.subr.mxu0 0.0
    %1494 = vmatpush1.msra.mxu0 0.0
    %1495 = vmatprep.subr.mxu0 0.0
    %1496 = vmatpush1.msra.mxu0 0.0
    %1497 = vmatprep.subr.mxu0 0.0
    %1498 = vmatpush1.msra.mxu0 0.0
    %1499 = vmatprep.subr.mxu0 0.0
    %1500 = vmatpush1.msra.mxu0 0.0
    %1501 = vmatprep.subr.mxu0 0.0
    %1502 = vmatpush1.msra.mxu0 0.0
    %1503 = vmatprep.subr.mxu0 0.0
    %1504 = vmatpush1.msra.mxu0 0.0
    %1505 = vmatprep.subr.mxu0 0.0
    %1506 = vmatpush1.msra.mxu0 0.0
    %1507 = vmatprep.subr.mxu0 0.0
    %1508 = vmatpush1.msra.mxu0 0.0
    %1509 = vmatprep.subr.mxu0 0.0
    %1510 = vmatpush1.msra.mxu0 0.0
    %1511 = vmatprep.subr.mxu0 0.0
    %1512 = vmatpush1.msra.mxu0 0.0
    %1513 = vmatprep.subr.mxu0 0.0
    %1514 = vmatpush1.msra.mxu0 0.0
    %1515 = vmatprep.subr.mxu0 0.0
    %1516 = vmatpush1.msra.mxu0 0.0
    %1517 = vmatprep.subr.mxu0 0.0
    %1518 = vmatpush1.msra.mxu0 0.0
    %1519 = vmatprep.subr.mxu0 0.0
    %1520 = vmatpush1.msra.mxu0 0.0
    %1521 = vmatprep.mubr.f32.mxu0 0.0
    %1522 = vmatmul.mubr.f32.gmra.mrb[0].mxu0 %v1455
    %v1523 = vpop.f32.mrb[0].mxu0
    %v1524 = vadd.f32 0.0, %v1523
    %v1525 = vpop.f32.mrb[0].mxu0
    %1526 = vdwg.mxu0
    %v1527 = vadd.f32 %v1452, %v1524
    %v1528 = vmul.f32 %v1527, 0.5
    %v1529 = vtanh.pop %v1528
    %v1530 = vmul.f32 %v1529, 0.5
    %v1531 = vadd.f32 %v1530, 0.5
    %v1532 = vmul.f32 %v1531, %v1273
    %1534 = vrot.lane.b32.xlu0 %v1529, 64
    %v1535 = vpop.permute.xlu0 %1534
    %v1537 = vmul.f32 %v1531, %v1535
    %1539 = vrot.lane.b32.xlu0 %v1537, 32
    %v1540 = vpop.permute.xlu0 %1539
    %v1542 = vadd.f32 %v1532, %v1540
    %v1543 = vtanh.pop %v1542
    %1545 = vrot.lane.b32.xlu0 %v1543, 64
    %v1546 = vpop.permute.xlu0 %1545
    %v1548 = vmul.f32 %v1531, %v1546
    %1550 = vrot.lane.b32.xlu0 %v1548, 32
    %v1551 = vpop.permute.xlu0 %1550
    %1553 = vst.msk [vmem:[#allocation2 + $0x8] sm:$0x3] %vm464, %v1551
    %1554 = vmatprep.subr.mxu0 0.0
    %1555 = vmatpush1.msra.mxu0 %v324
    %1556 = vmatprep.subr.mxu0 0.0
    %1557 = vmatpush1.msra.mxu0 %v325
    %1558 = vmatprep.subr.mxu0 0.0
    %1559 = vmatpush1.msra.mxu0 %v326
    %1560 = vmatprep.subr.mxu0 0.0
    %1561 = vmatpush1.msra.mxu0 %v327
    %1562 = vmatprep.subr.mxu0 0.0
    %1563 = vmatpush1.msra.mxu0 0.0
    %1564 = vmatprep.subr.mxu0 0.0
    %1565 = vmatpush1.msra.mxu0 0.0
    %1566 = vmatprep.subr.mxu0 0.0
    %1567 = vmatpush1.msra.mxu0 0.0
    %1568 = vmatprep.subr.mxu0 0.0
    %1569 = vmatpush1.msra.mxu0 0.0
    %1570 = vmatprep.subr.mxu0 0.0
    %1571 = vmatpush1.msra.mxu0 0.0
    %1572 = vmatprep.subr.mxu0 0.0
    %1573 = vmatpush1.msra.mxu0 0.0
    %1574 = vmatprep.subr.mxu0 0.0
    %1575 = vmatpush1.msra.mxu0 0.0
    %1576 = vmatprep.subr.mxu0 0.0
    %1577 = vmatpush1.msra.mxu0 0.0
    %1578 = vmatprep.subr.mxu0 0.0
    %1579 = vmatpush1.msra.mxu0 0.0
    %1580 = vmatprep.subr.mxu0 0.0
    %1581 = vmatpush1.msra.mxu0 0.0
    %1582 = vmatprep.subr.mxu0 0.0
    %1583 = vmatpush1.msra.mxu0 0.0
    %1584 = vmatprep.subr.mxu0 0.0
    %1585 = vmatpush1.msra.mxu0 0.0
    %1586 = vmatprep.subr.mxu0 0.0
    %1587 = vmatpush1.msra.mxu0 0.0
    %1588 = vmatprep.subr.mxu0 0.0
    %1589 = vmatpush1.msra.mxu0 0.0
    %1590 = vmatprep.subr.mxu0 0.0
    %1591 = vmatpush1.msra.mxu0 0.0
    %1592 = vmatprep.subr.mxu0 0.0
    %1593 = vmatpush1.msra.mxu0 0.0
    %1594 = vmatprep.subr.mxu0 0.0
    %1595 = vmatpush1.msra.mxu0 0.0
    %1596 = vmatprep.subr.mxu0 0.0
    %1597 = vmatpush1.msra.mxu0 0.0
    %1598 = vmatprep.subr.mxu0 0.0
    %1599 = vmatpush1.msra.mxu0 0.0
    %1600 = vmatprep.subr.mxu0 0.0
    %1601 = vmatpush1.msra.mxu0 0.0
    %1602 = vmatprep.subr.mxu0 0.0
    %1603 = vmatpush1.msra.mxu0 0.0
    %1604 = vmatprep.subr.mxu0 0.0
    %1605 = vmatpush1.msra.mxu0 0.0
    %1606 = vmatprep.subr.mxu0 0.0
    %1607 = vmatpush1.msra.mxu0 0.0
    %1608 = vmatprep.subr.mxu0 0.0
    %1609 = vmatpush1.msra.mxu0 0.0
    %1610 = vmatprep.subr.mxu0 0.0
    %1611 = vmatpush1.msra.mxu0 0.0
    %1612 = vmatprep.subr.mxu0 0.0
    %1613 = vmatpush1.msra.mxu0 0.0
    %1614 = vmatprep.subr.mxu0 0.0
    %1615 = vmatpush1.msra.mxu0 0.0
    %1616 = vmatprep.subr.mxu0 0.0
    %1617 = vmatpush1.msra.mxu0 0.0
    %1618 = vmatprep.mubr.f32.mxu0 0.0
    %1619 = vmatmul.mubr.f32.gmra.mrb[0].mxu0 %v1383
    %v1620 = vpop.f32.mrb[0].mxu0
    %v1621 = vadd.f32 0.0, %v1620
    %v1622 = vpop.f32.mrb[0].mxu0
    %1623 = vdwg.mxu0
    %v1625 = vrot.slane %v1621, 6
    %v1627 = vadd.f32 %v321, %v1625
    %v1628 = vmul.f32 %v1627, 0.5
    %v1629 = vtanh.pop %v1628
    %v1630 = vmul.f32 %v1629, 0.5
    %v1631 = vadd.f32 %v1630, 0.5
    %v1633 = vrot.slane %v1373, 6
    %v1635 = vmul.f32 %v1631, %v1633
    %1637 = vrot.lane.b32.xlu0 %v1629, 64
    %v1638 = vpop.permute.xlu0 %1637
    %v1640 = vmul.f32 %v1631, %v1638
    %1642 = vrot.lane.b32.xlu0 %v1640, 32
    %v1643 = vpop.permute.xlu0 %1642
    %v1645 = vadd.f32 %v1635, %v1643
    %v1646 = vtanh.pop %v1645
    %1648 = vrot.lane.b32.xlu0 %v1646, 64
    %v1649 = vpop.permute.xlu0 %1648
    %v1651 = vmul.f32 %v1631, %v1649
    %v1653 = vrot.slane %v1651, 2
    %1654 = vrot.lane.b32.xlu0 %v1653, 32
    %v1655 = vpop.permute.xlu0 %1654
    %v1656 = vsel %vm242, %v1655, 0
    %1658 = vmatprep.subr.mxu0 0.0
    %1659 = vmatpush1.msra.mxu0 %v328
    %1660 = vmatprep.subr.mxu0 0.0
    %1661 = vmatpush1.msra.mxu0 %v329
    %1662 = vmatprep.subr.mxu0 0.0
    %1663 = vmatpush1.msra.mxu0 %v330
    %1664 = vmatprep.subr.mxu0 0.0
    %1665 = vmatpush1.msra.mxu0 %v331
    %1666 = vmatprep.subr.mxu0 0.0
    %1667 = vmatpush1.msra.mxu0 0.0
    %1668 = vmatprep.subr.mxu0 0.0
    %1669 = vmatpush1.msra.mxu0 0.0
    %1670 = vmatprep.subr.mxu0 0.0
    %1671 = vmatpush1.msra.mxu0 0.0
    %1672 = vmatprep.subr.mxu0 0.0
    %1673 = vmatpush1.msra.mxu0 0.0
    %1674 = vmatprep.subr.mxu0 0.0
    %1675 = vmatpush1.msra.mxu0 0.0
    %1676 = vmatprep.subr.mxu0 0.0
    %1677 = vmatpush1.msra.mxu0 0.0
    %1678 = vmatprep.subr.mxu0 0.0
    %1679 = vmatpush1.msra.mxu0 0.0
    %1680 = vmatprep.subr.mxu0 0.0
    %1681 = vmatpush1.msra.mxu0 0.0
    %1682 = vmatprep.subr.mxu0 0.0
    %1683 = vmatpush1.msra.mxu0 0.0
    %1684 = vmatprep.subr.mxu0 0.0
    %1685 = vmatpush1.msra.mxu0 0.0
    %1686 = vmatprep.subr.mxu0 0.0
    %1687 = vmatpush1.msra.mxu0 0.0
    %1688 = vmatprep.subr.mxu0 0.0
    %1689 = vmatpush1.msra.mxu0 0.0
    %1690 = vmatprep.subr.mxu0 0.0
    %1691 = vmatpush1.msra.mxu0 0.0
    %1692 = vmatprep.subr.mxu0 0.0
    %1693 = vmatpush1.msra.mxu0 0.0
    %1694 = vmatprep.subr.mxu0 0.0
    %1695 = vmatpush1.msra.mxu0 0.0
    %1696 = vmatprep.subr.mxu0 0.0
    %1697 = vmatpush1.msra.mxu0 0.0
    %1698 = vmatprep.subr.mxu0 0.0
    %1699 = vmatpush1.msra.mxu0 0.0
    %1700 = vmatprep.subr.mxu0 0.0
    %1701 = vmatpush1.msra.mxu0 0.0
    %1702 = vmatprep.subr.mxu0 0.0
    %1703 = vmatpush1.msra.mxu0 0.0
    %1704 = vmatprep.subr.mxu0 0.0
    %1705 = vmatpush1.msra.mxu0 0.0
    %1706 = vmatprep.subr.mxu0 0.0
    %1707 = vmatpush1.msra.mxu0 0.0
    %1708 = vmatprep.subr.mxu0 0.0
    %1709 = vmatpush1.msra.mxu0 0.0
    %1710 = vmatprep.subr.mxu0 0.0
    %1711 = vmatpush1.msra.mxu0 0.0
    %1712 = vmatprep.subr.mxu0 0.0
    %1713 = vmatpush1.msra.mxu0 0.0
    %1714 = vmatprep.subr.mxu0 0.0
    %1715 = vmatpush1.msra.mxu0 0.0
    %1716 = vmatprep.subr.mxu0 0.0
    %1717 = vmatpush1.msra.mxu0 0.0
    %1718 = vmatprep.subr.mxu0 0.0
    %1719 = vmatpush1.msra.mxu0 0.0
    %1720 = vmatprep.subr.mxu0 0.0
    %1721 = vmatpush1.msra.mxu0 0.0
    %1722 = vmatprep.mubr.f32.mxu0 0.0
    %1723 = vmatmul.mubr.f32.gmra.mrb[0].mxu0 %v1656
    %v1724 = vpop.f32.mrb[0].mxu0
    %v1725 = vadd.f32 %v362, %v1724
    %v1726 = vpop.f32.mrb[0].mxu0
    %1727 = vdwg.mxu0
    %v1728 = vsel %vm242, %v1551, 0
    %1730 = vmatprep.subr.mxu0 0.0
    %1731 = vmatpush1.msra.mxu0 %v332
    %1732 = vmatprep.subr.mxu0 0.0
    %1733 = vmatpush1.msra.mxu0 %v333
    %1734 = vmatprep.subr.mxu0 0.0
    %1735 = vmatpush1.msra.mxu0 %v334
    %1736 = vmatprep.subr.mxu0 0.0
    %1737 = vmatpush1.msra.mxu0 %v335
    %1738 = vmatprep.subr.mxu0 0.0
    %1739 = vmatpush1.msra.mxu0 0.0
    %1740 = vmatprep.subr.mxu0 0.0
    %1741 = vmatpush1.msra.mxu0 0.0
    %1742 = vmatprep.subr.mxu0 0.0
    %1743 = vmatpush1.msra.mxu0 0.0
    %1744 = vmatprep.subr.mxu0 0.0
    %1745 = vmatpush1.msra.mxu0 0.0
    %1746 = vmatprep.subr.mxu0 0.0
    %1747 = vmatpush1.msra.mxu0 0.0
    %1748 = vmatprep.subr.mxu0 0.0
    %1749 = vmatpush1.msra.mxu0 0.0
    %1750 = vmatprep.subr.mxu0 0.0
    %1751 = vmatpush1.msra.mxu0 0.0
    %1752 = vmatprep.subr.mxu0 0.0
    %1753 = vmatpush1.msra.mxu0 0.0
    %1754 = vmatprep.subr.mxu0 0.0
    %1755 = vmatpush1.msra.mxu0 0.0
    %1756 = vmatprep.subr.mxu0 0.0
    %1757 = vmatpush1.msra.mxu0 0.0
    %1758 = vmatprep.subr.mxu0 0.0
    %1759 = vmatpush1.msra.mxu0 0.0
    %1760 = vmatprep.subr.mxu0 0.0
    %1761 = vmatpush1.msra.mxu0 0.0
    %1762 = vmatprep.subr.mxu0 0.0
    %1763 = vmatpush1.msra.mxu0 0.0
    %1764 = vmatprep.subr.mxu0 0.0
    %1765 = vmatpush1.msra.mxu0 0.0
    %1766 = vmatprep.subr.mxu0 0.0
    %1767 = vmatpush1.msra.mxu0 0.0
    %1768 = vmatprep.subr.mxu0 0.0
    %1769 = vmatpush1.msra.mxu0 0.0
    %1770 = vmatprep.subr.mxu0 0.0
    %1771 = vmatpush1.msra.mxu0 0.0
    %1772 = vmatprep.subr.mxu0 0.0
    %1773 = vmatpush1.msra.mxu0 0.0
    %1774 = vmatprep.subr.mxu0 0.0
    %1775 = vmatpush1.msra.mxu0 0.0
    %1776 = vmatprep.subr.mxu0 0.0
    %1777 = vmatpush1.msra.mxu0 0.0
    %1778 = vmatprep.subr.mxu0 0.0
    %1779 = vmatpush1.msra.mxu0 0.0
    %1780 = vmatprep.subr.mxu0 0.0
    %1781 = vmatpush1.msra.mxu0 0.0
    %1782 = vmatprep.subr.mxu0 0.0
    %1783 = vmatpush1.msra.mxu0 0.0
    %1784 = vmatprep.subr.mxu0 0.0
    %1785 = vmatpush1.msra.mxu0 0.0
    %1786 = vmatprep.subr.mxu0 0.0
    %1787 = vmatpush1.msra.mxu0 0.0
    %1788 = vmatprep.subr.mxu0 0.0
    %1789 = vmatpush1.msra.mxu0 0.0
    %1790 = vmatprep.subr.mxu0 0.0
    %1791 = vmatpush1.msra.mxu0 0.0
    %1792 = vmatprep.subr.mxu0 0.0
    %1793 = vmatpush1.msra.mxu0 0.0
    %1794 = vmatprep.mubr.f32.mxu0 0.0
    %1795 = vmatmul.mubr.f32.gmra.mrb[0].mxu0 %v1728
    %v1796 = vpop.f32.mrb[0].mxu0
    %v1797 = vadd.f32 0.0, %v1796
    %v1798 = vpop.f32.mrb[0].mxu0
    %1799 = vdwg.mxu0
    %v1800 = vadd.f32 %v1725, %v1797
    %v1801 = vmul.f32 %v1800, 0.5
    %v1802 = vtanh.pop %v1801
    %v1803 = vmul.f32 %v1802, 0.5
    %v1804 = vadd.f32 %v1803, 0.5
    %v1805 = vmul.f32 %v1804, %v1542
    %1807 = vrot.lane.b32.xlu0 %v1802, 64
    %v1808 = vpop.permute.xlu0 %1807
    %v1810 = vmul.f32 %v1804, %v1808
    %1812 = vrot.lane.b32.xlu0 %v1810, 32
    %v1813 = vpop.permute.xlu0 %1812
    %v1815 = vadd.f32 %v1805, %v1813
    %v1816 = vtanh.pop %v1815
    %1818 = vrot.lane.b32.xlu0 %v1816, 64
    %v1819 = vpop.permute.xlu0 %1818
    %v1821 = vmul.f32 %v1804, %v1819
    %1823 = vrot.lane.b32.xlu0 %v1821, 32
    %v1824 = vpop.permute.xlu0 %1823
    %1826 = vst.msk [vmem:[#allocation2 + $0xa] sm:$0x3] %vm464, %v1824
    %1827 = vmatprep.subr.mxu0 0.0
    %1828 = vmatpush1.msra.mxu0 %v324
    %1829 = vmatprep.subr.mxu0 0.0
    %1830 = vmatpush1.msra.mxu0 %v325
    %1831 = vmatprep.subr.mxu0 0.0
    %1832 = vmatpush1.msra.mxu0 %v326
    %1833 = vmatprep.subr.mxu0 0.0
    %1834 = vmatpush1.msra.mxu0 %v327
    %1835 = vmatprep.subr.mxu0 0.0
    %1836 = vmatpush1.msra.mxu0 0.0
    %1837 = vmatprep.subr.mxu0 0.0
    %1838 = vmatpush1.msra.mxu0 0.0
    %1839 = vmatprep.subr.mxu0 0.0
    %1840 = vmatpush1.msra.mxu0 0.0
    %1841 = vmatprep.subr.mxu0 0.0
    %1842 = vmatpush1.msra.mxu0 0.0
    %1843 = vmatprep.subr.mxu0 0.0
    %1844 = vmatpush1.msra.mxu0 0.0
    %1845 = vmatprep.subr.mxu0 0.0
    %1846 = vmatpush1.msra.mxu0 0.0
    %1847 = vmatprep.subr.mxu0 0.0
    %1848 = vmatpush1.msra.mxu0 0.0
    %1849 = vmatprep.subr.mxu0 0.0
    %1850 = vmatpush1.msra.mxu0 0.0
    %1851 = vmatprep.subr.mxu0 0.0
    %1852 = vmatpush1.msra.mxu0 0.0
    %1853 = vmatprep.subr.mxu0 0.0
    %1854 = vmatpush1.msra.mxu0 0.0
    %1855 = vmatprep.subr.mxu0 0.0
    %1856 = vmatpush1.msra.mxu0 0.0
    %1857 = vmatprep.subr.mxu0 0.0
    %1858 = vmatpush1.msra.mxu0 0.0
    %1859 = vmatprep.subr.mxu0 0.0
    %1860 = vmatpush1.msra.mxu0 0.0
    %1861 = vmatprep.subr.mxu0 0.0
    %1862 = vmatpush1.msra.mxu0 0.0
    %1863 = vmatprep.subr.mxu0 0.0
    %1864 = vmatpush1.msra.mxu0 0.0
    %1865 = vmatprep.subr.mxu0 0.0
    %1866 = vmatpush1.msra.mxu0 0.0
    %1867 = vmatprep.subr.mxu0 0.0
    %1868 = vmatpush1.msra.mxu0 0.0
    %1869 = vmatprep.subr.mxu0 0.0
    %1870 = vmatpush1.msra.mxu0 0.0
    %1871 = vmatprep.subr.mxu0 0.0
    %1872 = vmatpush1.msra.mxu0 0.0
    %1873 = vmatprep.subr.mxu0 0.0
    %1874 = vmatpush1.msra.mxu0 0.0
    %1875 = vmatprep.subr.mxu0 0.0
    %1876 = vmatpush1.msra.mxu0 0.0
    %1877 = vmatprep.subr.mxu0 0.0
    %1878 = vmatpush1.msra.mxu0 0.0
    %1879 = vmatprep.subr.mxu0 0.0
    %1880 = vmatpush1.msra.mxu0 0.0
    %1881 = vmatprep.subr.mxu0 0.0
    %1882 = vmatpush1.msra.mxu0 0.0
    %1883 = vmatprep.subr.mxu0 0.0
    %1884 = vmatpush1.msra.mxu0 0.0
    %1885 = vmatprep.subr.mxu0 0.0
    %1886 = vmatpush1.msra.mxu0 0.0
    %1887 = vmatprep.subr.mxu0 0.0
    %1888 = vmatpush1.msra.mxu0 0.0
    %1889 = vmatprep.subr.mxu0 0.0
    %1890 = vmatpush1.msra.mxu0 0.0
    %1891 = vmatprep.mubr.f32.mxu0 0.0
    %1892 = vmatmul.mubr.f32.gmra.mrb[0].mxu0 %v1656
    %v1893 = vpop.f32.mrb[0].mxu0
    %v1894 = vadd.f32 0.0, %v1893
    %v1895 = vpop.f32.mrb[0].mxu0
    %1896 = vdwg.mxu0
    %v1898 = vrot.slane %v1894, 4
    %v1900 = vadd.f32 %v321, %v1898
    %v1901 = vmul.f32 %v1900, 0.5
    %v1902 = vtanh.pop %v1901
    %v1903 = vmul.f32 %v1902, 0.5
    %v1904 = vadd.f32 %v1903, 0.5
    %v1906 = vrot.slane %v1645, 6
    %v1908 = vmul.f32 %v1904, %v1906
    %1910 = vrot.lane.b32.xlu0 %v1902, 64
    %v1911 = vpop.permute.xlu0 %1910
    %v1913 = vmul.f32 %v1904, %v1911
    %1915 = vrot.lane.b32.xlu0 %v1913, 32
    %v1916 = vpop.permute.xlu0 %1915
    %v1918 = vadd.f32 %v1908, %v1916
    %v1919 = vtanh.pop %v1918
    %1921 = vrot.lane.b32.xlu0 %v1919, 64
    %v1922 = vpop.permute.xlu0 %1921
    %v1924 = vmul.f32 %v1904, %v1922
    %v1926 = vrot.slane %v1924, 4
    %1927 = vrot.lane.b32.xlu0 %v1926, 32
    %v1928 = vpop.permute.xlu0 %1927
    %v1929 = vsel %vm242, %v1928, 0
    %1931 = vmatprep.subr.mxu0 0.0
    %1932 = vmatpush1.msra.mxu0 %v328
    %1933 = vmatprep.subr.mxu0 0.0
    %1934 = vmatpush1.msra.mxu0 %v329
    %1935 = vmatprep.subr.mxu0 0.0
    %1936 = vmatpush1.msra.mxu0 %v330
    %1937 = vmatprep.subr.mxu0 0.0
    %1938 = vmatpush1.msra.mxu0 %v331
    %1939 = vmatprep.subr.mxu0 0.0
    %1940 = vmatpush1.msra.mxu0 0.0
    %1941 = vmatprep.subr.mxu0 0.0
    %1942 = vmatpush1.msra.mxu0 0.0
    %1943 = vmatprep.subr.mxu0 0.0
    %1944 = vmatpush1.msra.mxu0 0.0
    %1945 = vmatprep.subr.mxu0 0.0
    %1946 = vmatpush1.msra.mxu0 0.0
    %1947 = vmatprep.subr.mxu0 0.0
    %1948 = vmatpush1.msra.mxu0 0.0
    %1949 = vmatprep.subr.mxu0 0.0
    %1950 = vmatpush1.msra.mxu0 0.0
    %1951 = vmatprep.subr.mxu0 0.0
    %1952 = vmatpush1.msra.mxu0 0.0
    %1953 = vmatprep.subr.mxu0 0.0
    %1954 = vmatpush1.msra.mxu0 0.0
    %1955 = vmatprep.subr.mxu0 0.0
    %1956 = vmatpush1.msra.mxu0 0.0
    %1957 = vmatprep.subr.mxu0 0.0
    %1958 = vmatpush1.msra.mxu0 0.0
    %1959 = vmatprep.subr.mxu0 0.0
    %1960 = vmatpush1.msra.mxu0 0.0
    %1961 = vmatprep.subr.mxu0 0.0
    %1962 = vmatpush1.msra.mxu0 0.0
    %1963 = vmatprep.subr.mxu0 0.0
    %1964 = vmatpush1.msra.mxu0 0.0
    %1965 = vmatprep.subr.mxu0 0.0
    %1966 = vmatpush1.msra.mxu0 0.0
    %1967 = vmatprep.subr.mxu0 0.0
    %1968 = vmatpush1.msra.mxu0 0.0
    %1969 = vmatprep.subr.mxu0 0.0
    %1970 = vmatpush1.msra.mxu0 0.0
    %1971 = vmatprep.subr.mxu0 0.0
    %1972 = vmatpush1.msra.mxu0 0.0
    %1973 = vmatprep.subr.mxu0 0.0
    %1974 = vmatpush1.msra.mxu0 0.0
    %1975 = vmatprep.subr.mxu0 0.0
    %1976 = vmatpush1.msra.mxu0 0.0
    %1977 = vmatprep.subr.mxu0 0.0
    %1978 = vmatpush1.msra.mxu0 0.0
    %1979 = vmatprep.subr.mxu0 0.0
    %1980 = vmatpush1.msra.mxu0 0.0
    %1981 = vmatprep.subr.mxu0 0.0
    %1982 = vmatpush1.msra.mxu0 0.0
    %1983 = vmatprep.subr.mxu0 0.0
    %1984 = vmatpush1.msra.mxu0 0.0
    %1985 = vmatprep.subr.mxu0 0.0
    %1986 = vmatpush1.msra.mxu0 0.0
    %1987 = vmatprep.subr.mxu0 0.0
    %1988 = vmatpush1.msra.mxu0 0.0
    %1989 = vmatprep.subr.mxu0 0.0
    %1990 = vmatpush1.msra.mxu0 0.0
    %1991 = vmatprep.subr.mxu0 0.0
    %1992 = vmatpush1.msra.mxu0 0.0
    %1993 = vmatprep.subr.mxu0 0.0
    %1994 = vmatpush1.msra.mxu0 0.0
    %1995 = vmatprep.mubr.f32.mxu0 0.0
    %1996 = vmatmul.mubr.f32.gmra.mrb[0].mxu0 %v1929
    %v1997 = vpop.f32.mrb[0].mxu0
    %v1998 = vadd.f32 %v362, %v1997
    %v1999 = vpop.f32.mrb[0].mxu0
    %2000 = vdwg.mxu0
    %v2001 = vsel %vm242, %v1824, 0
    %2003 = vmatprep.subr.mxu0 0.0
    %2004 = vmatpush1.msra.mxu0 %v332
    %2005 = vmatprep.subr.mxu0 0.0
    %2006 = vmatpush1.msra.mxu0 %v333
    %2007 = vmatprep.subr.mxu0 0.0
    %2008 = vmatpush1.msra.mxu0 %v334
    %2009 = vmatprep.subr.mxu0 0.0
    %2010 = vmatpush1.msra.mxu0 %v335
    %2011 = vmatprep.subr.mxu0 0.0
    %2012 = vmatpush1.msra.mxu0 0.0
    %2013 = vmatprep.subr.mxu0 0.0
    %2014 = vmatpush1.msra.mxu0 0.0
    %2015 = vmatprep.subr.mxu0 0.0
    %2016 = vmatpush1.msra.mxu0 0.0
    %2017 = vmatprep.subr.mxu0 0.0
    %2018 = vmatpush1.msra.mxu0 0.0
    %2019 = vmatprep.subr.mxu0 0.0
    %2020 = vmatpush1.msra.mxu0 0.0
    %2021 = vmatprep.subr.mxu0 0.0
    %2022 = vmatpush1.msra.mxu0 0.0
    %2023 = vmatprep.subr.mxu0 0.0
    %2024 = vmatpush1.msra.mxu0 0.0
    %2025 = vmatprep.subr.mxu0 0.0
    %2026 = vmatpush1.msra.mxu0 0.0
    %2027 = vmatprep.subr.mxu0 0.0
    %2028 = vmatpush1.msra.mxu0 0.0
    %2029 = vmatprep.subr.mxu0 0.0
    %2030 = vmatpush1.msra.mxu0 0.0
    %2031 = vmatprep.subr.mxu0 0.0
    %2032 = vmatpush1.msra.mxu0 0.0
    %2033 = vmatprep.subr.mxu0 0.0
    %2034 = vmatpush1.msra.mxu0 0.0
    %2035 = vmatprep.subr.mxu0 0.0
    %2036 = vmatpush1.msra.mxu0 0.0
    %2037 = vmatprep.subr.mxu0 0.0
    %2038 = vmatpush1.msra.mxu0 0.0
    %2039 = vmatprep.subr.mxu0 0.0
    %2040 = vmatpush1.msra.mxu0 0.0
    %2041 = vmatprep.subr.mxu0 0.0
    %2042 = vmatpush1.msra.mxu0 0.0
    %2043 = vmatprep.subr.mxu0 0.0
    %2044 = vmatpush1.msra.mxu0 0.0
    %2045 = vmatprep.subr.mxu0 0.0
    %2046 = vmatpush1.msra.mxu0 0.0
    %2047 = vmatprep.subr.mxu0 0.0
    %2048 = vmatpush1.msra.mxu0 0.0
    %2049 = vmatprep.subr.mxu0 0.0
    %2050 = vmatpush1.msra.mxu0 0.0
    %2051 = vmatprep.subr.mxu0 0.0
    %2052 = vmatpush1.msra.mxu0 0.0
    %2053 = vmatprep.subr.mxu0 0.0
    %2054 = vmatpush1.msra.mxu0 0.0
    %2055 = vmatprep.subr.mxu0 0.0
    %2056 = vmatpush1.msra.mxu0 0.0
    %2057 = vmatprep.subr.mxu0 0.0
    %2058 = vmatpush1.msra.mxu0 0.0
    %2059 = vmatprep.subr.mxu0 0.0
    %2060 = vmatpush1.msra.mxu0 0.0
    %2061 = vmatprep.subr.mxu0 0.0
    %2062 = vmatpush1.msra.mxu0 0.0
    %2063 = vmatprep.subr.mxu0 0.0
    %2064 = vmatpush1.msra.mxu0 0.0
    %2065 = vmatprep.subr.mxu0 0.0
    %2066 = vmatpush1.msra.mxu0 0.0
    %2067 = vmatprep.mubr.f32.mxu0 0.0
    %2068 = vmatmul.mubr.f32.gmra.mrb[0].mxu0 %v2001
    %v2069 = vpop.f32.mrb[0].mxu0
    %v2070 = vadd.f32 0.0, %v2069
    %v2071 = vpop.f32.mrb[0].mxu0
    %2072 = vdwg.mxu0
    %v2073 = vadd.f32 %v1998, %v2070
    %v2074 = vmul.f32 %v2073, 0.5
    %v2075 = vtanh.pop %v2074
    %v2076 = vmul.f32 %v2075, 0.5
    %v2077 = vadd.f32 %v2076, 0.5
    %v2078 = vmul.f32 %v2077, %v1815
    %2080 = vrot.lane.b32.xlu0 %v2075, 64
    %v2081 = vpop.permute.xlu0 %2080
    %v2083 = vmul.f32 %v2077, %v2081
    %2085 = vrot.lane.b32.xlu0 %v2083, 32
    %v2086 = vpop.permute.xlu0 %2085
    %v2088 = vadd.f32 %v2078, %v2086
    %v2089 = vtanh.pop %v2088
    %2091 = vrot.lane.b32.xlu0 %v2089, 64
    %v2092 = vpop.permute.xlu0 %2091
    %v2094 = vmul.f32 %v2077, %v2092
    %2096 = vrot.lane.b32.xlu0 %v2094, 32
    %v2097 = vpop.permute.xlu0 %2096
    %2099 = vst.msk [vmem:[#allocation2 + $0xc] sm:$0x3] %vm464, %v2097
    %2100 = vmatprep.subr.mxu0 0.0
    %2101 = vmatpush1.msra.mxu0 %v324
    %2102 = vmatprep.subr.mxu0 0.0
    %2103 = vmatpush1.msra.mxu0 %v325
    %2104 = vmatprep.subr.mxu0 0.0
    %2105 = vmatpush1.msra.mxu0 %v326
    %2106 = vmatprep.subr.mxu0 0.0
    %2107 = vmatpush1.msra.mxu0 %v327
    %2108 = vmatprep.subr.mxu0 0.0
    %2109 = vmatpush1.msra.mxu0 0.0
    %2110 = vmatprep.subr.mxu0 0.0
    %2111 = vmatpush1.msra.mxu0 0.0
    %2112 = vmatprep.subr.mxu0 0.0
    %2113 = vmatpush1.msra.mxu0 0.0
    %2114 = vmatprep.subr.mxu0 0.0
    %2115 = vmatpush1.msra.mxu0 0.0
    %2116 = vmatprep.subr.mxu0 0.0
    %2117 = vmatpush1.msra.mxu0 0.0
    %2118 = vmatprep.subr.mxu0 0.0
    %2119 = vmatpush1.msra.mxu0 0.0
    %2120 = vmatprep.subr.mxu0 0.0
    %2121 = vmatpush1.msra.mxu0 0.0
    %2122 = vmatprep.subr.mxu0 0.0
    %2123 = vmatpush1.msra.mxu0 0.0
    %2124 = vmatprep.subr.mxu0 0.0
    %2125 = vmatpush1.msra.mxu0 0.0
    %2126 = vmatprep.subr.mxu0 0.0
    %2127 = vmatpush1.msra.mxu0 0.0
    %2128 = vmatprep.subr.mxu0 0.0
    %2129 = vmatpush1.msra.mxu0 0.0
    %2130 = vmatprep.subr.mxu0 0.0
    %2131 = vmatpush1.msra.mxu0 0.0
    %2132 = vmatprep.subr.mxu0 0.0
    %2133 = vmatpush1.msra.mxu0 0.0
    %2134 = vmatprep.subr.mxu0 0.0
    %2135 = vmatpush1.msra.mxu0 0.0
    %2136 = vmatprep.subr.mxu0 0.0
    %2137 = vmatpush1.msra.mxu0 0.0
    %2138 = vmatprep.subr.mxu0 0.0
    %2139 = vmatpush1.msra.mxu0 0.0
    %2140 = vmatprep.subr.mxu0 0.0
    %2141 = vmatpush1.msra.mxu0 0.0
    %2142 = vmatprep.subr.mxu0 0.0
    %2143 = vmatpush1.msra.mxu0 0.0
    %2144 = vmatprep.subr.mxu0 0.0
    %2145 = vmatpush1.msra.mxu0 0.0
    %2146 = vmatprep.subr.mxu0 0.0
    %2147 = vmatpush1.msra.mxu0 0.0
    %2148 = vmatprep.subr.mxu0 0.0
    %2149 = vmatpush1.msra.mxu0 0.0
    %2150 = vmatprep.subr.mxu0 0.0
    %2151 = vmatpush1.msra.mxu0 0.0
    %2152 = vmatprep.subr.mxu0 0.0
    %2153 = vmatpush1.msra.mxu0 0.0
    %2154 = vmatprep.subr.mxu0 0.0
    %2155 = vmatpush1.msra.mxu0 0.0
    %2156 = vmatprep.subr.mxu0 0.0
    %2157 = vmatpush1.msra.mxu0 0.0
    %2158 = vmatprep.subr.mxu0 0.0
    %2159 = vmatpush1.msra.mxu0 0.0
    %2160 = vmatprep.subr.mxu0 0.0
    %2161 = vmatpush1.msra.mxu0 0.0
    %2162 = vmatprep.subr.mxu0 0.0
    %2163 = vmatpush1.msra.mxu0 0.0
    %2164 = vmatprep.mubr.f32.mxu0 0.0
    %2165 = vmatmul.mubr.f32.gmra.mrb[0].mxu0 %v1929
    %v2166 = vpop.f32.mrb[0].mxu0
    %v2167 = vadd.f32 0.0, %v2166
    %v2168 = vpop.f32.mrb[0].mxu0
    %2169 = vdwg.mxu0
    %v2171 = vrot.slane %v2167, 2
    %v2173 = vadd.f32 %v321, %v2171
    %v2174 = vmul.f32 %v2173, 0.5
    %v2175 = vtanh.pop %v2174
    %v2176 = vmul.f32 %v2175, 0.5
    %v2177 = vadd.f32 %v2176, 0.5
    %v2179 = vrot.slane %v1918, 6
    %v2181 = vmul.f32 %v2177, %v2179
    %2183 = vrot.lane.b32.xlu0 %v2175, 64
    %v2184 = vpop.permute.xlu0 %2183
    %v2186 = vmul.f32 %v2177, %v2184
    %2188 = vrot.lane.b32.xlu0 %v2186, 32
    %v2189 = vpop.permute.xlu0 %2188
    %v2191 = vadd.f32 %v2181, %v2189
    %v2192 = vtanh.pop %v2191
    %2194 = vrot.lane.b32.xlu0 %v2192, 64
    %v2195 = vpop.permute.xlu0 %2194
    %v2197 = vmul.f32 %v2177, %v2195
    %v2199 = vrot.slane %v2197, 6
    %2200 = vrot.lane.b32.xlu0 %v2199, 32
    %v2201 = vpop.permute.xlu0 %2200
    %v2202 = vsel %vm242, %v2201, 0
    %2204 = vmatprep.subr.mxu0 0.0
    %2205 = vmatpush1.msra.mxu0 %v328
    %2206 = vmatprep.subr.mxu0 0.0
    %2207 = vmatpush1.msra.mxu0 %v329
    %2208 = vmatprep.subr.mxu0 0.0
    %2209 = vmatpush1.msra.mxu0 %v330
    %2210 = vmatprep.subr.mxu0 0.0
    %2211 = vmatpush1.msra.mxu0 %v331
    %2212 = vmatprep.subr.mxu0 0.0
    %2213 = vmatpush1.msra.mxu0 0.0
    %2214 = vmatprep.subr.mxu0 0.0
    %2215 = vmatpush1.msra.mxu0 0.0
    %2216 = vmatprep.subr.mxu0 0.0
    %2217 = vmatpush1.msra.mxu0 0.0
    %2218 = vmatprep.subr.mxu0 0.0
    %2219 = vmatpush1.msra.mxu0 0.0
    %2220 = vmatprep.subr.mxu0 0.0
    %2221 = vmatpush1.msra.mxu0 0.0
    %2222 = vmatprep.subr.mxu0 0.0
    %2223 = vmatpush1.msra.mxu0 0.0
    %2224 = vmatprep.subr.mxu0 0.0
    %2225 = vmatpush1.msra.mxu0 0.0
    %2226 = vmatprep.subr.mxu0 0.0
    %2227 = vmatpush1.msra.mxu0 0.0
    %2228 = vmatprep.subr.mxu0 0.0
    %2229 = vmatpush1.msra.mxu0 0.0
    %2230 = vmatprep.subr.mxu0 0.0
    %2231 = vmatpush1.msra.mxu0 0.0
    %2232 = vmatprep.subr.mxu0 0.0
    %2233 = vmatpush1.msra.mxu0 0.0
    %2234 = vmatprep.subr.mxu0 0.0
    %2235 = vmatpush1.msra.mxu0 0.0
    %2236 = vmatprep.subr.mxu0 0.0
    %2237 = vmatpush1.msra.mxu0 0.0
    %2238 = vmatprep.subr.mxu0 0.0
    %2239 = vmatpush1.msra.mxu0 0.0
    %2240 = vmatprep.subr.mxu0 0.0
    %2241 = vmatpush1.msra.mxu0 0.0
    %2242 = vmatprep.subr.mxu0 0.0
    %2243 = vmatpush1.msra.mxu0 0.0
    %2244 = vmatprep.subr.mxu0 0.0
    %2245 = vmatpush1.msra.mxu0 0.0
    %2246 = vmatprep.subr.mxu0 0.0
    %2247 = vmatpush1.msra.mxu0 0.0
    %2248 = vmatprep.subr.mxu0 0.0
    %2249 = vmatpush1.msra.mxu0 0.0
    %2250 = vmatprep.subr.mxu0 0.0
    %2251 = vmatpush1.msra.mxu0 0.0
    %2252 = vmatprep.subr.mxu0 0.0
    %2253 = vmatpush1.msra.mxu0 0.0
    %2254 = vmatprep.subr.mxu0 0.0
    %2255 = vmatpush1.msra.mxu0 0.0
    %2256 = vmatprep.subr.mxu0 0.0
    %2257 = vmatpush1.msra.mxu0 0.0
    %2258 = vmatprep.subr.mxu0 0.0
    %2259 = vmatpush1.msra.mxu0 0.0
    %2260 = vmatprep.subr.mxu0 0.0
    %2261 = vmatpush1.msra.mxu0 0.0
    %2262 = vmatprep.subr.mxu0 0.0
    %2263 = vmatpush1.msra.mxu0 0.0
    %2264 = vmatprep.subr.mxu0 0.0
    %2265 = vmatpush1.msra.mxu0 0.0
    %2266 = vmatprep.subr.mxu0 0.0
    %2267 = vmatpush1.msra.mxu0 0.0
    %2268 = vmatprep.mubr.f32.mxu0 0.0
    %2269 = vmatmul.mubr.f32.gmra.mrb[0].mxu0 %v2202
    %v2270 = vpop.f32.mrb[0].mxu0
    %v2271 = vadd.f32 %v362, %v2270
    %v2272 = vpop.f32.mrb[0].mxu0
    %2273 = vdwg.mxu0
    %v2274 = vsel %vm242, %v2097, 0
    %2276 = vmatprep.subr.mxu0 0.0
    %2277 = vmatpush1.msra.mxu0 %v332
    %2278 = vmatprep.subr.mxu0 0.0
    %2279 = vmatpush1.msra.mxu0 %v333
    %2280 = vmatprep.subr.mxu0 0.0
    %2281 = vmatpush1.msra.mxu0 %v334
    %2282 = vmatprep.subr.mxu0 0.0
    %2283 = vmatpush1.msra.mxu0 %v335
    %2284 = vmatprep.subr.mxu0 0.0
    %2285 = vmatpush1.msra.mxu0 0.0
    %2286 = vmatprep.subr.mxu0 0.0
    %2287 = vmatpush1.msra.mxu0 0.0
    %2288 = vmatprep.subr.mxu0 0.0
    %2289 = vmatpush1.msra.mxu0 0.0
    %2290 = vmatprep.subr.mxu0 0.0
    %2291 = vmatpush1.msra.mxu0 0.0
    %2292 = vmatprep.subr.mxu0 0.0
    %2293 = vmatpush1.msra.mxu0 0.0
    %2294 = vmatprep.subr.mxu0 0.0
    %2295 = vmatpush1.msra.mxu0 0.0
    %2296 = vmatprep.subr.mxu0 0.0
    %2297 = vmatpush1.msra.mxu0 0.0
    %2298 = vmatprep.subr.mxu0 0.0
    %2299 = vmatpush1.msra.mxu0 0.0
    %2300 = vmatprep.subr.mxu0 0.0
    %2301 = vmatpush1.msra.mxu0 0.0
    %2302 = vmatprep.subr.mxu0 0.0
    %2303 = vmatpush1.msra.mxu0 0.0
    %2304 = vmatprep.subr.mxu0 0.0
    %2305 = vmatpush1.msra.mxu0 0.0
    %2306 = vmatprep.subr.mxu0 0.0
    %2307 = vmatpush1.msra.mxu0 0.0
    %2308 = vmatprep.subr.mxu0 0.0
    %2309 = vmatpush1.msra.mxu0 0.0
    %2310 = vmatprep.subr.mxu0 0.0
    %2311 = vmatpush1.msra.mxu0 0.0
    %2312 = vmatprep.subr.mxu0 0.0
    %2313 = vmatpush1.msra.mxu0 0.0
    %2314 = vmatprep.subr.mxu0 0.0
    %2315 = vmatpush1.msra.mxu0 0.0
    %2316 = vmatprep.subr.mxu0 0.0
    %2317 = vmatpush1.msra.mxu0 0.0
    %2318 = vmatprep.subr.mxu0 0.0
    %2319 = vmatpush1.msra.mxu0 0.0
    %2320 = vmatprep.subr.mxu0 0.0
    %2321 = vmatpush1.msra.mxu0 0.0
    %2322 = vmatprep.subr.mxu0 0.0
    %2323 = vmatpush1.msra.mxu0 0.0
    %2324 = vmatprep.subr.mxu0 0.0
    %2325 = vmatpush1.msra.mxu0 0.0
    %2326 = vmatprep.subr.mxu0 0.0
    %2327 = vmatpush1.msra.mxu0 0.0
    %2328 = vmatprep.subr.mxu0 0.0
    %2329 = vmatpush1.msra.mxu0 0.0
    %2330 = vmatprep.subr.mxu0 0.0
    %2331 = vmatpush1.msra.mxu0 0.0
    %2332 = vmatprep.subr.mxu0 0.0
    %2333 = vmatpush1.msra.mxu0 0.0
    %2334 = vmatprep.subr.mxu0 0.0
    %2335 = vmatpush1.msra.mxu0 0.0
    %2336 = vmatprep.subr.mxu0 0.0
    %2337 = vmatpush1.msra.mxu0 0.0
    %2338 = vmatprep.subr.mxu0 0.0
    %2339 = vmatpush1.msra.mxu0 0.0
    %2340 = vmatprep.mubr.f32.mxu0 0.0
    %2341 = vmatmul.mubr.f32.gmra.mrb[0].mxu0 %v2274
    %v2342 = vpop.f32.mrb[0].mxu0
    %v2343 = vadd.f32 0.0, %v2342
    %v2344 = vpop.f32.mrb[0].mxu0
    %2345 = vdwg.mxu0
    %v2346 = vadd.f32 %v2271, %v2343
    %v2347 = vmul.f32 %v2346, 0.5
    %v2348 = vtanh.pop %v2347
    %v2349 = vmul.f32 %v2348, 0.5
    %v2350 = vadd.f32 %v2349, 0.5
    %v2351 = vmul.f32 %v2350, %v2088
    %2353 = vrot.lane.b32.xlu0 %v2348, 64
    %v2354 = vpop.permute.xlu0 %2353
    %v2356 = vmul.f32 %v2350, %v2354
    %2358 = vrot.lane.b32.xlu0 %v2356, 32
    %v2359 = vpop.permute.xlu0 %2358
    %v2361 = vadd.f32 %v2351, %v2359
    %v2362 = vtanh.pop %v2361
    %2364 = vrot.lane.b32.xlu0 %v2362, 64
    %v2365 = vpop.permute.xlu0 %2364
    %v2367 = vmul.f32 %v2350, %v2365
    %2369 = vrot.lane.b32.xlu0 %v2367, 32
    %v2370 = vpop.permute.xlu0 %2369
    %2372 = vst.msk [vmem:[#allocation2 + $0xe] sm:$0x3] %vm464, %v2370
    %2373 = vrot.lane.b32.xlu0 %v2197, 32
    %v2374 = vpop.permute.xlu0 %2373
    %vm2376 = vcmask 261126
    %2377 = vst.msk [vmem:[#allocation16 - $0x6] sm:$0xc0] %vm2376, %v2374
    %2378 = vst.msk [vmem:[#allocation16 + $0x2] sm:$0x3] %vm464, %v2370
    %2380 = vrot.lane.b32.xlu0 %v2191, 96
    %v2381 = vpop.permute.xlu0 %2380
    %2383 = vst.msk [vmem:[#allocation18 - $0x6] sm:$0xc0] %vm2376, %v2381
    %2385 = vrot.lane.b32.xlu0 %v2361, 96
    %v2386 = vpop.permute.xlu0 %2385
    %2388 = vst.msk [vmem:[#allocation18 + $0x2] sm:$0x3] %vm464, %v2386
    %v2389 = vld [vmem:[#allocation2] sm:$0xff]
    %v2390 = vld [vmem:[#allocation2 + $0x8] sm:$0xff]
    %v2391 = vld [vmem:[%s9] sm:$0xff]
    %v2392 = vld [vmem:[%s9 + $0x8] sm:$0xff]
    %v2393 = vld [vmem:[%s9 + $0x10] sm:$0xff]
    %v2394 = vld [vmem:[%s9 + $0x18] sm:$0xff]
    %v2395 = vld [vmem:[%s10] sm:$0x1]
    %v2397 = vlaneseq
    %v2398 = vshrl.u32 %v2397, 7
    %v2399 = vsub.s32 0, %v2398
    %v2400 = vrot.slane %v2395, %v2399
    %v2403 = vsel %vm242, %v2389, 0
    %v2406 = vsel %vm242, %v2390, 0
    %2408 = vmatprep.subr.mxu0 0.0
    %2409 = vmatpush1.msra.mxu0 %v2391
    %2410 = vmatprep.subr.mxu0 0.0
    %2411 = vmatpush1.msra.mxu0 %v2392
    %2412 = vmatprep.subr.mxu0 0.0
    %2413 = vmatpush1.msra.mxu0 %v2393
    %2414 = vmatprep.subr.mxu0 0.0
    %2415 = vmatpush1.msra.mxu0 %v2394
    %2416 = vmatprep.subr.mxu0 0.0
    %2417 = vmatpush1.msra.mxu0 0.0
    %2418 = vmatprep.subr.mxu0 0.0
    %2419 = vmatpush1.msra.mxu0 0.0
    %2420 = vmatprep.subr.mxu0 0.0
    %2421 = vmatpush1.msra.mxu0 0.0
    %2422 = vmatprep.subr.mxu0 0.0
    %2423 = vmatpush1.msra.mxu0 0.0
    %2424 = vmatprep.subr.mxu0 0.0
    %2425 = vmatpush1.msra.mxu0 0.0
    %2426 = vmatprep.subr.mxu0 0.0
    %2427 = vmatpush1.msra.mxu0 0.0
    %2428 = vmatprep.subr.mxu0 0.0
    %2429 = vmatpush1.msra.mxu0 0.0
    %2430 = vmatprep.subr.mxu0 0.0
    %2431 = vmatpush1.msra.mxu0 0.0
    %2432 = vmatprep.subr.mxu0 0.0
    %2433 = vmatpush1.msra.mxu0 0.0
    %2434 = vmatprep.subr.mxu0 0.0
    %2435 = vmatpush1.msra.mxu0 0.0
    %2436 = vmatprep.subr.mxu0 0.0
    %2437 = vmatpush1.msra.mxu0 0.0
    %2438 = vmatprep.subr.mxu0 0.0
    %2439 = vmatpush1.msra.mxu0 0.0
    %2440 = vmatprep.subr.mxu0 0.0
    %2441 = vmatpush1.msra.mxu0 0.0
    %2442 = vmatprep.subr.mxu0 0.0
    %2443 = vmatpush1.msra.mxu0 0.0
    %2444 = vmatprep.subr.mxu0 0.0
    %2445 = vmatpush1.msra.mxu0 0.0
    %2446 = vmatprep.subr.mxu0 0.0
    %2447 = vmatpush1.msra.mxu0 0.0
    %2448 = vmatprep.subr.mxu0 0.0
    %2449 = vmatpush1.msra.mxu0 0.0
    %2450 = vmatprep.subr.mxu0 0.0
    %2451 = vmatpush1.msra.mxu0 0.0
    %2452 = vmatprep.subr.mxu0 0.0
    %2453 = vmatpush1.msra.mxu0 0.0
    %2454 = vmatprep.subr.mxu0 0.0
    %2455 = vmatpush1.msra.mxu0 0.0
    %2456 = vmatprep.subr.mxu0 0.0
    %2457 = vmatpush1.msra.mxu0 0.0
    %2458 = vmatprep.subr.mxu0 0.0
    %2459 = vmatpush1.msra.mxu0 0.0
    %2460 = vmatprep.subr.mxu0 0.0
    %2461 = vmatpush1.msra.mxu0 0.0
    %2462 = vmatprep.subr.mxu0 0.0
    %2463 = vmatpush1.msra.mxu0 0.0
    %2464 = vmatprep.subr.mxu0 0.0
    %2465 = vmatpush1.msra.mxu0 0.0
    %2466 = vmatprep.subr.mxu0 0.0
    %2467 = vmatpush1.msra.mxu0 0.0
    %2468 = vmatprep.subr.mxu0 0.0
    %2469 = vmatpush1.msra.mxu0 0.0
    %2470 = vmatprep.subr.mxu0 0.0
    %2471 = vmatpush1.msra.mxu0 0.0
    %2472 = vmatprep.mubr.f32.mxu0 0.0
    %2473 = vmatmul.mubr.f32.gmra.mrb[0].mxu0 %v2403
    %v2474 = vpop.f32.mrb[0].mxu0
    %v2475 = vadd.f32 %v2400, %v2474
    %v2476 = vpop.f32.mrb[0].mxu0
    %2477 = vmatprep.mubr.f32.mxu0 0.0
    %2478 = vmatmul.mubr.f32.gmra.mrb[0].mxu0 %v2406
    %v2479 = vpop.f32.mrb[0].mxu0
    %v2480 = vadd.f32 %v2400, %v2479
    %v2481 = vpop.f32.mrb[0].mxu0
    %2482 = vdwg.mxu0
    %v2483 = vxor.u32 %v2475, 2147483648
    %v2484 = vxor.u32 %v2480, 2147483648
    %v2485 = vmul.f32 %v2483, 1.442695
    %v2486 = vpow.pop %v2485
    %v2487 = vmul.f32 %v2484, 1.442695
    %v2488 = vpow.pop %v2487
    %v2489 = vadd.f32 %v2486, 1.0
    %v2490 = vadd.f32 %v2488, 1.0
    %v2491 = vrcp.pop %v2489
    %v2492 = vmul.f32 1.0, %v2491
    %v2493 = vrcp.pop %v2490
    %v2494 = vmul.f32 1.0, %v2493
    %2495 = vst [vmem:[#allocation15] sm:$0xff] %v2492
    %2496 = vst [vmem:[#allocation15 + $0x8] sm:$0xff] %v2494
    // Predicated region
    $region74: #{tpu_custom_call.1} parent=1 // pred_check
      _
    $region75: #{tpu_custom_call.1} parent=1 // pred_check_branch
      %2498 = sbr.rel (0) target = $region77
    $region76: #{tpu_custom_call.1} parent=1 // pred_region
      %s2500 = ssub.s32 256, 256
      %2501 = vsyncadd [#allocation5], %s2500
      %s2502 = sshll.u32 [#allocation15], 4
      %s2503 = int_to_ptr.vmem [resolvable:$true] %s2502
      %2508 = dma.vmem_to_hbm [thread:$0]  %s2503, 256, %s11, [#allocation5], 128, 128, 8
    $region77: #{tpu_custom_call.1} parent=1 // pred_fallthru
      _
    // Predicated region
    $region78: #{tpu_custom_call.1} parent=1 // pred_check
      _
    $region79: #{tpu_custom_call.1} parent=1 // pred_check_branch
      %2510 = sbr.rel (0) target = $region81
    $region80: #{tpu_custom_call.1} parent=1 // pred_region
      %s2512 = ssub.s32 64, 64
      %2513 = vsyncadd [#allocation17], %s2512
      %s2515 = sshll.u32 [#allocation16], 4
      %s2516 = int_to_ptr.vmem [resolvable:$true] %s2515
      %2518 = dma.vmem_to_hbm [thread:$0]  %s2516, 64, %s12, [#allocation17]
    $region81: #{tpu_custom_call.1} parent=1 // pred_fallthru
      _
    // Predicated region
    $region82: #{tpu_custom_call.1} parent=1 // pred_check
      _
    $region83: #{tpu_custom_call.1} parent=1 // pred_check_branch
      %2520 = sbr.rel (0) target = $region85
    $region84: #{tpu_custom_call.1} parent=1 // pred_region
      %s2522 = ssub.s32 64, 64
      %2523 = vsyncadd [#allocation17], %s2522
      %s2525 = sshll.u32 [#allocation18], 4
      %s2526 = int_to_ptr.vmem [resolvable:$true] %s2525
      %2528 = dma.vmem_to_hbm [thread:$0]  %s2526, 64, %s13, [#allocation17]
    $region85: #{tpu_custom_call.1} parent=1 // pred_fallthru
      _
    // Predicated region
    $region86: #{tpu_custom_call.1} parent=1 // pred_check
      _
    $region87: #{tpu_custom_call.1} parent=1 // pred_check_branch
      %2530 = sbr.rel (0) target = $region89
    $region88: #{tpu_custom_call.1} parent=1 // pred_region
      %2531 = dma.done [#allocation5], 256
    $region89: #{tpu_custom_call.1} parent=1 // pred_fallthru
      _
    // Predicated region
    $region90: #{tpu_custom_call.1} parent=1 // pred_check
      _
    $region91: #{tpu_custom_call.1} parent=1 // pred_check_branch
      %2533 = sbr.rel (0) target = $region93
    $region92: #{tpu_custom_call.1} parent=1 // pred_region
      %2534 = dma.done [#allocation17], 64
    $region93: #{tpu_custom_call.1} parent=1 // pred_fallthru
      _
    // Predicated region
    $region94: #{tpu_custom_call.1} parent=1 // pred_check
      _
    $region95: #{tpu_custom_call.1} parent=1 // pred_check_branch
      %2536 = sbr.rel (0) target = $region97
    $region96: #{tpu_custom_call.1} parent=1 // pred_region
      %2537 = dma.done [#allocation17], 64
    $region97: #{tpu_custom_call.1} parent=1 // pred_fallthru
      _
    %2538 = vsyncpa [#allocation4], 1
    %2539 = vsyncpa [#allocation7], 1
    %2540 = vsyncpa [#allocation10], 1
    %2541 = vsyncpa [#allocation13], 1
    %2542 = vsyncpa [#allocation5], 1
    %2543 = vsyncpa [#allocation17], 1

</llo_original>
